<compile_context>
chip_gen: v7x
topology: tpu7x:2x2x1
jax: 0.10.0
libtpu: 0.0.40
codegen_flags: <defaults>
</compile_context>

<pallas_src>
import math
from functools import partial

import jax
import jax.numpy as jnp
from jax.experimental import pallas as pl
from jax.experimental.pallas import tpu as pltpu


# --------------------------------------------------------------------------
# Kernel
# --------------------------------------------------------------------------
def _window_attention_kernel(x_ref, wqkv_ref, bqkv_ref, bias_ref, wproj_ref,
                             bproj_ref, o_ref, *, num_heads, scale):
    # x_ref    : (BW, N, C)   BW windows of N tokens, C channels
    # wqkv_ref : (C, 3C)      qkv weight, pre-transposed (in, out)
    # bqkv_ref : (1, 3C)      qkv bias
    # bias_ref : (H, N, N)    relative position bias (pre-gathered)
    # wproj_ref: (C, C)       output projection weight, pre-transposed
    # bproj_ref: (1, C)       output projection bias
    # o_ref    : (BW, N, C)
    bw, n, c = x_ref.shape
    d = c // num_heads

    # qkv projection on the MXU, f32 accumulate (no explicit input up-cast).
    x2 = x_ref[...].reshape(bw * n, c)
    qkv = jnp.dot(x2, wqkv_ref[...], preferred_element_type=jnp.float32)
    qkv = qkv + bqkv_ref[...]
    qkv = qkv.reshape(bw, n, 3 * c)

    # Accumulate the output projection head-by-head (avoids an in-kernel
    # concatenate of head outputs along the lane dim).
    y = jnp.zeros((bw * n, c), dtype=jnp.float32)
    for h in range(num_heads):
        q_h = qkv[:, :, h * d:(h + 1) * d] * scale          # (BW, N, d)
        k_h = qkv[:, :, c + h * d:c + (h + 1) * d]           # (BW, N, d)
        v_h = qkv[:, :, 2 * c + h * d:2 * c + (h + 1) * d]   # (BW, N, d)

        # attention scores per window: (BW, N, N)
        attn = jnp.einsum('bnd,bmd->bnm', q_h, k_h,
                          preferred_element_type=jnp.float32)
        attn = attn + bias_ref[h][None, :, :]

        # numerically stable softmax over the last dim
        attn = attn - jnp.max(attn, axis=-1, keepdims=True)
        attn = jnp.exp(attn)
        attn = attn / jnp.sum(attn, axis=-1, keepdims=True)
        # attn_drop: eval-mode identity

        out_h = jnp.einsum('bnm,bmd->bnd', attn, v_h,
                           preferred_element_type=jnp.float32)
        # partial output projection for this head's slice of wproj
        y = y + jnp.dot(out_h.reshape(bw * n, d),
                        wproj_ref[h * d:(h + 1) * d, :],
                        preferred_element_type=jnp.float32)

    y = y + bproj_ref[...]
    # proj_drop: eval-mode identity
    o_ref[...] = y.reshape(bw, n, c).astype(o_ref.dtype)


# --------------------------------------------------------------------------
# Wrapper
# --------------------------------------------------------------------------
def window_attention_3d(x, wqkv_t, bqkv, rel_bias, wproj_t, bproj, *,
                        num_heads, scale, windows_per_block=4):
    """x: (B_, N, C) -> (B_, N, C). Weights pre-transposed to (in, out)."""
    b_, n, c = x.shape
    h = num_heads

    bw = max(1, min(windows_per_block, b_))
    b_pad = pl.cdiv(b_, bw) * bw
    if b_pad != b_:
        # pad only the (usually tiny) ragged tail of windows
        x = jnp.pad(x, ((0, b_pad - b_), (0, 0), (0, 0)))

    bqkv2 = bqkv.reshape(1, 3 * c)
    bproj2 = bproj.reshape(1, c)

    grid = (b_pad // bw,)
    kernel = partial(_window_attention_kernel, num_heads=num_heads, scale=scale)

    out = pl.pallas_call(
        kernel,
        out_shape=jax.ShapeDtypeStruct((b_pad, n, c), x.dtype),
        grid_spec=pltpu.PrefetchScalarGridSpec(
            num_scalar_prefetch=0,
            grid=grid,
            in_specs=[
                pl.BlockSpec((bw, n, c), lambda i: (i, 0, 0)),       # x tile
                pl.BlockSpec((c, 3 * c), lambda i: (0, 0)),          # wqkv
                pl.BlockSpec((1, 3 * c), lambda i: (0, 0)),          # bqkv
                pl.BlockSpec((h, n, n), lambda i: (0, 0, 0)),        # rel bias
                pl.BlockSpec((c, c), lambda i: (0, 0)),              # wproj
                pl.BlockSpec((1, c), lambda i: (0, 0)),              # bproj
            ],
            out_specs=pl.BlockSpec((bw, n, c), lambda i: (i, 0, 0)),
        ),
        compiler_params=pltpu.CompilerParams(
            dimension_semantics=("parallel",),     # shards windows across TCs (v7x)
            vmem_limit_bytes=32 * 1024 * 1024,     # explicit, safe on v5e/v6e/v7x
        ),
    )(x, wqkv_t, bqkv2, rel_bias, wproj_t, bproj2)

    return out[:b_]


# --------------------------------------------------------------------------
# Relative position bias (parameter-only preprocessing, matches PyTorch)
# --------------------------------------------------------------------------
def _relative_position_index(window_size):
    wd, wh, ww = window_size
    coords = jnp.stack(jnp.meshgrid(jnp.arange(wd), jnp.arange(wh),
                                    jnp.arange(ww), indexing='ij'))   # (3,wd,wh,ww)
    coords_flatten = coords.reshape(3, -1)                            # (3, N)
    rel = coords_flatten[:, :, None] - coords_flatten[:, None, :]     # (3, N, N)
    rel = rel.transpose(1, 2, 0)                                      # (N, N, 3)
    rel = rel + jnp.array([wd - 1, wh - 1, ww - 1], dtype=rel.dtype)
    rel = rel * jnp.array([(2 * wh - 1) * (2 * ww - 1), 2 * ww - 1, 1],
                          dtype=rel.dtype)
    return rel.sum(-1)                                                # (N, N)


def _gather_relative_position_bias(table, rpi, num_heads):
    n = rpi.shape[0]
    bias = table[rpi.reshape(-1)].reshape(n, n, num_heads)
    return bias.transpose(2, 0, 1)                                    # (H, N, N)


# --------------------------------------------------------------------------
# Pure-JAX reference (mirrors the PyTorch forward, mask=None path)
# --------------------------------------------------------------------------
def _reference(x, wqkv_t, bqkv, rel_bias, wproj_t, bproj, num_heads, scale):
    b_, n, c = x.shape
    d = c // num_heads
    qkv = jnp.einsum('bnc,ck->bnk', x, wqkv_t, precision='highest') + bqkv
    qkv = qkv.reshape(b_, n, 3, num_heads, d).transpose(2, 0, 3, 1, 4)
    q, k, v = qkv[0] * scale, qkv[1], qkv[2]                          # (B_,H,N,d)
    attn = jnp.einsum('bhnd,bhmd->bhnm', q, k, precision='highest')
    attn = attn + rel_bias[None]
    attn = jax.nn.softmax(attn, axis=-1)
    out = jnp.einsum('bhnm,bhmd->bhnd', attn, v, precision='highest')
    out = out.transpose(0, 2, 1, 3).reshape(b_, n, c)
    return jnp.einsum('bnc,ck->bnk', out, wproj_t, precision='highest') + bproj


# --------------------------------------------------------------------------
# Example / self-test
# --------------------------------------------------------------------------
if __name__ == "__main__":
    # Small but module-consistent shapes:
    #   window_size (2,4,4) -> N = 32 tokens per window
    #   dim = 64, num_heads = 2 -> head_dim = 32
    #   batch = 2, num_windows = 4 -> B_ = 8 windows total
    window_size = (2, 4, 4)
    dim = 64
    num_heads = 2
    head_dim = dim // num_heads
    scale = head_dim ** (-0.5)
    batch, num_windows = 2, 4
    b_ = batch * num_windows
    n = window_size[0] * window_size[1] * window_size[2]

    key = jax.random.PRNGKey(0)
    kx, kw1, kb1, kw2, kb2, kt = jax.random.split(key, 6)

    x = jax.random.normal(kx, (b_, n, dim), dtype=jnp.float32)

    bound = 1.0 / math.sqrt(dim)
    wqkv_t = jax.random.uniform(kw1, (dim, 3 * dim), jnp.float32, -bound, bound)
    bqkv = jax.random.uniform(kb1, (3 * dim,), jnp.float32, -bound, bound)
    wproj_t = jax.random.uniform(kw2, (dim, dim), jnp.float32, -bound, bound)
    bproj = jax.random.uniform(kb2, (dim,), jnp.float32, -bound, bound)

    table_len = ((2 * window_size[0] - 1) * (2 * window_size[1] - 1)
                 * (2 * window_size[2] - 1))
    bias_table = 0.02 * jax.random.normal(kt, (table_len, num_heads), jnp.float32)

    rpi = _relative_position_index(window_size)
    rel_bias = _gather_relative_position_bias(bias_table, rpi, num_heads)

    out = window_attention_3d(x, wqkv_t, bqkv, rel_bias, wproj_t, bproj,
                              num_heads=num_heads, scale=scale,
                              windows_per_block=4)
    out = jax.block_until_ready(out)
    assert out.shape == (b_, n, dim), out.shape

    ref = _reference(x, wqkv_t, bqkv, rel_bias, wproj_t, bproj, num_heads, scale)
    max_err = float(jnp.max(jnp.abs(out - ref)))
    assert jnp.allclose(out, ref, atol=1e-3, rtol=1e-3), max_err

    print("KERNEL_OK")
</pallas_src>

<mosaic_0001>
module attributes {stable_mosaic.version = 11 : i64} {
  func.func @_window_attention_kernel(%arg0: i32, %arg1: memref<4x32x64xf32, #tpu.memory_space<vmem>>, %arg2: memref<64x192xf32, #tpu.memory_space<vmem>>, %arg3: memref<1x192xf32, #tpu.memory_space<vmem>>, %arg4: memref<2x32x32xf32, #tpu.memory_space<vmem>>, %arg5: memref<64x64xf32, #tpu.memory_space<vmem>>, %arg6: memref<1x64xf32, #tpu.memory_space<vmem>>, %arg7: memref<4x32x64xf32, #tpu.memory_space<vmem>>) attributes {dimension_semantics = [#tpu.dimension_semantics<parallel>], iteration_bounds = array<i64: 2>, scalar_prefetch = 0 : i64, scratch_operands = 0 : i64, tpu.core_type = #tpu.core_type<tc>, window_params = [{transform_indices = @transform_0, window_bounds = array<i64: 4, 32, 64>}, {pipeline_mode = #tpu.pipeline_mode<synchronous>, transform_indices = @transform_1, window_bounds = array<i64: 64, 192>}, {pipeline_mode = #tpu.pipeline_mode<synchronous>, transform_indices = @transform_2, window_bounds = array<i64: 1, 192>}, {pipeline_mode = #tpu.pipeline_mode<synchronous>, transform_indices = @transform_3, window_bounds = array<i64: 2, 32, 32>}, {pipeline_mode = #tpu.pipeline_mode<synchronous>, transform_indices = @transform_4, window_bounds = array<i64: 64, 64>}, {pipeline_mode = #tpu.pipeline_mode<synchronous>, transform_indices = @transform_5, window_bounds = array<i64: 1, 64>}, {transform_indices = @transform_6, window_bounds = array<i64: 4, 32, 64>}]} {
    %c0 = arith.constant 0 : index
    %c0_0 = arith.constant 0 : index
    %c0_1 = arith.constant 0 : index
    %0 = vector.load %arg1[%c0, %c0_0, %c0_1] : memref<4x32x64xf32, #tpu.memory_space<vmem>>, vector<4x32x64xf32>
    %1 = vector.shape_cast %0 : vector<4x32x64xf32> to vector<128x64xf32>
    %c0_2 = arith.constant 0 : index
    %c0_3 = arith.constant 0 : index
    %2 = vector.load %arg2[%c0_2, %c0_3] : memref<64x192xf32, #tpu.memory_space<vmem>>, vector<64x192xf32>
    %cst = arith.constant dense<0.000000e+00> : vector<128x192xf32>
    %3 = tpu.matmul %1, %2, %cst {dimension_numbers = #tpu.dot_dimension_numbers<[1], [0], [0], [1], [0, 0, 1, 1], [], []>} : vector<128x64xf32>, vector<64x192xf32>, vector<128x192xf32> -> vector<128x192xf32>
    %c0_4 = arith.constant 0 : index
    %c0_5 = arith.constant 0 : index
    %4 = vector.load %arg3[%c0_4, %c0_5] : memref<1x192xf32, #tpu.memory_space<vmem>>, vector<1x192xf32>
    %5 = vector.broadcast %4 : vector<1x192xf32> to vector<128x192xf32>
    %6 = arith.addf %3, %5 : vector<128x192xf32>
    %7 = vector.shape_cast %6 : vector<128x192xf32> to vector<4x32x192xf32>
    %cst_6 = arith.constant 0.000000e+00 : f32
    %8 = vector.broadcast %cst_6 : f32 to vector<128x64xf32>
    %9 = vector.extract_strided_slice %7 {offsets = [0, 0, 0], sizes = [4, 32, 32], strides = [1, 1, 1]} : vector<4x32x192xf32> to vector<4x32x32xf32>
    %cst_7 = arith.constant 0.176776692 : f32
    %10 = vector.broadcast %cst_7 : f32 to vector<4x32x32xf32>
    %11 = arith.mulf %9, %10 : vector<4x32x32xf32>
    %12 = vector.extract_strided_slice %7 {offsets = [0, 0, 64], sizes = [4, 32, 32], strides = [1, 1, 1]} : vector<4x32x192xf32> to vector<4x32x32xf32>
    %13 = vector.extract_strided_slice %7 {offsets = [0, 0, 128], sizes = [4, 32, 32], strides = [1, 1, 1]} : vector<4x32x192xf32> to vector<4x32x32xf32>
    "tpu.trace_start"() <{level = 10 : i32, message = "bnd,bmd->bnm"}> : () -> ()
    %cst_8 = arith.constant dense<0.000000e+00> : vector<4x32x32xf32>
    %14 = tpu.matmul %11, %12, %cst_8 {dimension_numbers = #tpu.dot_dimension_numbers<[2], [2], [1], [1], [0, 0, 0, 1, 1, 1], [0], [0]>} : vector<4x32x32xf32>, vector<4x32x32xf32>, vector<4x32x32xf32> -> vector<4x32x32xf32>
    "tpu.trace_stop"() : () -> ()
    %c0_9 = arith.constant 0 : index
    %c0_10 = arith.constant 0 : index
    %c0_11 = arith.constant 0 : index
    %15 = vector.load %arg4[%c0_9, %c0_10, %c0_11] : memref<2x32x32xf32, #tpu.memory_space<vmem>>, vector<1x32x32xf32>
    %16 = vector.shape_cast %15 : vector<1x32x32xf32> to vector<32x32xf32>
    %17 = vector.shape_cast %16 : vector<32x32xf32> to vector<1x32x32xf32>
    %18 = vector.broadcast %17 : vector<1x32x32xf32> to vector<4x32x32xf32>
    %19 = arith.addf %14, %18 : vector<4x32x32xf32>
    %cst_12 = arith.constant dense<0xFF800000> : vector<4x32xf32>
    %20 = vector.multi_reduction <maximumf>, %19, %cst_12 [2] : vector<4x32x32xf32> to vector<4x32xf32>
    %21 = vector.shape_cast %20 : vector<4x32xf32> to vector<4x32x1xf32>
    %22 = vector.broadcast %21 : vector<4x32x1xf32> to vector<4x32x32xf32>
    %23 = arith.subf %19, %22 : vector<4x32x32xf32>
    %24 = math.exp %23 : vector<4x32x32xf32>
    %cst_13 = arith.constant dense<0.000000e+00> : vector<4x32xf32>
    %25 = vector.multi_reduction <add>, %24, %cst_13 [2] : vector<4x32x32xf32> to vector<4x32xf32>
    %26 = vector.shape_cast %25 : vector<4x32xf32> to vector<4x32x1xf32>
    %27 = vector.broadcast %26 : vector<4x32x1xf32> to vector<4x32x32xf32>
    %28 = arith.divf %24, %27 : vector<4x32x32xf32>
    "tpu.trace_start"() <{level = 10 : i32, message = "bnm,bmd->bnd"}> : () -> ()
    %cst_14 = arith.constant dense<0.000000e+00> : vector<4x32x32xf32>
    %29 = tpu.matmul %28, %13, %cst_14 {dimension_numbers = #tpu.dot_dimension_numbers<[2], [1], [1], [2], [0, 0, 0, 1, 1, 2], [0], [0]>} : vector<4x32x32xf32>, vector<4x32x32xf32>, vector<4x32x32xf32> -> vector<4x32x32xf32>
    "tpu.trace_stop"() : () -> ()
    %30 = vector.shape_cast %29 : vector<4x32x32xf32> to vector<128x32xf32>
    %c0_15 = arith.constant 0 : index
    %c0_16 = arith.constant 0 : index
    %31 = vector.load %arg5[%c0_15, %c0_16] : memref<64x64xf32, #tpu.memory_space<vmem>>, vector<32x64xf32>
    %cst_17 = arith.constant dense<0.000000e+00> : vector<128x64xf32>
    %32 = tpu.matmul %30, %31, %cst_17 {dimension_numbers = #tpu.dot_dimension_numbers<[1], [0], [0], [1], [0, 0, 1, 1], [], []>} : vector<128x32xf32>, vector<32x64xf32>, vector<128x64xf32> -> vector<128x64xf32>
    %33 = arith.addf %8, %32 : vector<128x64xf32>
    %34 = vector.extract_strided_slice %7 {offsets = [0, 0, 32], sizes = [4, 32, 32], strides = [1, 1, 1]} : vector<4x32x192xf32> to vector<4x32x32xf32>
    %cst_18 = arith.constant 0.176776692 : f32
    %35 = vector.broadcast %cst_18 : f32 to vector<4x32x32xf32>
    %36 = arith.mulf %34, %35 : vector<4x32x32xf32>
    %37 = vector.extract_strided_slice %7 {offsets = [0, 0, 96], sizes = [4, 32, 32], strides = [1, 1, 1]} : vector<4x32x192xf32> to vector<4x32x32xf32>
    %38 = vector.extract_strided_slice %7 {offsets = [0, 0, 160], sizes = [4, 32, 32], strides = [1, 1, 1]} : vector<4x32x192xf32> to vector<4x32x32xf32>
    "tpu.trace_start"() <{level = 10 : i32, message = "bnd,bmd->bnm"}> : () -> ()
    %cst_19 = arith.constant dense<0.000000e+00> : vector<4x32x32xf32>
    %39 = tpu.matmul %36, %37, %cst_19 {dimension_numbers = #tpu.dot_dimension_numbers<[2], [2], [1], [1], [0, 0, 0, 1, 1, 1], [0], [0]>} : vector<4x32x32xf32>, vector<4x32x32xf32>, vector<4x32x32xf32> -> vector<4x32x32xf32>
    "tpu.trace_stop"() : () -> ()
    %c1 = arith.constant 1 : index
    %c0_20 = arith.constant 0 : index
    %c0_21 = arith.constant 0 : index
    %40 = vector.load %arg4[%c1, %c0_20, %c0_21] : memref<2x32x32xf32, #tpu.memory_space<vmem>>, vector<1x32x32xf32>
    %41 = vector.shape_cast %40 : vector<1x32x32xf32> to vector<32x32xf32>
    %42 = vector.shape_cast %41 : vector<32x32xf32> to vector<1x32x32xf32>
    %43 = vector.broadcast %42 : vector<1x32x32xf32> to vector<4x32x32xf32>
    %44 = arith.addf %39, %43 : vector<4x32x32xf32>
    %cst_22 = arith.constant dense<0xFF800000> : vector<4x32xf32>
    %45 = vector.multi_reduction <maximumf>, %44, %cst_22 [2] : vector<4x32x32xf32> to vector<4x32xf32>
    %46 = vector.shape_cast %45 : vector<4x32xf32> to vector<4x32x1xf32>
    %47 = vector.broadcast %46 : vector<4x32x1xf32> to vector<4x32x32xf32>
    %48 = arith.subf %44, %47 : vector<4x32x32xf32>
    %49 = math.exp %48 : vector<4x32x32xf32>
    %cst_23 = arith.constant dense<0.000000e+00> : vector<4x32xf32>
    %50 = vector.multi_reduction <add>, %49, %cst_23 [2] : vector<4x32x32xf32> to vector<4x32xf32>
    %51 = vector.shape_cast %50 : vector<4x32xf32> to vector<4x32x1xf32>
    %52 = vector.broadcast %51 : vector<4x32x1xf32> to vector<4x32x32xf32>
    %53 = arith.divf %49, %52 : vector<4x32x32xf32>
    "tpu.trace_start"() <{level = 10 : i32, message = "bnm,bmd->bnd"}> : () -> ()
    %cst_24 = arith.constant dense<0.000000e+00> : vector<4x32x32xf32>
    %54 = tpu.matmul %53, %38, %cst_24 {dimension_numbers = #tpu.dot_dimension_numbers<[2], [1], [1], [2], [0, 0, 0, 1, 1, 2], [0], [0]>} : vector<4x32x32xf32>, vector<4x32x32xf32>, vector<4x32x32xf32> -> vector<4x32x32xf32>
    "tpu.trace_stop"() : () -> ()
    %55 = vector.shape_cast %54 : vector<4x32x32xf32> to vector<128x32xf32>
    %c32 = arith.constant 32 : index
    %c0_25 = arith.constant 0 : index
    %56 = vector.load %arg5[%c32, %c0_25] : memref<64x64xf32, #tpu.memory_space<vmem>>, vector<32x64xf32>
    %cst_26 = arith.constant dense<0.000000e+00> : vector<128x64xf32>
    %57 = tpu.matmul %55, %56, %cst_26 {dimension_numbers = #tpu.dot_dimension_numbers<[1], [0], [0], [1], [0, 0, 1, 1], [], []>} : vector<128x32xf32>, vector<32x64xf32>, vector<128x64xf32> -> vector<128x64xf32>
    %58 = arith.addf %33, %57 : vector<128x64xf32>
    %c0_27 = arith.constant 0 : index
    %c0_28 = arith.constant 0 : index
    %59 = vector.load %arg6[%c0_27, %c0_28] : memref<1x64xf32, #tpu.memory_space<vmem>>, vector<1x64xf32>
    %60 = vector.broadcast %59 : vector<1x64xf32> to vector<128x64xf32>
    %61 = arith.addf %58, %60 : vector<128x64xf32>
    %62 = vector.shape_cast %61 : vector<128x64xf32> to vector<4x32x64xf32>
    %c0_29 = arith.constant 0 : index
    %c0_30 = arith.constant 0 : index
    %c0_31 = arith.constant 0 : index
    %63 = vector.load %arg7[%c0_29, %c0_30, %c0_31] : memref<4x32x64xf32, #tpu.memory_space<vmem>>, vector<4x32x64xf32>
    tpu.vector_store %arg7[%c0_29, %c0_30, %c0_31], %62 {strides = array<i32>} : memref<4x32x64xf32, #tpu.memory_space<vmem>>, vector<4x32x64xf32>,
    return
  }
  func.func @transform_0(%arg0: i32) -> (i32, i32, i32) {
    %c0_i32 = arith.constant 0 : i32
    %c0_i32_0 = arith.constant 0 : i32
    %c0_i32_1 = arith.constant 0 : i32
    return %arg0, %c0_i32, %c0_i32_0 : i32, i32, i32
  }
  func.func @transform_1(%arg0: i32) -> (i32, i32) {
    %c0_i32 = arith.constant 0 : i32
    %c0_i32_0 = arith.constant 0 : i32
    %c0_i32_1 = arith.constant 0 : i32
    return %c0_i32, %c0_i32_0 : i32, i32
  }
  func.func @transform_2(%arg0: i32) -> (i32, i32) {
    %c0_i32 = arith.constant 0 : i32
    %c0_i32_0 = arith.constant 0 : i32
    %c0_i32_1 = arith.constant 0 : i32
    return %c0_i32, %c0_i32_0 : i32, i32
  }
  func.func @transform_3(%arg0: i32) -> (i32, i32, i32) {
    %c0_i32 = arith.constant 0 : i32
    %c0_i32_0 = arith.constant 0 : i32
    %c0_i32_1 = arith.constant 0 : i32
    %c0_i32_2 = arith.constant 0 : i32
    return %c0_i32, %c0_i32_0, %c0_i32_1 : i32, i32, i32
  }
  func.func @transform_4(%arg0: i32) -> (i32, i32) {
    %c0_i32 = arith.constant 0 : i32
    %c0_i32_0 = arith.constant 0 : i32
    %c0_i32_1 = arith.constant 0 : i32
    return %c0_i32, %c0_i32_0 : i32, i32
  }
  func.func @transform_5(%arg0: i32) -> (i32, i32) {
    %c0_i32 = arith.constant 0 : i32
    %c0_i32_0 = arith.constant 0 : i32
    %c0_i32_1 = arith.constant 0 : i32
    return %c0_i32, %c0_i32_0 : i32, i32
  }
  func.func @transform_6(%arg0: i32) -> (i32, i32, i32) {
    %c0_i32 = arith.constant 0 : i32
    %c0_i32_0 = arith.constant 0 : i32
    %c0_i32_1 = arith.constant 0 : i32
    return %arg0, %c0_i32, %c0_i32_0 : i32, i32, i32
  }
}

</mosaic_0001>

<llo_original>
// kernel: tpu_custom_call.1
$region0: #{tpu_custom_call.1}
  #allocation0 [shape = 'u32[]', space=smem, size = 0x4, offset = 0x4, fixed_abs, tag = 'smem constant byte address 0x4 - core index']
  #allocation1 [shape = 'u32[144,128]{1,0:T(1,128)}', space=vmem, size = 0x12000, scoped, tag = 'internal scratch']
  %s0 = inlined_call_operand.hbm [shape: f32[8,32,64], index: 0, kind: input, shape index: {}]
  %s1 = inlined_call_operand.hbm [shape: f32[64,192], index: 1, kind: input, shape index: {}]
  %s2 = inlined_call_operand.vmem [shape: f32[1,192], index: 2, kind: input, shape index: {}]
  %s3 = inlined_call_operand.hbm [shape: f32[2,32,32], index: 3, kind: input, shape index: {}]
  %s4 = inlined_call_operand.hbm [shape: f32[64,64], index: 4, kind: input, shape index: {}]
  %s5 = inlined_call_operand.vmem [shape: f32[1,64], index: 5, kind: input, shape index: {}]
  %s6 = inlined_call_operand.hbm [shape: f32[8,32,64], index: 6, kind: output, shape index: {}]
  %s7 = sld [smem:[#allocation0]]
  $region73: #{tpu_custom_call.1} parent=0
    _
  %s9 = ssub.s32 1, %s7
  %s10 = scalar_select 0, %s9, %s7
  $region1: #{tpu_custom_call.1} parent=0
    #allocation2 [shape = 'u8[131072]{0}', space=vmem, size = 0x20000, scoped, tag = 'input window, operand 0']
    #allocation3 [shape = 's32[2]{0}', space=sflag, size = 0x8, scoped, tag = 'scoped memory for tpu_custom_call.1']
    #allocation4 [shape = 's32[2]{0}', space=sflag, size = 0x8, scoped, tag = 'scoped memory for tpu_custom_call.1']
    #allocation5 [shape = 'u8[65536]{0}', space=vmem, size = 0x10000, scoped, tag = 'input window, operand 1, single buffered']
    #allocation6 [shape = 's32[1]{0}', space=sflag, size = 0x4, scoped, tag = 'scoped memory for tpu_custom_call.1']
    #allocation7 [shape = 'u8[32768]{0}', space=vmem, size = 0x8000, scoped, tag = 'input window, operand 3, single buffered']
    #allocation8 [shape = 'u8[32768]{0}', space=vmem, size = 0x8000, scoped, tag = 'input window, operand 4, single buffered']
    #allocation9 [shape = 's32[1]{0}', space=sflag, size = 0x4, scoped, tag = 'scoped memory for tpu_custom_call.1']
    #allocation10 [shape = 'u8[131072]{0}', space=vmem, size = 0x20000, scoped, tag = 'output window, operand 0']
    %11 = vsyncpa [#allocation3], 0
    %s12 = scalar_lea.sflag [#allocation3], 1
    %13 = vsyncpa %s12, 0
    %14 = vsyncpa [#allocation6], 0
    %15 = vsyncpa [#allocation9], 0
    %16 = vsyncpa [#allocation4], 0
    %s17 = scalar_lea.sflag [#allocation4], 1
    %18 = vsyncpa %s17, 0
    loop: start=0, step=1, limit=4
    $region2: #{tpu_custom_call.1} parent=1 // loop_pre_header
      _
    $region3: #{tpu_custom_call.1} parent=1 // loop_header
      %s20 = sphi 0, %s24
      %p21 = scmp.ge.s32.totalorder %s20, 4
      %s30 = sphi 0, %s32
      %s33 = sphi 0, %s30
      %s34 = sphi 0, %s33
      %s50 = sphi 0, %s34
      %s54 = sphi 0, %s54
      %s56 = sphi 0, %s54
      %s57 = sphi 0, %s56
      %s71 = sphi 0, %s57
      %s75 = sphi 0, %s75
      %s77 = sphi 0, %s75
      %s78 = sphi 0, %s77
      %s92 = sphi 0, %s78
      %s96 = sphi 0, %s96
      %s98 = sphi 0, %s96
      %s99 = sphi 0, %s98
      %s113 = sphi 0, %s99
      %s117 = sphi 0, %s117
      %s119 = sphi 0, %s117
      %s120 = sphi 0, %s119
      %s134 = sphi 0, %s120
      %s138 = sphi 0, %s138
      %s140 = sphi 0, %s138
      %s141 = sphi 0, %s140
      %s155 = sphi 0, %s141
      %s161 = sphi 0, %s163
      %s164 = sphi 0, %s161
      %s165 = sphi 0, %s164
      %s181 = sphi 0, %s165
    $region4: #{tpu_custom_call.1} parent=1 // loop_header_branch
      %23 = sbr.rel (%p21) target = $region8
    $region5: #{tpu_custom_call.1} parent=1 // loop_body
      %s25 = ssub.s32 %s20, 1
      %s26 = ssub.s32 %s20, 2
      %s27 = sadd.s32 %s20, 1
      %s28 = ssub.s32 %s20, %s27
      %p29 = scmp.eq.s32.totalorder %s28, 0
      %s31 = sadd.s32 %s30, 1
      %s32 = scalar_select %p29, %s30, %s31
      %p35 = pneg %p29
      %p36 = scmp.eq.s32.totalorder %s20, 1
      %p37 = por %p35, %p36
      %p38 = scmp.ne.s32.totalorder %s30, %s33
      %p39 = scmp.eq.s32.totalorder %s20, 0
      %p40 = por %p38, %p39
      %p41 = scmp.ne.s32.totalorder %s30, %s33
      %p42 = scmp.eq.s32.totalorder %s25, 1
      %p43 = por %p41, %p42
      %p44 = scmp.ne.s32.totalorder %s33, %s34
      %p45 = scmp.eq.s32.totalorder %s25, 0
      %p46 = por %p44, %p45
      %p47 = scmp.ne.s32.totalorder %s33, %s34
      %p48 = scmp.eq.s32.totalorder %s26, 1
      %p49 = por %p47, %p48
      %p51 = scmp.ne.s32.totalorder %s34, %s50
      %p52 = scmp.eq.s32.totalorder %s26, 0
      %p53 = por %p51, %p52
      %s55 = sadd.s32 %s54, 1
      %p58 = scmp.eq.s32.totalorder %s20, 1
      %p59 = scmp.ne.s32.totalorder %s54, %s56
      %p60 = scmp.eq.s32.totalorder %s20, 0
      %p61 = por %p59, %p60
      %p62 = scmp.ne.s32.totalorder %s54, %s56
      %p63 = scmp.eq.s32.totalorder %s25, 1
      %p64 = por %p62, %p63
      %p65 = scmp.ne.s32.totalorder %s56, %s57
      %p66 = scmp.eq.s32.totalorder %s25, 0
      %p67 = por %p65, %p66
      %p68 = scmp.ne.s32.totalorder %s56, %s57
      %p69 = scmp.eq.s32.totalorder %s26, 1
      %p70 = por %p68, %p69
      %p72 = scmp.ne.s32.totalorder %s57, %s71
      %p73 = scmp.eq.s32.totalorder %s26, 0
      %p74 = por %p72, %p73
      %s76 = sadd.s32 %s75, 1
      %p79 = scmp.eq.s32.totalorder %s20, 1
      %p80 = scmp.ne.s32.totalorder %s75, %s77
      %p81 = scmp.eq.s32.totalorder %s20, 0
      %p82 = por %p80, %p81
      %p83 = scmp.ne.s32.totalorder %s75, %s77
      %p84 = scmp.eq.s32.totalorder %s25, 1
      %p85 = por %p83, %p84
      %p86 = scmp.ne.s32.totalorder %s77, %s78
      %p87 = scmp.eq.s32.totalorder %s25, 0
      %p88 = por %p86, %p87
      %p89 = scmp.ne.s32.totalorder %s77, %s78
      %p90 = scmp.eq.s32.totalorder %s26, 1
      %p91 = por %p89, %p90
      %p93 = scmp.ne.s32.totalorder %s78, %s92
      %p94 = scmp.eq.s32.totalorder %s26, 0
      %p95 = por %p93, %p94
      %s97 = sadd.s32 %s96, 1
      %p100 = scmp.eq.s32.totalorder %s20, 1
      %p101 = scmp.ne.s32.totalorder %s96, %s98
      %p102 = scmp.eq.s32.totalorder %s20, 0
      %p103 = por %p101, %p102
      %p104 = scmp.ne.s32.totalorder %s96, %s98
      %p105 = scmp.eq.s32.totalorder %s25, 1
      %p106 = por %p104, %p105
      %p107 = scmp.ne.s32.totalorder %s98, %s99
      %p108 = scmp.eq.s32.totalorder %s25, 0
      %p109 = por %p107, %p108
      %p110 = scmp.ne.s32.totalorder %s98, %s99
      %p111 = scmp.eq.s32.totalorder %s26, 1
      %p112 = por %p110, %p111
      %p114 = scmp.ne.s32.totalorder %s99, %s113
      %p115 = scmp.eq.s32.totalorder %s26, 0
      %p116 = por %p114, %p115
      %s118 = sadd.s32 %s117, 1
      %p121 = scmp.eq.s32.totalorder %s20, 1
      %p122 = scmp.ne.s32.totalorder %s117, %s119
      %p123 = scmp.eq.s32.totalorder %s20, 0
      %p124 = por %p122, %p123
      %p125 = scmp.ne.s32.totalorder %s117, %s119
      %p126 = scmp.eq.s32.totalorder %s25, 1
      %p127 = por %p125, %p126
      %p128 = scmp.ne.s32.totalorder %s119, %s120
      %p129 = scmp.eq.s32.totalorder %s25, 0
      %p130 = por %p128, %p129
      %p131 = scmp.ne.s32.totalorder %s119, %s120
      %p132 = scmp.eq.s32.totalorder %s26, 1
      %p133 = por %p131, %p132
      %p135 = scmp.ne.s32.totalorder %s120, %s134
      %p136 = scmp.eq.s32.totalorder %s26, 0
      %p137 = por %p135, %p136
      %s139 = sadd.s32 %s138, 1
      %p142 = scmp.eq.s32.totalorder %s20, 1
      %p143 = scmp.ne.s32.totalorder %s138, %s140
      %p144 = scmp.eq.s32.totalorder %s20, 0
      %p145 = por %p143, %p144
      %p146 = scmp.ne.s32.totalorder %s138, %s140
      %p147 = scmp.eq.s32.totalorder %s25, 1
      %p148 = por %p146, %p147
      %p149 = scmp.ne.s32.totalorder %s140, %s141
      %p150 = scmp.eq.s32.totalorder %s25, 0
      %p151 = por %p149, %p150
      %p152 = scmp.ne.s32.totalorder %s140, %s141
      %p153 = scmp.eq.s32.totalorder %s26, 1
      %p154 = por %p152, %p153
      %p156 = scmp.ne.s32.totalorder %s141, %s155
      %p157 = scmp.eq.s32.totalorder %s26, 0
      %p158 = por %p156, %p157
      %s159 = ssub.s32 %s20, %s27
      %p160 = scmp.eq.s32.totalorder %s159, 0
      %s162 = sadd.s32 %s161, 1
      %s163 = scalar_select %p160, %s161, %s162
      %p166 = pneg %p160
      %p167 = scmp.eq.s32.totalorder %s20, 1
      %p168 = por %p166, %p167
      %p169 = scmp.ne.s32.totalorder %s161, %s164
      %p170 = scmp.eq.s32.totalorder %s20, 0
      %p171 = por %p169, %p170
      %p172 = scmp.ne.s32.totalorder %s161, %s164
      %p173 = scmp.eq.s32.totalorder %s25, 1
      %p174 = por %p172, %p173
      %p175 = scmp.ne.s32.totalorder %s164, %s165
      %p176 = scmp.eq.s32.totalorder %s25, 0
      %p177 = por %p175, %p176
      %p178 = scmp.ne.s32.totalorder %s164, %s165
      %p179 = scmp.eq.s32.totalorder %s26, 1
      %p180 = por %p178, %p179
      %p182 = scmp.ne.s32.totalorder %s165, %s181
      %p183 = scmp.eq.s32.totalorder %s26, 0
      %p184 = por %p182, %p183
      %p185 = scmp.le.s32.totalorder 1, %s20
      %p186 = scmp.lt.s32.totalorder %s20, 3
      %p187 = pnand %p185, %p186
      %p188 = pneg %p187
      // Predicated region
      $region9: #{tpu_custom_call.1} parent=5 // pred_check
        _
      $region10: #{tpu_custom_call.1} parent=5 // pred_check_branch
        %190 = sbr.rel (%p187) target = $region12
      $region11: #{tpu_custom_call.1} parent=5 // pred_region
        %s191 = ssub.s32 %s20, 1
        // Predicated region
        $region13: #{tpu_custom_call.1} parent=11 // pred_check
          %p192 = pneg %p67
        $region14: #{tpu_custom_call.1} parent=11 // pred_check_branch
          %194 = sbr.rel (%p192) target = $region16
        $region15: #{tpu_custom_call.1} parent=11 // pred_region
          %s196 = ssub.s32 2048, 2048
          %197 = vsyncadd [#allocation6], %s196
          %s198 = sshll.u32 [#allocation5], 4
          %s199 = int_to_ptr.vmem [resolvable:$true] %s198
          %204 = dma.hbm_to_vmem [thread:$0]  %s1, 2048, %s199, [#allocation6], 256, 256, 16
        $region16: #{tpu_custom_call.1} parent=11 // pred_fallthru
          _
        // Predicated region
        $region17: #{tpu_custom_call.1} parent=11 // pred_check
          %p205 = pneg %p88
        $region18: #{tpu_custom_call.1} parent=11 // pred_check_branch
          %207 = sbr.rel (%p205) target = $region20
        $region19: #{tpu_custom_call.1} parent=11 // pred_region
          _
        $region20: #{tpu_custom_call.1} parent=11 // pred_fallthru
          _
        // Predicated region
        $region21: #{tpu_custom_call.1} parent=11 // pred_check
          %p208 = pneg %p109
        $region22: #{tpu_custom_call.1} parent=11 // pred_check_branch
          %210 = sbr.rel (%p208) target = $region24
        $region23: #{tpu_custom_call.1} parent=11 // pred_region
          %s212 = ssub.s32 1024, 1024
          %213 = vsyncadd [#allocation6], %s212
          %s214 = sshll.u32 [#allocation7], 4
          %s215 = int_to_ptr.vmem [resolvable:$true] %s214
          %220 = dma.hbm_to_vmem [thread:$0]  %s3, 1024, %s215, [#allocation6], 128, 128, 8
        $region24: #{tpu_custom_call.1} parent=11 // pred_fallthru
          _
        // Predicated region
        $region25: #{tpu_custom_call.1} parent=11 // pred_check
          %p221 = pneg %p130
        $region26: #{tpu_custom_call.1} parent=11 // pred_check_branch
          %223 = sbr.rel (%p221) target = $region28
        $region27: #{tpu_custom_call.1} parent=11 // pred_region
          %s225 = ssub.s32 1024, 1024
          %226 = vsyncadd [#allocation9], %s225
          %s227 = sshll.u32 [#allocation8], 4
          %s228 = int_to_ptr.vmem [resolvable:$true] %s227
          %233 = dma.hbm_to_vmem [thread:$0]  %s4, 1024, %s228, [#allocation9], 128, 128, 8
        $region28: #{tpu_custom_call.1} parent=11 // pred_fallthru
          _
        // Predicated region
        $region29: #{tpu_custom_call.1} parent=11 // pred_check
          %p234 = pneg %p151
        $region30: #{tpu_custom_call.1} parent=11 // pred_check_branch
          %236 = sbr.rel (%p234) target = $region32
        $region31: #{tpu_custom_call.1} parent=11 // pred_region
          _
        $region32: #{tpu_custom_call.1} parent=11 // pred_fallthru
          _
      $region12: #{tpu_custom_call.1} parent=5 // pred_fallthru
        _
      %p237 = scmp.lt.s32.totalorder %s20, 2
      // Predicated region
      $region33: #{tpu_custom_call.1} parent=5 // pred_check
        %p238 = pneg %p237
      $region34: #{tpu_custom_call.1} parent=5 // pred_check_branch
        %240 = sbr.rel (%p238) target = $region36
      $region35: #{tpu_custom_call.1} parent=5 // pred_region
        // Predicated region
        $region37: #{tpu_custom_call.1} parent=35 // pred_check
          %p241 = pneg %p40
        $region38: #{tpu_custom_call.1} parent=35 // pred_check_branch
          %243 = sbr.rel (%p241) target = $region40
        $region39: #{tpu_custom_call.1} parent=35 // pred_region
          %s244 = sand.u32 %s30, 1
          %s245 = scalar_lea.sflag [#allocation3], %s244
          %s246 = sand.u32 %s30, 1
          %s247 = smul.addr %s246, 128
          %s248 = scalar_lea.vmem [#allocation2], %s247
          %s249 = smul.u32 4, %s20
          %s251 = ssub.s32 2048, 2048
          %252 = vsyncadd %s245, %s251
          %s253 = smul.addr %s249, 4
          %s254 = smul.addr %s253, 128
          %s255 = scalar_lea.hbm %s0, %s254
          %s256 = sshll.u32 %s248, 4
          %s257 = int_to_ptr.vmem [resolvable:$true] %s256
          %262 = dma.hbm_to_vmem [thread:$0]  %s255, 2048, %s257, %s245, 128, 128, 8
        $region40: #{tpu_custom_call.1} parent=35 // pred_fallthru
          _
      $region36: #{tpu_custom_call.1} parent=5 // pred_fallthru
        _
      %p263 = scmp.le.s32.totalorder 1, %s20
      %p264 = scmp.lt.s32.totalorder %s20, 3
      %p265 = pnand %p263, %p264
      %p266 = pneg %p265
      // Predicated region
      $region41: #{tpu_custom_call.1} parent=5 // pred_check
        _
      $region42: #{tpu_custom_call.1} parent=5 // pred_check_branch
        %268 = sbr.rel (%p265) target = $region44
      $region43: #{tpu_custom_call.1} parent=5 // pred_region
        %s269 = ssub.s32 %s20, 1
        %s270 = sand.u32 %s33, 1
        %s271 = scalar_lea.sflag [#allocation3], %s270
        %s272 = sand.u32 %s33, 1
        %s273 = smul.addr %s272, 128
        %s274 = scalar_lea.vmem [#allocation2], %s273
        // Predicated region
        $region45: #{tpu_custom_call.1} parent=43 // pred_check
          %p275 = pneg %p46
        $region46: #{tpu_custom_call.1} parent=43 // pred_check_branch
          %277 = sbr.rel (%p275) target = $region48
        $region47: #{tpu_custom_call.1} parent=43 // pred_region
          %278 = dma.done %s271, 2048
        $region48: #{tpu_custom_call.1} parent=43 // pred_fallthru
          _
        // Predicated region
        $region49: #{tpu_custom_call.1} parent=43 // pred_check
          %p279 = pneg %p67
        $region50: #{tpu_custom_call.1} parent=43 // pred_check_branch
          %281 = sbr.rel (%p279) target = $region52
        $region51: #{tpu_custom_call.1} parent=43 // pred_region
          %282 = dma.done [#allocation6], 2048
        $region52: #{tpu_custom_call.1} parent=43 // pred_fallthru
          _
        // Predicated region
        $region53: #{tpu_custom_call.1} parent=43 // pred_check
          %p283 = pneg %p109
        $region54: #{tpu_custom_call.1} parent=43 // pred_check_branch
          %285 = sbr.rel (%p283) target = $region56
        $region55: #{tpu_custom_call.1} parent=43 // pred_region
          %286 = dma.done [#allocation6], 1024
        $region56: #{tpu_custom_call.1} parent=43 // pred_fallthru
          _
        // Predicated region
        $region57: #{tpu_custom_call.1} parent=43 // pred_check
          %p287 = pneg %p130
        $region58: #{tpu_custom_call.1} parent=43 // pred_check_branch
          %289 = sbr.rel (%p287) target = $region60
        $region59: #{tpu_custom_call.1} parent=43 // pred_region
          %290 = dma.done [#allocation9], 1024
        $region60: #{tpu_custom_call.1} parent=43 // pred_fallthru
          _
        %s291 = sand.u32 %s33, 1
        %s292 = scalar_lea.sflag [#allocation3], %s291
        %s293 = sand.u32 %s33, 1
        %s294 = smul.addr %s293, 128
        %s295 = scalar_lea.vmem [#allocation2], %s294
        %p296 = pneg %p46
        %p297 = pneg %p43
        %p298 = pneg %p67
        %p299 = pneg %p64
        %p300 = pneg %p88
        %p301 = pneg %p85
        %p302 = pneg %p109
        %p303 = pneg %p106
        %p304 = pneg %p130
        %p305 = pneg %p127
        %p306 = pneg %p151
        %p307 = pneg %p148
        %p308 = pneg %p177
        %p309 = pneg %p174
        %s310 = sand.u32 %s164, 1
        %s311 = scalar_lea.sflag [#allocation4], %s310
        %s312 = sand.u32 %s164, 1
        %s313 = smul.addr %s312, 128
        %s314 = scalar_lea.vmem [#allocation10], %s313
        %s315 = smul.u32 4, %s25
        %s316 = smul.u32 4, %s25
        %v317 = vld [vmem:[%s274] sm:$0xff]
        %v318 = vld [vmem:[%s274 + $0x8] sm:$0xff]
        %v319 = vld [vmem:[%s274 + $0x10] sm:$0xff]
        %v320 = vld [vmem:[%s274 + $0x18] sm:$0xff]
        %v321 = vld [vmem:[%s274 + $0x20] sm:$0xff]
        %v322 = vld [vmem:[%s274 + $0x28] sm:$0xff]
        %v323 = vld [vmem:[%s274 + $0x30] sm:$0xff]
        %v324 = vld [vmem:[%s274 + $0x38] sm:$0xff]
        %v325 = vld [vmem:[%s274 + $0x40] sm:$0xff]
        %v326 = vld [vmem:[%s274 + $0x48] sm:$0xff]
        %v327 = vld [vmem:[%s274 + $0x50] sm:$0xff]
        %v328 = vld [vmem:[%s274 + $0x58] sm:$0xff]
        %v329 = vld [vmem:[%s274 + $0x60] sm:$0xff]
        %v330 = vld [vmem:[%s274 + $0x68] sm:$0xff]
        %v331 = vld [vmem:[%s274 + $0x70] sm:$0xff]
        %v332 = vld [vmem:[%s274 + $0x78] sm:$0xff]
        %v333 = vld [vmem:[#allocation5] sm:$0xff]
        %v334 = vld [vmem:[#allocation5 + $0x8] sm:$0xff]
        %v335 = vld [vmem:[#allocation5 + $0x10] sm:$0xff]
        %v336 = vld [vmem:[#allocation5 + $0x18] sm:$0xff]
        %v337 = vld [vmem:[#allocation5 + $0x20] sm:$0xff]
        %v338 = vld [vmem:[#allocation5 + $0x28] sm:$0xff]
        %v339 = vld [vmem:[#allocation5 + $0x30] sm:$0xff]
        %v340 = vld [vmem:[#allocation5 + $0x38] sm:$0xff]
        %v341 = vld [vmem:[#allocation5 + $0x40] sm:$0xff]
        %v342 = vld [vmem:[#allocation5 + $0x48] sm:$0xff]
        %v343 = vld [vmem:[#allocation5 + $0x50] sm:$0xff]
        %v344 = vld [vmem:[#allocation5 + $0x58] sm:$0xff]
        %v345 = vld [vmem:[#allocation5 + $0x60] sm:$0xff]
        %v346 = vld [vmem:[#allocation5 + $0x68] sm:$0xff]
        %v347 = vld [vmem:[#allocation5 + $0x70] sm:$0xff]
        %v348 = vld [vmem:[#allocation5 + $0x78] sm:$0xff]
        %v349 = vld [vmem:[%s2] sm:$0x3]
        %v351 = vlaneseq
        %v352 = vshrl.u32 %v351, 7
        %v353 = vsub.s32 0, %v352
        %v354 = vrot.slane %v349, %v353
        %v355 = vlaneseq
        %v356 = vshrl.u32 %v355, 7
        %v357 = vsub.s32 1, %v356
        %v358 = vrot.slane %v349, %v357
        %vm361 = vcmask 523264
        %v363 = vsel %vm361, %v317, 0
        %v366 = vsel %vm361, %v318, 0
        %v369 = vsel %vm361, %v319, 0
        %v372 = vsel %vm361, %v320, 0
        %v375 = vsel %vm361, %v321, 0
        %v378 = vsel %vm361, %v322, 0
        %v381 = vsel %vm361, %v323, 0
        %v384 = vsel %vm361, %v324, 0
        %v387 = vsel %vm361, %v325, 0
        %v390 = vsel %vm361, %v326, 0
        %v393 = vsel %vm361, %v327, 0
        %v396 = vsel %vm361, %v328, 0
        %v399 = vsel %vm361, %v329, 0
        %v402 = vsel %vm361, %v330, 0
        %v405 = vsel %vm361, %v331, 0
        %v408 = vsel %vm361, %v332, 0
        %410 = vmatprep.subr.mxu0 %v334
        %411 = vmatpush1.msra.mxu0 %v333
        %412 = vmatprep.subr.mxu0 %v336
        %413 = vmatpush1.msra.mxu0 %v335
        %414 = vmatprep.subr.mxu0 %v338
        %415 = vmatpush1.msra.mxu0 %v337
        %416 = vmatprep.subr.mxu0 %v340
        %417 = vmatpush1.msra.mxu0 %v339
        %418 = vmatprep.subr.mxu0 %v342
        %419 = vmatpush1.msra.mxu0 %v341
        %420 = vmatprep.subr.mxu0 %v344
        %421 = vmatpush1.msra.mxu0 %v343
        %422 = vmatprep.subr.mxu0 %v346
        %423 = vmatpush1.msra.mxu0 %v345
        %424 = vmatprep.subr.mxu0 %v348
        %425 = vmatpush1.msra.mxu0 %v347
        %426 = vmatprep.subr.mxu0 0.0
        %427 = vmatpush1.msra.mxu0 0.0
        %428 = vmatprep.subr.mxu0 0.0
        %429 = vmatpush1.msra.mxu0 0.0
        %430 = vmatprep.subr.mxu0 0.0
        %431 = vmatpush1.msra.mxu0 0.0
        %432 = vmatprep.subr.mxu0 0.0
        %433 = vmatpush1.msra.mxu0 0.0
        %434 = vmatprep.subr.mxu0 0.0
        %435 = vmatpush1.msra.mxu0 0.0
        %436 = vmatprep.subr.mxu0 0.0
        %437 = vmatpush1.msra.mxu0 0.0
        %438 = vmatprep.subr.mxu0 0.0
        %439 = vmatpush1.msra.mxu0 0.0
        %440 = vmatprep.subr.mxu0 0.0
        %441 = vmatpush1.msra.mxu0 0.0
        %442 = vmatprep.subr.mxu0 0.0
        %443 = vmatpush1.msra.mxu0 0.0
        %444 = vmatprep.subr.mxu0 0.0
        %445 = vmatpush1.msra.mxu0 0.0
        %446 = vmatprep.subr.mxu0 0.0
        %447 = vmatpush1.msra.mxu0 0.0
        %448 = vmatprep.subr.mxu0 0.0
        %449 = vmatpush1.msra.mxu0 0.0
        %450 = vmatprep.subr.mxu0 0.0
        %451 = vmatpush1.msra.mxu0 0.0
        %452 = vmatprep.subr.mxu0 0.0
        %453 = vmatpush1.msra.mxu0 0.0
        %454 = vmatprep.subr.mxu0 0.0
        %455 = vmatpush1.msra.mxu0 0.0
        %456 = vmatprep.subr.mxu0 0.0
        %457 = vmatpush1.msra.mxu0 0.0
        %458 = vmatprep.subr.mxu0 0.0
        %459 = vmatpush1.msra.mxu0 0.0
        %460 = vmatprep.subr.mxu0 0.0
        %461 = vmatpush1.msra.mxu0 0.0
        %462 = vmatprep.subr.mxu0 0.0
        %463 = vmatpush1.msra.mxu0 0.0
        %464 = vmatprep.subr.mxu0 0.0
        %465 = vmatpush1.msra.mxu0 0.0
        %466 = vmatprep.subr.mxu0 0.0
        %467 = vmatpush1.msra.mxu0 0.0
        %468 = vmatprep.subr.mxu0 0.0
        %469 = vmatpush1.msra.mxu0 0.0
        %470 = vmatprep.subr.mxu0 0.0
        %471 = vmatpush1.msra.mxu0 0.0
        %472 = vmatprep.subr.mxu0 0.0
        %473 = vmatpush1.msra.mxu0 0.0
        %474 = vmatprep.mubr.f32.mxu0 0.0
        %475 = vmatmul.mubr.f32.gmra.mrb[0].mxu0 %v363
        %v476 = vpop.f32.mrb[0].mxu0
        %v477 = vadd.f32 %v354, %v476
        %v478 = vpop.f32.mrb[0].mxu0
        %v479 = vadd.f32 %v358, %v478
        %480 = vmatprep.mubr.f32.mxu0 0.0
        %481 = vmatmul.mubr.f32.gmra.mrb[0].mxu0 %v366
        %v482 = vpop.f32.mrb[0].mxu0
        %v483 = vadd.f32 %v354, %v482
        %v484 = vpop.f32.mrb[0].mxu0
        %v485 = vadd.f32 %v358, %v484
        %486 = vmatprep.mubr.f32.mxu0 0.0
        %487 = vmatmul.mubr.f32.gmra.mrb[0].mxu0 %v369
        %v488 = vpop.f32.mrb[0].mxu0
        %v489 = vadd.f32 %v354, %v488
        %v490 = vpop.f32.mrb[0].mxu0
        %v491 = vadd.f32 %v358, %v490
        %492 = vmatprep.mubr.f32.mxu0 0.0
        %493 = vmatmul.mubr.f32.gmra.mrb[0].mxu0 %v372
        %v494 = vpop.f32.mrb[0].mxu0
        %v495 = vadd.f32 %v354, %v494
        %v496 = vpop.f32.mrb[0].mxu0
        %v497 = vadd.f32 %v358, %v496
        %498 = vmatprep.mubr.f32.mxu0 0.0
        %499 = vmatmul.mubr.f32.gmra.mrb[0].mxu0 %v375
        %v500 = vpop.f32.mrb[0].mxu0
        %v501 = vadd.f32 %v354, %v500
        %v502 = vpop.f32.mrb[0].mxu0
        %v503 = vadd.f32 %v358, %v502
        %504 = vmatprep.mubr.f32.mxu0 0.0
        %505 = vmatmul.mubr.f32.gmra.mrb[0].mxu0 %v378
        %v506 = vpop.f32.mrb[0].mxu0
        %v507 = vadd.f32 %v354, %v506
        %v508 = vpop.f32.mrb[0].mxu0
        %v509 = vadd.f32 %v358, %v508
        %510 = vmatprep.mubr.f32.mxu0 0.0
        %511 = vmatmul.mubr.f32.gmra.mrb[0].mxu0 %v381
        %v512 = vpop.f32.mrb[0].mxu0
        %v513 = vadd.f32 %v354, %v512
        %v514 = vpop.f32.mrb[0].mxu0
        %v515 = vadd.f32 %v358, %v514
        %516 = vmatprep.mubr.f32.mxu0 0.0
        %517 = vmatmul.mubr.f32.gmra.mrb[0].mxu0 %v384
        %v518 = vpop.f32.mrb[0].mxu0
        %v519 = vadd.f32 %v354, %v518
        %v520 = vpop.f32.mrb[0].mxu0
        %v521 = vadd.f32 %v358, %v520
        %522 = vmatprep.mubr.f32.mxu0 0.0
        %523 = vmatmul.mubr.f32.gmra.mrb[0].mxu0 %v387
        %v524 = vpop.f32.mrb[0].mxu0
        %v525 = vadd.f32 %v354, %v524
        %v526 = vpop.f32.mrb[0].mxu0
        %v527 = vadd.f32 %v358, %v526
        %528 = vmatprep.mubr.f32.mxu0 0.0
        %529 = vmatmul.mubr.f32.gmra.mrb[0].mxu0 %v390
        %v530 = vpop.f32.mrb[0].mxu0
        %v531 = vadd.f32 %v354, %v530
        %v532 = vpop.f32.mrb[0].mxu0
        %v533 = vadd.f32 %v358, %v532
        %534 = vmatprep.mubr.f32.mxu0 0.0
        %535 = vmatmul.mubr.f32.gmra.mrb[0].mxu0 %v393
        %v536 = vpop.f32.mrb[0].mxu0
        %v537 = vadd.f32 %v354, %v536
        %v538 = vpop.f32.mrb[0].mxu0
        %v539 = vadd.f32 %v358, %v538
        %540 = vmatprep.mubr.f32.mxu0 0.0
        %541 = vmatmul.mubr.f32.gmra.mrb[0].mxu0 %v396
        %v542 = vpop.f32.mrb[0].mxu0
        %v543 = vadd.f32 %v354, %v542
        %v544 = vpop.f32.mrb[0].mxu0
        %v545 = vadd.f32 %v358, %v544
        %546 = vmatprep.mubr.f32.mxu0 0.0
        %547 = vmatmul.mubr.f32.gmra.mrb[0].mxu0 %v399
        %v548 = vpop.f32.mrb[0].mxu0
        %v549 = vadd.f32 %v354, %v548
        %v550 = vpop.f32.mrb[0].mxu0
        %v551 = vadd.f32 %v358, %v550
        %552 = vmatprep.mubr.f32.mxu0 0.0
        %553 = vmatmul.mubr.f32.gmra.mrb[0].mxu0 %v402
        %v554 = vpop.f32.mrb[0].mxu0
        %v555 = vadd.f32 %v354, %v554
        %v556 = vpop.f32.mrb[0].mxu0
        %v557 = vadd.f32 %v358, %v556
        %558 = vmatprep.mubr.f32.mxu0 0.0
        %559 = vmatmul.mubr.f32.gmra.mrb[0].mxu0 %v405
        %v560 = vpop.f32.mrb[0].mxu0
        %v561 = vadd.f32 %v354, %v560
        %v562 = vpop.f32.mrb[0].mxu0
        %v563 = vadd.f32 %v358, %v562
        %564 = vmatprep.mubr.f32.mxu0 0.0
        %565 = vmatmul.mubr.f32.gmra.mrb[0].mxu0 %v408
        %v566 = vpop.f32.mrb[0].mxu0
        %v567 = vadd.f32 %v354, %v566
        %v568 = vpop.f32.mrb[0].mxu0
        %v569 = vadd.f32 %v358, %v568
        %570 = vdwg.mxu0
        %v571 = vmul.f32 %v477, 0.17677669
        %v572 = vmul.f32 %v483, 0.17677669
        %v573 = vmul.f32 %v489, 0.17677669
        %v574 = vmul.f32 %v495, 0.17677669
        %v575 = vmul.f32 %v501, 0.17677669
        %v576 = vmul.f32 %v507, 0.17677669
        %v577 = vmul.f32 %v513, 0.17677669
        %v578 = vmul.f32 %v519, 0.17677669
        %v579 = vmul.f32 %v525, 0.17677669
        %v580 = vmul.f32 %v531, 0.17677669
        %v581 = vmul.f32 %v537, 0.17677669
        %v582 = vmul.f32 %v543, 0.17677669
        %v583 = vmul.f32 %v549, 0.17677669
        %v584 = vmul.f32 %v555, 0.17677669
        %v585 = vmul.f32 %v561, 0.17677669
        %v586 = vmul.f32 %v567, 0.17677669
        %v587 = vld [vmem:[#allocation7] sm:$0xff]
        %v588 = vld [vmem:[#allocation7 + $0x8] sm:$0xff]
        %v589 = vld [vmem:[#allocation7 + $0x10] sm:$0xff]
        %v590 = vld [vmem:[#allocation7 + $0x18] sm:$0xff]
        %595 = vrot.lane.b32.xlu0 %v477, 64
        %v596 = vpop.permute.xlu0 %595
        %597 = vrot.lane.b32.xlu0 %v483, 64
        %v598 = vpop.permute.xlu0 %597
        %599 = vrot.lane.b32.xlu0 %v489, 64
        %v600 = vpop.permute.xlu0 %599
        %601 = vrot.lane.b32.xlu0 %v495, 64
        %v602 = vpop.permute.xlu0 %601
        %vm603 = vcmask 261120
        %v605 = vsel %vm603, %v571, 0
        %v608 = vsel %vm603, %v572, 0
        %v611 = vsel %vm603, %v573, 0
        %v614 = vsel %vm603, %v574, 0
        %v616 = vsel %vm603, %v596, 0
        %v618 = vsel %vm603, %v598, 0
        %v620 = vsel %vm603, %v600, 0
        %v622 = vsel %vm603, %v602, 0
        %624 = vmatprep.subr.mxu0 0.0
        %625 = vmatpush1.xpose.msra.mxu0 %v616
        %626 = vmatprep.subr.mxu0 0.0
        %627 = vmatpush1.xpose.msra.mxu0 %v618
        %628 = vmatprep.subr.mxu0 0.0
        %629 = vmatpush1.xpose.msra.mxu0 %v620
        %630 = vmatprep.subr.mxu0 0.0
        %631 = vmatpush1.xpose.msra.mxu0 %v622
        %632 = vmatprep.subr.mxu0 0.0
        %633 = vmatpush1.xpose.msra.mxu0 0.0
        %634 = vmatprep.subr.mxu0 0.0
        %635 = vmatpush1.xpose.msra.mxu0 0.0
        %636 = vmatprep.subr.mxu0 0.0
        %637 = vmatpush1.xpose.msra.mxu0 0.0
        %638 = vmatprep.subr.mxu0 0.0
        %639 = vmatpush1.xpose.msra.mxu0 0.0
        %640 = vmatprep.subr.mxu0 0.0
        %641 = vmatpush1.xpose.msra.mxu0 0.0
        %642 = vmatprep.subr.mxu0 0.0
        %643 = vmatpush1.xpose.msra.mxu0 0.0
        %644 = vmatprep.subr.mxu0 0.0
        %645 = vmatpush1.xpose.msra.mxu0 0.0
        %646 = vmatprep.subr.mxu0 0.0
        %647 = vmatpush1.xpose.msra.mxu0 0.0
        %648 = vmatprep.subr.mxu0 0.0
        %649 = vmatpush1.xpose.msra.mxu0 0.0
        %650 = vmatprep.subr.mxu0 0.0
        %651 = vmatpush1.xpose.msra.mxu0 0.0
        %652 = vmatprep.subr.mxu0 0.0
        %653 = vmatpush1.xpose.msra.mxu0 0.0
        %654 = vmatprep.subr.mxu0 0.0
        %655 = vmatpush1.xpose.msra.mxu0 0.0
        %656 = vmatprep.subr.mxu0 0.0
        %657 = vmatpush1.xpose.msra.mxu0 0.0
        %658 = vmatprep.subr.mxu0 0.0
        %659 = vmatpush1.xpose.msra.mxu0 0.0
        %660 = vmatprep.subr.mxu0 0.0
        %661 = vmatpush1.xpose.msra.mxu0 0.0
        %662 = vmatprep.subr.mxu0 0.0
        %663 = vmatpush1.xpose.msra.mxu0 0.0
        %664 = vmatprep.subr.mxu0 0.0
        %665 = vmatpush1.xpose.msra.mxu0 0.0
        %666 = vmatprep.subr.mxu0 0.0
        %667 = vmatpush1.xpose.msra.mxu0 0.0
        %668 = vmatprep.subr.mxu0 0.0
        %669 = vmatpush1.xpose.msra.mxu0 0.0
        %670 = vmatprep.subr.mxu0 0.0
        %671 = vmatpush1.xpose.msra.mxu0 0.0
        %672 = vmatprep.subr.mxu0 0.0
        %673 = vmatpush1.xpose.msra.mxu0 0.0
        %674 = vmatprep.subr.mxu0 0.0
        %675 = vmatpush1.xpose.msra.mxu0 0.0
        %676 = vmatprep.subr.mxu0 0.0
        %677 = vmatpush1.xpose.msra.mxu0 0.0
        %678 = vmatprep.subr.mxu0 0.0
        %679 = vmatpush1.xpose.msra.mxu0 0.0
        %680 = vmatprep.subr.mxu0 0.0
        %681 = vmatpush1.xpose.msra.mxu0 0.0
        %682 = vmatprep.subr.mxu0 0.0
        %683 = vmatpush1.xpose.msra.mxu0 0.0
        %684 = vmatprep.subr.mxu0 0.0
        %685 = vmatpush1.xpose.msra.mxu0 0.0
        %686 = vmatprep.subr.mxu0 0.0
        %687 = vmatpush1.xpose.msra.mxu0 0.0
        %688 = vmatprep.mubr.f32.mxu0 0.0
        %689 = vmatmul.mubr.f32.gmra.mrb[0].mxu0 %v605
        %v690 = vpop.f32.mrb[0].mxu0
        %v691 = vadd.f32 %v587, %v690
        %v692 = vpop.f32.mrb[0].mxu0
        %693 = vmatprep.mubr.f32.mxu0 0.0
        %694 = vmatmul.mubr.f32.gmra.mrb[0].mxu0 %v608
        %v695 = vpop.f32.mrb[0].mxu0
        %v696 = vadd.f32 %v588, %v695
        %v697 = vpop.f32.mrb[0].mxu0
        %698 = vmatprep.mubr.f32.mxu0 0.0
        %699 = vmatmul.mubr.f32.gmra.mrb[0].mxu0 %v611
        %v700 = vpop.f32.mrb[0].mxu0
        %v701 = vadd.f32 %v589, %v700
        %v702 = vpop.f32.mrb[0].mxu0
        %703 = vmatprep.mubr.f32.mxu0 0.0
        %704 = vmatmul.mubr.f32.gmra.mrb[0].mxu0 %v614
        %v705 = vpop.f32.mrb[0].mxu0
        %v706 = vadd.f32 %v590, %v705
        %v707 = vpop.f32.mrb[0].mxu0
        %708 = vdwg.mxu0
        %713 = vrot.lane.b32.xlu0 %v501, 64
        %v714 = vpop.permute.xlu0 %713
        %715 = vrot.lane.b32.xlu0 %v507, 64
        %v716 = vpop.permute.xlu0 %715
        %717 = vrot.lane.b32.xlu0 %v513, 64
        %v718 = vpop.permute.xlu0 %717
        %719 = vrot.lane.b32.xlu0 %v519, 64
        %v720 = vpop.permute.xlu0 %719
        %v722 = vsel %vm603, %v575, 0
        %v725 = vsel %vm603, %v576, 0
        %v728 = vsel %vm603, %v577, 0
        %v731 = vsel %vm603, %v578, 0
        %v733 = vsel %vm603, %v714, 0
        %v735 = vsel %vm603, %v716, 0
        %v737 = vsel %vm603, %v718, 0
        %v739 = vsel %vm603, %v720, 0
        %741 = vmatprep.subr.mxu0 0.0
        %742 = vmatpush1.xpose.msra.mxu0 %v733
        %743 = vmatprep.subr.mxu0 0.0
        %744 = vmatpush1.xpose.msra.mxu0 %v735
        %745 = vmatprep.subr.mxu0 0.0
        %746 = vmatpush1.xpose.msra.mxu0 %v737
        %747 = vmatprep.subr.mxu0 0.0
        %748 = vmatpush1.xpose.msra.mxu0 %v739
        %749 = vmatprep.subr.mxu0 0.0
        %750 = vmatpush1.xpose.msra.mxu0 0.0
        %751 = vmatprep.subr.mxu0 0.0
        %752 = vmatpush1.xpose.msra.mxu0 0.0
        %753 = vmatprep.subr.mxu0 0.0
        %754 = vmatpush1.xpose.msra.mxu0 0.0
        %755 = vmatprep.subr.mxu0 0.0
        %756 = vmatpush1.xpose.msra.mxu0 0.0
        %757 = vmatprep.subr.mxu0 0.0
        %758 = vmatpush1.xpose.msra.mxu0 0.0
        %759 = vmatprep.subr.mxu0 0.0
        %760 = vmatpush1.xpose.msra.mxu0 0.0
        %761 = vmatprep.subr.mxu0 0.0
        %762 = vmatpush1.xpose.msra.mxu0 0.0
        %763 = vmatprep.subr.mxu0 0.0
        %764 = vmatpush1.xpose.msra.mxu0 0.0
        %765 = vmatprep.subr.mxu0 0.0
        %766 = vmatpush1.xpose.msra.mxu0 0.0
        %767 = vmatprep.subr.mxu0 0.0
        %768 = vmatpush1.xpose.msra.mxu0 0.0
        %769 = vmatprep.subr.mxu0 0.0
        %770 = vmatpush1.xpose.msra.mxu0 0.0
        %771 = vmatprep.subr.mxu0 0.0
        %772 = vmatpush1.xpose.msra.mxu0 0.0
        %773 = vmatprep.subr.mxu0 0.0
        %774 = vmatpush1.xpose.msra.mxu0 0.0
        %775 = vmatprep.subr.mxu0 0.0
        %776 = vmatpush1.xpose.msra.mxu0 0.0
        %777 = vmatprep.subr.mxu0 0.0
        %778 = vmatpush1.xpose.msra.mxu0 0.0
        %779 = vmatprep.subr.mxu0 0.0
        %780 = vmatpush1.xpose.msra.mxu0 0.0
        %781 = vmatprep.subr.mxu0 0.0
        %782 = vmatpush1.xpose.msra.mxu0 0.0
        %783 = vmatprep.subr.mxu0 0.0
        %784 = vmatpush1.xpose.msra.mxu0 0.0
        %785 = vmatprep.subr.mxu0 0.0
        %786 = vmatpush1.xpose.msra.mxu0 0.0
        %787 = vmatprep.subr.mxu0 0.0
        %788 = vmatpush1.xpose.msra.mxu0 0.0
        %789 = vmatprep.subr.mxu0 0.0
        %790 = vmatpush1.xpose.msra.mxu0 0.0
        %791 = vmatprep.subr.mxu0 0.0
        %792 = vmatpush1.xpose.msra.mxu0 0.0
        %793 = vmatprep.subr.mxu0 0.0
        %794 = vmatpush1.xpose.msra.mxu0 0.0
        %795 = vmatprep.subr.mxu0 0.0
        %796 = vmatpush1.xpose.msra.mxu0 0.0
        %797 = vmatprep.subr.mxu0 0.0
        %798 = vmatpush1.xpose.msra.mxu0 0.0
        %799 = vmatprep.subr.mxu0 0.0
        %800 = vmatpush1.xpose.msra.mxu0 0.0
        %801 = vmatprep.subr.mxu0 0.0
        %802 = vmatpush1.xpose.msra.mxu0 0.0
        %803 = vmatprep.subr.mxu0 0.0
        %804 = vmatpush1.xpose.msra.mxu0 0.0
        %805 = vmatprep.mubr.f32.mxu0 0.0
        %806 = vmatmul.mubr.f32.gmra.mrb[0].mxu0 %v722
        %v807 = vpop.f32.mrb[0].mxu0
        %v808 = vadd.f32 %v587, %v807
        %v809 = vpop.f32.mrb[0].mxu0
        %810 = vmatprep.mubr.f32.mxu0 0.0
        %811 = vmatmul.mubr.f32.gmra.mrb[0].mxu0 %v725
        %v812 = vpop.f32.mrb[0].mxu0
        %v813 = vadd.f32 %v588, %v812
        %v814 = vpop.f32.mrb[0].mxu0
        %815 = vmatprep.mubr.f32.mxu0 0.0
        %816 = vmatmul.mubr.f32.gmra.mrb[0].mxu0 %v728
        %v817 = vpop.f32.mrb[0].mxu0
        %v818 = vadd.f32 %v589, %v817
        %v819 = vpop.f32.mrb[0].mxu0
        %820 = vmatprep.mubr.f32.mxu0 0.0
        %821 = vmatmul.mubr.f32.gmra.mrb[0].mxu0 %v731
        %v822 = vpop.f32.mrb[0].mxu0
        %v823 = vadd.f32 %v590, %v822
        %v824 = vpop.f32.mrb[0].mxu0
        %825 = vdwg.mxu0
        %830 = vrot.lane.b32.xlu0 %v525, 64
        %v831 = vpop.permute.xlu0 %830
        %832 = vrot.lane.b32.xlu0 %v531, 64
        %v833 = vpop.permute.xlu0 %832
        %834 = vrot.lane.b32.xlu0 %v537, 64
        %v835 = vpop.permute.xlu0 %834
        %836 = vrot.lane.b32.xlu0 %v543, 64
        %v837 = vpop.permute.xlu0 %836
        %v839 = vsel %vm603, %v579, 0
        %v842 = vsel %vm603, %v580, 0
        %v845 = vsel %vm603, %v581, 0
        %v848 = vsel %vm603, %v582, 0
        %v850 = vsel %vm603, %v831, 0
        %v852 = vsel %vm603, %v833, 0
        %v854 = vsel %vm603, %v835, 0
        %v856 = vsel %vm603, %v837, 0
        %858 = vmatprep.subr.mxu0 0.0
        %859 = vmatpush1.xpose.msra.mxu0 %v850
        %860 = vmatprep.subr.mxu0 0.0
        %861 = vmatpush1.xpose.msra.mxu0 %v852
        %862 = vmatprep.subr.mxu0 0.0
        %863 = vmatpush1.xpose.msra.mxu0 %v854
        %864 = vmatprep.subr.mxu0 0.0
        %865 = vmatpush1.xpose.msra.mxu0 %v856
        %866 = vmatprep.subr.mxu0 0.0
        %867 = vmatpush1.xpose.msra.mxu0 0.0
        %868 = vmatprep.subr.mxu0 0.0
        %869 = vmatpush1.xpose.msra.mxu0 0.0
        %870 = vmatprep.subr.mxu0 0.0
        %871 = vmatpush1.xpose.msra.mxu0 0.0
        %872 = vmatprep.subr.mxu0 0.0
        %873 = vmatpush1.xpose.msra.mxu0 0.0
        %874 = vmatprep.subr.mxu0 0.0
        %875 = vmatpush1.xpose.msra.mxu0 0.0
        %876 = vmatprep.subr.mxu0 0.0
        %877 = vmatpush1.xpose.msra.mxu0 0.0
        %878 = vmatprep.subr.mxu0 0.0
        %879 = vmatpush1.xpose.msra.mxu0 0.0
        %880 = vmatprep.subr.mxu0 0.0
        %881 = vmatpush1.xpose.msra.mxu0 0.0
        %882 = vmatprep.subr.mxu0 0.0
        %883 = vmatpush1.xpose.msra.mxu0 0.0
        %884 = vmatprep.subr.mxu0 0.0
        %885 = vmatpush1.xpose.msra.mxu0 0.0
        %886 = vmatprep.subr.mxu0 0.0
        %887 = vmatpush1.xpose.msra.mxu0 0.0
        %888 = vmatprep.subr.mxu0 0.0
        %889 = vmatpush1.xpose.msra.mxu0 0.0
        %890 = vmatprep.subr.mxu0 0.0
        %891 = vmatpush1.xpose.msra.mxu0 0.0
        %892 = vmatprep.subr.mxu0 0.0
        %893 = vmatpush1.xpose.msra.mxu0 0.0
        %894 = vmatprep.subr.mxu0 0.0
        %895 = vmatpush1.xpose.msra.mxu0 0.0
        %896 = vmatprep.subr.mxu0 0.0
        %897 = vmatpush1.xpose.msra.mxu0 0.0
        %898 = vmatprep.subr.mxu0 0.0
        %899 = vmatpush1.xpose.msra.mxu0 0.0
        %900 = vmatprep.subr.mxu0 0.0
        %901 = vmatpush1.xpose.msra.mxu0 0.0
        %902 = vmatprep.subr.mxu0 0.0
        %903 = vmatpush1.xpose.msra.mxu0 0.0
        %904 = vmatprep.subr.mxu0 0.0
        %905 = vmatpush1.xpose.msra.mxu0 0.0
        %906 = vmatprep.subr.mxu0 0.0
        %907 = vmatpush1.xpose.msra.mxu0 0.0
        %908 = vmatprep.subr.mxu0 0.0
        %909 = vmatpush1.xpose.msra.mxu0 0.0
        %910 = vmatprep.subr.mxu0 0.0
        %911 = vmatpush1.xpose.msra.mxu0 0.0
        %912 = vmatprep.subr.mxu0 0.0
        %913 = vmatpush1.xpose.msra.mxu0 0.0
        %914 = vmatprep.subr.mxu0 0.0
        %915 = vmatpush1.xpose.msra.mxu0 0.0
        %916 = vmatprep.subr.mxu0 0.0
        %917 = vmatpush1.xpose.msra.mxu0 0.0
        %918 = vmatprep.subr.mxu0 0.0
        %919 = vmatpush1.xpose.msra.mxu0 0.0
        %920 = vmatprep.subr.mxu0 0.0
        %921 = vmatpush1.xpose.msra.mxu0 0.0
        %922 = vmatprep.mubr.f32.mxu0 0.0
        %923 = vmatmul.mubr.f32.gmra.mrb[0].mxu0 %v839
        %v924 = vpop.f32.mrb[0].mxu0
        %v925 = vadd.f32 %v587, %v924
        %v926 = vpop.f32.mrb[0].mxu0
        %927 = vmatprep.mubr.f32.mxu0 0.0
        %928 = vmatmul.mubr.f32.gmra.mrb[0].mxu0 %v842
        %v929 = vpop.f32.mrb[0].mxu0
        %v930 = vadd.f32 %v588, %v929
        %v931 = vpop.f32.mrb[0].mxu0
        %932 = vmatprep.mubr.f32.mxu0 0.0
        %933 = vmatmul.mubr.f32.gmra.mrb[0].mxu0 %v845
        %v934 = vpop.f32.mrb[0].mxu0
        %v935 = vadd.f32 %v589, %v934
        %v936 = vpop.f32.mrb[0].mxu0
        %937 = vmatprep.mubr.f32.mxu0 0.0
        %938 = vmatmul.mubr.f32.gmra.mrb[0].mxu0 %v848
        %v939 = vpop.f32.mrb[0].mxu0
        %v940 = vadd.f32 %v590, %v939
        %v941 = vpop.f32.mrb[0].mxu0
        %942 = vdwg.mxu0
        %947 = vrot.lane.b32.xlu0 %v549, 64
        %v948 = vpop.permute.xlu0 %947
        %949 = vrot.lane.b32.xlu0 %v555, 64
        %v950 = vpop.permute.xlu0 %949
        %951 = vrot.lane.b32.xlu0 %v561, 64
        %v952 = vpop.permute.xlu0 %951
        %953 = vrot.lane.b32.xlu0 %v567, 64
        %v954 = vpop.permute.xlu0 %953
        %v956 = vsel %vm603, %v583, 0
        %v959 = vsel %vm603, %v584, 0
        %v962 = vsel %vm603, %v585, 0
        %v965 = vsel %vm603, %v586, 0
        %v967 = vsel %vm603, %v948, 0
        %v969 = vsel %vm603, %v950, 0
        %v971 = vsel %vm603, %v952, 0
        %v973 = vsel %vm603, %v954, 0
        %975 = vmatprep.subr.mxu0 0.0
        %976 = vmatpush1.xpose.msra.mxu0 %v967
        %977 = vmatprep.subr.mxu0 0.0
        %978 = vmatpush1.xpose.msra.mxu0 %v969
        %979 = vmatprep.subr.mxu0 0.0
        %980 = vmatpush1.xpose.msra.mxu0 %v971
        %981 = vmatprep.subr.mxu0 0.0
        %982 = vmatpush1.xpose.msra.mxu0 %v973
        %983 = vmatprep.subr.mxu0 0.0
        %984 = vmatpush1.xpose.msra.mxu0 0.0
        %985 = vmatprep.subr.mxu0 0.0
        %986 = vmatpush1.xpose.msra.mxu0 0.0
        %987 = vmatprep.subr.mxu0 0.0
        %988 = vmatpush1.xpose.msra.mxu0 0.0
        %989 = vmatprep.subr.mxu0 0.0
        %990 = vmatpush1.xpose.msra.mxu0 0.0
        %991 = vmatprep.subr.mxu0 0.0
        %992 = vmatpush1.xpose.msra.mxu0 0.0
        %993 = vmatprep.subr.mxu0 0.0
        %994 = vmatpush1.xpose.msra.mxu0 0.0
        %995 = vmatprep.subr.mxu0 0.0
        %996 = vmatpush1.xpose.msra.mxu0 0.0
        %997 = vmatprep.subr.mxu0 0.0
        %998 = vmatpush1.xpose.msra.mxu0 0.0
        %999 = vmatprep.subr.mxu0 0.0
        %1000 = vmatpush1.xpose.msra.mxu0 0.0
        %1001 = vmatprep.subr.mxu0 0.0
        %1002 = vmatpush1.xpose.msra.mxu0 0.0
        %1003 = vmatprep.subr.mxu0 0.0
        %1004 = vmatpush1.xpose.msra.mxu0 0.0
        %1005 = vmatprep.subr.mxu0 0.0
        %1006 = vmatpush1.xpose.msra.mxu0 0.0
        %1007 = vmatprep.subr.mxu0 0.0
        %1008 = vmatpush1.xpose.msra.mxu0 0.0
        %1009 = vmatprep.subr.mxu0 0.0
        %1010 = vmatpush1.xpose.msra.mxu0 0.0
        %1011 = vmatprep.subr.mxu0 0.0
        %1012 = vmatpush1.xpose.msra.mxu0 0.0
        %1013 = vmatprep.subr.mxu0 0.0
        %1014 = vmatpush1.xpose.msra.mxu0 0.0
        %1015 = vmatprep.subr.mxu0 0.0
        %1016 = vmatpush1.xpose.msra.mxu0 0.0
        %1017 = vmatprep.subr.mxu0 0.0
        %1018 = vmatpush1.xpose.msra.mxu0 0.0
        %1019 = vmatprep.subr.mxu0 0.0
        %1020 = vmatpush1.xpose.msra.mxu0 0.0
        %1021 = vmatprep.subr.mxu0 0.0
        %1022 = vmatpush1.xpose.msra.mxu0 0.0
        %1023 = vmatprep.subr.mxu0 0.0
        %1024 = vmatpush1.xpose.msra.mxu0 0.0
        %1025 = vmatprep.subr.mxu0 0.0
        %1026 = vmatpush1.xpose.msra.mxu0 0.0
        %1027 = vmatprep.subr.mxu0 0.0
        %1028 = vmatpush1.xpose.msra.mxu0 0.0
        %1029 = vmatprep.subr.mxu0 0.0
        %1030 = vmatpush1.xpose.msra.mxu0 0.0
        %1031 = vmatprep.subr.mxu0 0.0
        %1032 = vmatpush1.xpose.msra.mxu0 0.0
        %1033 = vmatprep.subr.mxu0 0.0
        %1034 = vmatpush1.xpose.msra.mxu0 0.0
        %1035 = vmatprep.subr.mxu0 0.0
        %1036 = vmatpush1.xpose.msra.mxu0 0.0
        %1037 = vmatprep.subr.mxu0 0.0
        %1038 = vmatpush1.xpose.msra.mxu0 0.0
        %1039 = vmatprep.mubr.f32.mxu0 0.0
        %1040 = vmatmul.mubr.f32.gmra.mrb[0].mxu0 %v956
        %v1041 = vpop.f32.mrb[0].mxu0
        %v1042 = vadd.f32 %v587, %v1041
        %v1043 = vpop.f32.mrb[0].mxu0
        %1044 = vmatprep.mubr.f32.mxu0 0.0
        %1045 = vmatmul.mubr.f32.gmra.mrb[0].mxu0 %v959
        %v1046 = vpop.f32.mrb[0].mxu0
        %v1047 = vadd.f32 %v588, %v1046
        %v1048 = vpop.f32.mrb[0].mxu0
        %1049 = vmatprep.mubr.f32.mxu0 0.0
        %1050 = vmatmul.mubr.f32.gmra.mrb[0].mxu0 %v962
        %v1051 = vpop.f32.mrb[0].mxu0
        %v1052 = vadd.f32 %v589, %v1051
        %v1053 = vpop.f32.mrb[0].mxu0
        %1054 = vmatprep.mubr.f32.mxu0 0.0
        %1055 = vmatmul.mubr.f32.gmra.mrb[0].mxu0 %v965
        %v1056 = vpop.f32.mrb[0].mxu0
        %v1057 = vadd.f32 %v590, %v1056
        %v1058 = vpop.f32.mrb[0].mxu0
        %1059 = vdwg.mxu0
        %v1060 = vsel %vm603, %v691, -inf
        %1061 = vmax.xlane.f32.xlu0 %v1060
        %v1062 = vpop.xlane.xlu0 %1061
        %v1063 = vsel %vm603, %v696, -inf
        %1064 = vmax.xlane.f32.xlu0 %v1063
        %v1065 = vpop.xlane.xlu0 %1064
        %v1066 = vsel %vm603, %v701, -inf
        %1067 = vmax.xlane.f32.xlu0 %v1066
        %v1068 = vpop.xlane.xlu0 %1067
        %v1069 = vsel %vm603, %v706, -inf
        %1070 = vmax.xlane.f32.xlu0 %v1069
        %v1071 = vpop.xlane.xlu0 %1070
        %v1072 = vsel %vm603, %v808, -inf
        %1073 = vmax.xlane.f32.xlu0 %v1072
        %v1074 = vpop.xlane.xlu0 %1073
        %v1075 = vsel %vm603, %v813, -inf
        %1076 = vmax.xlane.f32.xlu0 %v1075
        %v1077 = vpop.xlane.xlu0 %1076
        %v1078 = vsel %vm603, %v818, -inf
        %1079 = vmax.xlane.f32.xlu0 %v1078
        %v1080 = vpop.xlane.xlu0 %1079
        %v1081 = vsel %vm603, %v823, -inf
        %1082 = vmax.xlane.f32.xlu0 %v1081
        %v1083 = vpop.xlane.xlu0 %1082
        %v1084 = vsel %vm603, %v925, -inf
        %1085 = vmax.xlane.f32.xlu0 %v1084
        %v1086 = vpop.xlane.xlu0 %1085
        %v1087 = vsel %vm603, %v930, -inf
        %1088 = vmax.xlane.f32.xlu0 %v1087
        %v1089 = vpop.xlane.xlu0 %1088
        %v1090 = vsel %vm603, %v935, -inf
        %1091 = vmax.xlane.f32.xlu0 %v1090
        %v1092 = vpop.xlane.xlu0 %1091
        %v1093 = vsel %vm603, %v940, -inf
        %1094 = vmax.xlane.f32.xlu0 %v1093
        %v1095 = vpop.xlane.xlu0 %1094
        %v1096 = vsel %vm603, %v1042, -inf
        %1097 = vmax.xlane.f32.xlu0 %v1096
        %v1098 = vpop.xlane.xlu0 %1097
        %v1099 = vsel %vm603, %v1047, -inf
        %1100 = vmax.xlane.f32.xlu0 %v1099
        %v1101 = vpop.xlane.xlu0 %1100
        %v1102 = vsel %vm603, %v1052, -inf
        %1103 = vmax.xlane.f32.xlu0 %v1102
        %v1104 = vpop.xlane.xlu0 %1103
        %v1105 = vsel %vm603, %v1057, -inf
        %1106 = vmax.xlane.f32.xlu0 %v1105
        %v1107 = vpop.xlane.xlu0 %1106
        %v1108 = vsub.f32 %v691, %v1062
        %v1109 = vsub.f32 %v696, %v1065
        %v1110 = vsub.f32 %v701, %v1068
        %v1111 = vsub.f32 %v706, %v1071
        %v1112 = vsub.f32 %v808, %v1074
        %v1113 = vsub.f32 %v813, %v1077
        %v1114 = vsub.f32 %v818, %v1080
        %v1115 = vsub.f32 %v823, %v1083
        %v1116 = vsub.f32 %v925, %v1086
        %v1117 = vsub.f32 %v930, %v1089
        %v1118 = vsub.f32 %v935, %v1092
        %v1119 = vsub.f32 %v940, %v1095
        %v1120 = vsub.f32 %v1042, %v1098
        %v1121 = vsub.f32 %v1047, %v1101
        %v1122 = vsub.f32 %v1052, %v1104
        %v1123 = vsub.f32 %v1057, %v1107
        %v1124 = vmul.f32 %v1108, 1.442695
        %v1125 = vpow.pop %v1124
        %v1126 = vmul.f32 %v1109, 1.442695
        %v1127 = vpow.pop %v1126
        %v1128 = vmul.f32 %v1110, 1.442695
        %v1129 = vpow.pop %v1128
        %v1130 = vmul.f32 %v1111, 1.442695
        %v1131 = vpow.pop %v1130
        %v1132 = vmul.f32 %v1112, 1.442695
        %v1133 = vpow.pop %v1132
        %v1134 = vmul.f32 %v1113, 1.442695
        %v1135 = vpow.pop %v1134
        %v1136 = vmul.f32 %v1114, 1.442695
        %v1137 = vpow.pop %v1136
        %v1138 = vmul.f32 %v1115, 1.442695
        %v1139 = vpow.pop %v1138
        %v1140 = vmul.f32 %v1116, 1.442695
        %v1141 = vpow.pop %v1140
        %v1142 = vmul.f32 %v1117, 1.442695
        %v1143 = vpow.pop %v1142
        %v1144 = vmul.f32 %v1118, 1.442695
        %v1145 = vpow.pop %v1144
        %v1146 = vmul.f32 %v1119, 1.442695
        %v1147 = vpow.pop %v1146
        %v1148 = vmul.f32 %v1120, 1.442695
        %v1149 = vpow.pop %v1148
        %v1150 = vmul.f32 %v1121, 1.442695
        %v1151 = vpow.pop %v1150
        %v1152 = vmul.f32 %v1122, 1.442695
        %v1153 = vpow.pop %v1152
        %v1154 = vmul.f32 %v1123, 1.442695
        %v1155 = vpow.pop %v1154
        %v1156 = vsel %vm603, %v1125, 0.0
        %1157 = vadd.xlane.f32.xlu0 %v1156
        %v1158 = vpop.xlane.xlu0 %1157
        %v1159 = vsel %vm603, %v1127, 0.0
        %1160 = vadd.xlane.f32.xlu0 %v1159
        %v1161 = vpop.xlane.xlu0 %1160
        %v1162 = vsel %vm603, %v1129, 0.0
        %1163 = vadd.xlane.f32.xlu0 %v1162
        %v1164 = vpop.xlane.xlu0 %1163
        %v1165 = vsel %vm603, %v1131, 0.0
        %1166 = vadd.xlane.f32.xlu0 %v1165
        %v1167 = vpop.xlane.xlu0 %1166
        %v1168 = vsel %vm603, %v1133, 0.0
        %1169 = vadd.xlane.f32.xlu0 %v1168
        %v1170 = vpop.xlane.xlu0 %1169
        %v1171 = vsel %vm603, %v1135, 0.0
        %1172 = vadd.xlane.f32.xlu0 %v1171
        %v1173 = vpop.xlane.xlu0 %1172
        %v1174 = vsel %vm603, %v1137, 0.0
        %1175 = vadd.xlane.f32.xlu0 %v1174
        %v1176 = vpop.xlane.xlu0 %1175
        %v1177 = vsel %vm603, %v1139, 0.0
        %1178 = vadd.xlane.f32.xlu0 %v1177
        %v1179 = vpop.xlane.xlu0 %1178
        %v1180 = vsel %vm603, %v1141, 0.0
        %1181 = vadd.xlane.f32.xlu0 %v1180
        %v1182 = vpop.xlane.xlu0 %1181
        %v1183 = vsel %vm603, %v1143, 0.0
        %1184 = vadd.xlane.f32.xlu0 %v1183
        %v1185 = vpop.xlane.xlu0 %1184
        %v1186 = vsel %vm603, %v1145, 0.0
        %1187 = vadd.xlane.f32.xlu0 %v1186
        %v1188 = vpop.xlane.xlu0 %1187
        %v1189 = vsel %vm603, %v1147, 0.0
        %1190 = vadd.xlane.f32.xlu0 %v1189
        %v1191 = vpop.xlane.xlu0 %1190
        %v1192 = vsel %vm603, %v1149, 0.0
        %1193 = vadd.xlane.f32.xlu0 %v1192
        %v1194 = vpop.xlane.xlu0 %1193
        %v1195 = vsel %vm603, %v1151, 0.0
        %1196 = vadd.xlane.f32.xlu0 %v1195
        %v1197 = vpop.xlane.xlu0 %1196
        %v1198 = vsel %vm603, %v1153, 0.0
        %1199 = vadd.xlane.f32.xlu0 %v1198
        %v1200 = vpop.xlane.xlu0 %1199
        %v1201 = vsel %vm603, %v1155, 0.0
        %1202 = vadd.xlane.f32.xlu0 %v1201
        %v1203 = vpop.xlane.xlu0 %1202
        %v1204 = vrcp.pop %v1158
        %v1205 = vmul.f32 %v1125, %v1204
        %v1206 = vrcp.pop %v1161
        %v1207 = vmul.f32 %v1127, %v1206
        %v1208 = vrcp.pop %v1164
        %v1209 = vmul.f32 %v1129, %v1208
        %v1210 = vrcp.pop %v1167
        %v1211 = vmul.f32 %v1131, %v1210
        %v1212 = vrcp.pop %v1170
        %v1213 = vmul.f32 %v1133, %v1212
        %v1214 = vrcp.pop %v1173
        %v1215 = vmul.f32 %v1135, %v1214
        %v1216 = vrcp.pop %v1176
        %v1217 = vmul.f32 %v1137, %v1216
        %v1218 = vrcp.pop %v1179
        %v1219 = vmul.f32 %v1139, %v1218
        %v1220 = vrcp.pop %v1182
        %v1221 = vmul.f32 %v1141, %v1220
        %v1222 = vrcp.pop %v1185
        %v1223 = vmul.f32 %v1143, %v1222
        %v1224 = vrcp.pop %v1188
        %v1225 = vmul.f32 %v1145, %v1224
        %v1226 = vrcp.pop %v1191
        %v1227 = vmul.f32 %v1147, %v1226
        %v1228 = vrcp.pop %v1194
        %v1229 = vmul.f32 %v1149, %v1228
        %v1230 = vrcp.pop %v1197
        %v1231 = vmul.f32 %v1151, %v1230
        %v1232 = vrcp.pop %v1200
        %v1233 = vmul.f32 %v1153, %v1232
        %v1234 = vrcp.pop %v1203
        %v1235 = vmul.f32 %v1155, %v1234
        %v1237 = vsel %vm603, %v1205, 0
        %v1240 = vsel %vm603, %v1207, 0
        %v1243 = vsel %vm603, %v1209, 0
        %v1246 = vsel %vm603, %v1211, 0
        %1248 = vmatprep.subr.mxu0 0.0
        %1249 = vmatpush1.msra.mxu0 %v479
        %1250 = vmatprep.subr.mxu0 0.0
        %1251 = vmatpush1.msra.mxu0 %v485
        %1252 = vmatprep.subr.mxu0 0.0
        %1253 = vmatpush1.msra.mxu0 %v491
        %1254 = vmatprep.subr.mxu0 0.0
        %1255 = vmatpush1.msra.mxu0 %v497
        %1256 = vmatprep.subr.mxu0 0.0
        %1257 = vmatpush1.msra.mxu0 0.0
        %1258 = vmatprep.subr.mxu0 0.0
        %1259 = vmatpush1.msra.mxu0 0.0
        %1260 = vmatprep.subr.mxu0 0.0
        %1261 = vmatpush1.msra.mxu0 0.0
        %1262 = vmatprep.subr.mxu0 0.0
        %1263 = vmatpush1.msra.mxu0 0.0
        %1264 = vmatprep.subr.mxu0 0.0
        %1265 = vmatpush1.msra.mxu0 0.0
        %1266 = vmatprep.subr.mxu0 0.0
        %1267 = vmatpush1.msra.mxu0 0.0
        %1268 = vmatprep.subr.mxu0 0.0
        %1269 = vmatpush1.msra.mxu0 0.0
        %1270 = vmatprep.subr.mxu0 0.0
        %1271 = vmatpush1.msra.mxu0 0.0
        %1272 = vmatprep.subr.mxu0 0.0
        %1273 = vmatpush1.msra.mxu0 0.0
        %1274 = vmatprep.subr.mxu0 0.0
        %1275 = vmatpush1.msra.mxu0 0.0
        %1276 = vmatprep.subr.mxu0 0.0
        %1277 = vmatpush1.msra.mxu0 0.0
        %1278 = vmatprep.subr.mxu0 0.0
        %1279 = vmatpush1.msra.mxu0 0.0
        %1280 = vmatprep.subr.mxu0 0.0
        %1281 = vmatpush1.msra.mxu0 0.0
        %1282 = vmatprep.subr.mxu0 0.0
        %1283 = vmatpush1.msra.mxu0 0.0
        %1284 = vmatprep.subr.mxu0 0.0
        %1285 = vmatpush1.msra.mxu0 0.0
        %1286 = vmatprep.subr.mxu0 0.0
        %1287 = vmatpush1.msra.mxu0 0.0
        %1288 = vmatprep.subr.mxu0 0.0
        %1289 = vmatpush1.msra.mxu0 0.0
        %1290 = vmatprep.subr.mxu0 0.0
        %1291 = vmatpush1.msra.mxu0 0.0
        %1292 = vmatprep.subr.mxu0 0.0
        %1293 = vmatpush1.msra.mxu0 0.0
        %1294 = vmatprep.subr.mxu0 0.0
        %1295 = vmatpush1.msra.mxu0 0.0
        %1296 = vmatprep.subr.mxu0 0.0
        %1297 = vmatpush1.msra.mxu0 0.0
        %1298 = vmatprep.subr.mxu0 0.0
        %1299 = vmatpush1.msra.mxu0 0.0
        %1300 = vmatprep.subr.mxu0 0.0
        %1301 = vmatpush1.msra.mxu0 0.0
        %1302 = vmatprep.subr.mxu0 0.0
        %1303 = vmatpush1.msra.mxu0 0.0
        %1304 = vmatprep.subr.mxu0 0.0
        %1305 = vmatpush1.msra.mxu0 0.0
        %1306 = vmatprep.subr.mxu0 0.0
        %1307 = vmatpush1.msra.mxu0 0.0
        %1308 = vmatprep.subr.mxu0 0.0
        %1309 = vmatpush1.msra.mxu0 0.0
        %1310 = vmatprep.subr.mxu0 0.0
        %1311 = vmatpush1.msra.mxu0 0.0
        %1312 = vmatprep.mubr.f32.mxu0 0.0
        %1313 = vmatmul.mubr.f32.gmra.mrb[0].mxu0 %v1237
        %v1314 = vpop.f32.mrb[0].mxu0
        %v1315 = vadd.f32 0.0, %v1314
        %v1316 = vpop.f32.mrb[0].mxu0
        %1317 = vmatprep.mubr.f32.mxu0 0.0
        %1318 = vmatmul.mubr.f32.gmra.mrb[0].mxu0 %v1240
        %v1319 = vpop.f32.mrb[0].mxu0
        %v1320 = vadd.f32 0.0, %v1319
        %v1321 = vpop.f32.mrb[0].mxu0
        %1322 = vmatprep.mubr.f32.mxu0 0.0
        %1323 = vmatmul.mubr.f32.gmra.mrb[0].mxu0 %v1243
        %v1324 = vpop.f32.mrb[0].mxu0
        %v1325 = vadd.f32 0.0, %v1324
        %v1326 = vpop.f32.mrb[0].mxu0
        %1327 = vmatprep.mubr.f32.mxu0 0.0
        %1328 = vmatmul.mubr.f32.gmra.mrb[0].mxu0 %v1246
        %v1329 = vpop.f32.mrb[0].mxu0
        %v1330 = vadd.f32 0.0, %v1329
        %v1331 = vpop.f32.mrb[0].mxu0
        %1332 = vdwg.mxu0
        %v1334 = vsel %vm603, %v1213, 0
        %v1337 = vsel %vm603, %v1215, 0
        %v1340 = vsel %vm603, %v1217, 0
        %v1343 = vsel %vm603, %v1219, 0
        %1345 = vmatprep.subr.mxu0 0.0
        %1346 = vmatpush1.msra.mxu0 %v503
        %1347 = vmatprep.subr.mxu0 0.0
        %1348 = vmatpush1.msra.mxu0 %v509
        %1349 = vmatprep.subr.mxu0 0.0
        %1350 = vmatpush1.msra.mxu0 %v515
        %1351 = vmatprep.subr.mxu0 0.0
        %1352 = vmatpush1.msra.mxu0 %v521
        %1353 = vmatprep.subr.mxu0 0.0
        %1354 = vmatpush1.msra.mxu0 0.0
        %1355 = vmatprep.subr.mxu0 0.0
        %1356 = vmatpush1.msra.mxu0 0.0
        %1357 = vmatprep.subr.mxu0 0.0
        %1358 = vmatpush1.msra.mxu0 0.0
        %1359 = vmatprep.subr.mxu0 0.0
        %1360 = vmatpush1.msra.mxu0 0.0
        %1361 = vmatprep.subr.mxu0 0.0
        %1362 = vmatpush1.msra.mxu0 0.0
        %1363 = vmatprep.subr.mxu0 0.0
        %1364 = vmatpush1.msra.mxu0 0.0
        %1365 = vmatprep.subr.mxu0 0.0
        %1366 = vmatpush1.msra.mxu0 0.0
        %1367 = vmatprep.subr.mxu0 0.0
        %1368 = vmatpush1.msra.mxu0 0.0
        %1369 = vmatprep.subr.mxu0 0.0
        %1370 = vmatpush1.msra.mxu0 0.0
        %1371 = vmatprep.subr.mxu0 0.0
        %1372 = vmatpush1.msra.mxu0 0.0
        %1373 = vmatprep.subr.mxu0 0.0
        %1374 = vmatpush1.msra.mxu0 0.0
        %1375 = vmatprep.subr.mxu0 0.0
        %1376 = vmatpush1.msra.mxu0 0.0
        %1377 = vmatprep.subr.mxu0 0.0
        %1378 = vmatpush1.msra.mxu0 0.0
        %1379 = vmatprep.subr.mxu0 0.0
        %1380 = vmatpush1.msra.mxu0 0.0
        %1381 = vmatprep.subr.mxu0 0.0
        %1382 = vmatpush1.msra.mxu0 0.0
        %1383 = vmatprep.subr.mxu0 0.0
        %1384 = vmatpush1.msra.mxu0 0.0
        %1385 = vmatprep.subr.mxu0 0.0
        %1386 = vmatpush1.msra.mxu0 0.0
        %1387 = vmatprep.subr.mxu0 0.0
        %1388 = vmatpush1.msra.mxu0 0.0
        %1389 = vmatprep.subr.mxu0 0.0
        %1390 = vmatpush1.msra.mxu0 0.0
        %1391 = vmatprep.subr.mxu0 0.0
        %1392 = vmatpush1.msra.mxu0 0.0
        %1393 = vmatprep.subr.mxu0 0.0
        %1394 = vmatpush1.msra.mxu0 0.0
        %1395 = vmatprep.subr.mxu0 0.0
        %1396 = vmatpush1.msra.mxu0 0.0
        %1397 = vmatprep.subr.mxu0 0.0
        %1398 = vmatpush1.msra.mxu0 0.0
        %1399 = vmatprep.subr.mxu0 0.0
        %1400 = vmatpush1.msra.mxu0 0.0
        %1401 = vmatprep.subr.mxu0 0.0
        %1402 = vmatpush1.msra.mxu0 0.0
        %1403 = vmatprep.subr.mxu0 0.0
        %1404 = vmatpush1.msra.mxu0 0.0
        %1405 = vmatprep.subr.mxu0 0.0
        %1406 = vmatpush1.msra.mxu0 0.0
        %1407 = vmatprep.subr.mxu0 0.0
        %1408 = vmatpush1.msra.mxu0 0.0
        %1409 = vmatprep.mubr.f32.mxu0 0.0
        %1410 = vmatmul.mubr.f32.gmra.mrb[0].mxu0 %v1334
        %v1411 = vpop.f32.mrb[0].mxu0
        %v1412 = vadd.f32 0.0, %v1411
        %v1413 = vpop.f32.mrb[0].mxu0
        %1414 = vmatprep.mubr.f32.mxu0 0.0
        %1415 = vmatmul.mubr.f32.gmra.mrb[0].mxu0 %v1337
        %v1416 = vpop.f32.mrb[0].mxu0
        %v1417 = vadd.f32 0.0, %v1416
        %v1418 = vpop.f32.mrb[0].mxu0
        %1419 = vmatprep.mubr.f32.mxu0 0.0
        %1420 = vmatmul.mubr.f32.gmra.mrb[0].mxu0 %v1340
        %v1421 = vpop.f32.mrb[0].mxu0
        %v1422 = vadd.f32 0.0, %v1421
        %v1423 = vpop.f32.mrb[0].mxu0
        %1424 = vmatprep.mubr.f32.mxu0 0.0
        %1425 = vmatmul.mubr.f32.gmra.mrb[0].mxu0 %v1343
        %v1426 = vpop.f32.mrb[0].mxu0
        %v1427 = vadd.f32 0.0, %v1426
        %v1428 = vpop.f32.mrb[0].mxu0
        %1429 = vdwg.mxu0
        %v1431 = vsel %vm603, %v1221, 0
        %v1434 = vsel %vm603, %v1223, 0
        %v1437 = vsel %vm603, %v1225, 0
        %v1440 = vsel %vm603, %v1227, 0
        %1442 = vmatprep.subr.mxu0 0.0
        %1443 = vmatpush1.msra.mxu0 %v527
        %1444 = vmatprep.subr.mxu0 0.0
        %1445 = vmatpush1.msra.mxu0 %v533
        %1446 = vmatprep.subr.mxu0 0.0
        %1447 = vmatpush1.msra.mxu0 %v539
        %1448 = vmatprep.subr.mxu0 0.0
        %1449 = vmatpush1.msra.mxu0 %v545
        %1450 = vmatprep.subr.mxu0 0.0
        %1451 = vmatpush1.msra.mxu0 0.0
        %1452 = vmatprep.subr.mxu0 0.0
        %1453 = vmatpush1.msra.mxu0 0.0
        %1454 = vmatprep.subr.mxu0 0.0
        %1455 = vmatpush1.msra.mxu0 0.0
        %1456 = vmatprep.subr.mxu0 0.0
        %1457 = vmatpush1.msra.mxu0 0.0
        %1458 = vmatprep.subr.mxu0 0.0
        %1459 = vmatpush1.msra.mxu0 0.0
        %1460 = vmatprep.subr.mxu0 0.0
        %1461 = vmatpush1.msra.mxu0 0.0
        %1462 = vmatprep.subr.mxu0 0.0
        %1463 = vmatpush1.msra.mxu0 0.0
        %1464 = vmatprep.subr.mxu0 0.0
        %1465 = vmatpush1.msra.mxu0 0.0
        %1466 = vmatprep.subr.mxu0 0.0
        %1467 = vmatpush1.msra.mxu0 0.0
        %1468 = vmatprep.subr.mxu0 0.0
        %1469 = vmatpush1.msra.mxu0 0.0
        %1470 = vmatprep.subr.mxu0 0.0
        %1471 = vmatpush1.msra.mxu0 0.0
        %1472 = vmatprep.subr.mxu0 0.0
        %1473 = vmatpush1.msra.mxu0 0.0
        %1474 = vmatprep.subr.mxu0 0.0
        %1475 = vmatpush1.msra.mxu0 0.0
        %1476 = vmatprep.subr.mxu0 0.0
        %1477 = vmatpush1.msra.mxu0 0.0
        %1478 = vmatprep.subr.mxu0 0.0
        %1479 = vmatpush1.msra.mxu0 0.0
        %1480 = vmatprep.subr.mxu0 0.0
        %1481 = vmatpush1.msra.mxu0 0.0
        %1482 = vmatprep.subr.mxu0 0.0
        %1483 = vmatpush1.msra.mxu0 0.0
        %1484 = vmatprep.subr.mxu0 0.0
        %1485 = vmatpush1.msra.mxu0 0.0
        %1486 = vmatprep.subr.mxu0 0.0
        %1487 = vmatpush1.msra.mxu0 0.0
        %1488 = vmatprep.subr.mxu0 0.0
        %1489 = vmatpush1.msra.mxu0 0.0
        %1490 = vmatprep.subr.mxu0 0.0
        %1491 = vmatpush1.msra.mxu0 0.0
        %1492 = vmatprep.subr.mxu0 0.0
        %1493 = vmatpush1.msra.mxu0 0.0
        %1494 = vmatprep.subr.mxu0 0.0
        %1495 = vmatpush1.msra.mxu0 0.0
        %1496 = vmatprep.subr.mxu0 0.0
        %1497 = vmatpush1.msra.mxu0 0.0
        %1498 = vmatprep.subr.mxu0 0.0
        %1499 = vmatpush1.msra.mxu0 0.0
        %1500 = vmatprep.subr.mxu0 0.0
        %1501 = vmatpush1.msra.mxu0 0.0
        %1502 = vmatprep.subr.mxu0 0.0
        %1503 = vmatpush1.msra.mxu0 0.0
        %1504 = vmatprep.subr.mxu0 0.0
        %1505 = vmatpush1.msra.mxu0 0.0
        %1506 = vmatprep.mubr.f32.mxu0 0.0
        %1507 = vmatmul.mubr.f32.gmra.mrb[0].mxu0 %v1431
        %v1508 = vpop.f32.mrb[0].mxu0
        %v1509 = vadd.f32 0.0, %v1508
        %v1510 = vpop.f32.mrb[0].mxu0
        %1511 = vmatprep.mubr.f32.mxu0 0.0
        %1512 = vmatmul.mubr.f32.gmra.mrb[0].mxu0 %v1434
        %v1513 = vpop.f32.mrb[0].mxu0
        %v1514 = vadd.f32 0.0, %v1513
        %v1515 = vpop.f32.mrb[0].mxu0
        %1516 = vmatprep.mubr.f32.mxu0 0.0
        %1517 = vmatmul.mubr.f32.gmra.mrb[0].mxu0 %v1437
        %v1518 = vpop.f32.mrb[0].mxu0
        %v1519 = vadd.f32 0.0, %v1518
        %v1520 = vpop.f32.mrb[0].mxu0
        %1521 = vmatprep.mubr.f32.mxu0 0.0
        %1522 = vmatmul.mubr.f32.gmra.mrb[0].mxu0 %v1440
        %v1523 = vpop.f32.mrb[0].mxu0
        %v1524 = vadd.f32 0.0, %v1523
        %v1525 = vpop.f32.mrb[0].mxu0
        %1526 = vdwg.mxu0
        %v1528 = vsel %vm603, %v1229, 0
        %v1531 = vsel %vm603, %v1231, 0
        %v1534 = vsel %vm603, %v1233, 0
        %v1537 = vsel %vm603, %v1235, 0
        %1539 = vmatprep.subr.mxu0 0.0
        %1540 = vmatpush1.msra.mxu0 %v551
        %1541 = vmatprep.subr.mxu0 0.0
        %1542 = vmatpush1.msra.mxu0 %v557
        %1543 = vmatprep.subr.mxu0 0.0
        %1544 = vmatpush1.msra.mxu0 %v563
        %1545 = vmatprep.subr.mxu0 0.0
        %1546 = vmatpush1.msra.mxu0 %v569
        %1547 = vmatprep.subr.mxu0 0.0
        %1548 = vmatpush1.msra.mxu0 0.0
        %1549 = vmatprep.subr.mxu0 0.0
        %1550 = vmatpush1.msra.mxu0 0.0
        %1551 = vmatprep.subr.mxu0 0.0
        %1552 = vmatpush1.msra.mxu0 0.0
        %1553 = vmatprep.subr.mxu0 0.0
        %1554 = vmatpush1.msra.mxu0 0.0
        %1555 = vmatprep.subr.mxu0 0.0
        %1556 = vmatpush1.msra.mxu0 0.0
        %1557 = vmatprep.subr.mxu0 0.0
        %1558 = vmatpush1.msra.mxu0 0.0
        %1559 = vmatprep.subr.mxu0 0.0
        %1560 = vmatpush1.msra.mxu0 0.0
        %1561 = vmatprep.subr.mxu0 0.0
        %1562 = vmatpush1.msra.mxu0 0.0
        %1563 = vmatprep.subr.mxu0 0.0
        %1564 = vmatpush1.msra.mxu0 0.0
        %1565 = vmatprep.subr.mxu0 0.0
        %1566 = vmatpush1.msra.mxu0 0.0
        %1567 = vmatprep.subr.mxu0 0.0
        %1568 = vmatpush1.msra.mxu0 0.0
        %1569 = vmatprep.subr.mxu0 0.0
        %1570 = vmatpush1.msra.mxu0 0.0
        %1571 = vmatprep.subr.mxu0 0.0
        %1572 = vmatpush1.msra.mxu0 0.0
        %1573 = vmatprep.subr.mxu0 0.0
        %1574 = vmatpush1.msra.mxu0 0.0
        %1575 = vmatprep.subr.mxu0 0.0
        %1576 = vmatpush1.msra.mxu0 0.0
        %1577 = vmatprep.subr.mxu0 0.0
        %1578 = vmatpush1.msra.mxu0 0.0
        %1579 = vmatprep.subr.mxu0 0.0
        %1580 = vmatpush1.msra.mxu0 0.0
        %1581 = vmatprep.subr.mxu0 0.0
        %1582 = vmatpush1.msra.mxu0 0.0
        %1583 = vmatprep.subr.mxu0 0.0
        %1584 = vmatpush1.msra.mxu0 0.0
        %1585 = vmatprep.subr.mxu0 0.0
        %1586 = vmatpush1.msra.mxu0 0.0
        %1587 = vmatprep.subr.mxu0 0.0
        %1588 = vmatpush1.msra.mxu0 0.0
        %1589 = vmatprep.subr.mxu0 0.0
        %1590 = vmatpush1.msra.mxu0 0.0
        %1591 = vmatprep.subr.mxu0 0.0
        %1592 = vmatpush1.msra.mxu0 0.0
        %1593 = vmatprep.subr.mxu0 0.0
        %1594 = vmatpush1.msra.mxu0 0.0
        %1595 = vmatprep.subr.mxu0 0.0
        %1596 = vmatpush1.msra.mxu0 0.0
        %1597 = vmatprep.subr.mxu0 0.0
        %1598 = vmatpush1.msra.mxu0 0.0
        %1599 = vmatprep.subr.mxu0 0.0
        %1600 = vmatpush1.msra.mxu0 0.0
        %1601 = vmatprep.subr.mxu0 0.0
        %1602 = vmatpush1.msra.mxu0 0.0
        %1603 = vmatprep.mubr.f32.mxu0 0.0
        %1604 = vmatmul.mubr.f32.gmra.mrb[0].mxu0 %v1528
        %v1605 = vpop.f32.mrb[0].mxu0
        %v1606 = vadd.f32 0.0, %v1605
        %v1607 = vpop.f32.mrb[0].mxu0
        %1608 = vmatprep.mubr.f32.mxu0 0.0
        %1609 = vmatmul.mubr.f32.gmra.mrb[0].mxu0 %v1531
        %v1610 = vpop.f32.mrb[0].mxu0
        %v1611 = vadd.f32 0.0, %v1610
        %v1612 = vpop.f32.mrb[0].mxu0
        %1613 = vmatprep.mubr.f32.mxu0 0.0
        %1614 = vmatmul.mubr.f32.gmra.mrb[0].mxu0 %v1534
        %v1615 = vpop.f32.mrb[0].mxu0
        %v1616 = vadd.f32 0.0, %v1615
        %v1617 = vpop.f32.mrb[0].mxu0
        %1618 = vmatprep.mubr.f32.mxu0 0.0
        %1619 = vmatmul.mubr.f32.gmra.mrb[0].mxu0 %v1537
        %v1620 = vpop.f32.mrb[0].mxu0
        %v1621 = vadd.f32 0.0, %v1620
        %v1622 = vpop.f32.mrb[0].mxu0
        %1623 = vdwg.mxu0
        %v1624 = vld [vmem:[#allocation8] sm:$0xff]
        %v1625 = vld [vmem:[#allocation8 + $0x8] sm:$0xff]
        %v1626 = vld [vmem:[#allocation8 + $0x10] sm:$0xff]
        %v1627 = vld [vmem:[#allocation8 + $0x18] sm:$0xff]
        %s1628 = scalar_lea.vmem [#allocation7], 32
        %v1629 = vld [vmem:[%s1628] sm:$0xff]
        %v1630 = vld [vmem:[%s1628 + $0x8] sm:$0xff]
        %v1631 = vld [vmem:[%s1628 + $0x10] sm:$0xff]
        %v1632 = vld [vmem:[%s1628 + $0x18] sm:$0xff]
        %1633 = vrot.lane.b32.xlu0 %v571, 96
        %v1634 = vpop.permute.xlu0 %1633
        %1635 = vrot.lane.b32.xlu0 %v572, 96
        %v1636 = vpop.permute.xlu0 %1635
        %1637 = vrot.lane.b32.xlu0 %v573, 96
        %v1638 = vpop.permute.xlu0 %1637
        %1639 = vrot.lane.b32.xlu0 %v574, 96
        %v1640 = vpop.permute.xlu0 %1639
        %1641 = vrot.lane.b32.xlu0 %v477, 32
        %v1642 = vpop.permute.xlu0 %1641
        %1643 = vrot.lane.b32.xlu0 %v483, 32
        %v1644 = vpop.permute.xlu0 %1643
        %1645 = vrot.lane.b32.xlu0 %v489, 32
        %v1646 = vpop.permute.xlu0 %1645
        %1647 = vrot.lane.b32.xlu0 %v495, 32
        %v1648 = vpop.permute.xlu0 %1647
        %v1649 = vsel %vm603, %v1634, 0
        %v1651 = vsel %vm603, %v1636, 0
        %v1653 = vsel %vm603, %v1638, 0
        %v1655 = vsel %vm603, %v1640, 0
        %v1657 = vsel %vm603, %v1642, 0
        %v1659 = vsel %vm603, %v1644, 0
        %v1661 = vsel %vm603, %v1646, 0
        %v1663 = vsel %vm603, %v1648, 0
        %1665 = vmatprep.subr.mxu0 0.0
        %1666 = vmatpush1.xpose.msra.mxu0 %v1657
        %1667 = vmatprep.subr.mxu0 0.0
        %1668 = vmatpush1.xpose.msra.mxu0 %v1659
        %1669 = vmatprep.subr.mxu0 0.0
        %1670 = vmatpush1.xpose.msra.mxu0 %v1661
        %1671 = vmatprep.subr.mxu0 0.0
        %1672 = vmatpush1.xpose.msra.mxu0 %v1663
        %1673 = vmatprep.subr.mxu0 0.0
        %1674 = vmatpush1.xpose.msra.mxu0 0.0
        %1675 = vmatprep.subr.mxu0 0.0
        %1676 = vmatpush1.xpose.msra.mxu0 0.0
        %1677 = vmatprep.subr.mxu0 0.0
        %1678 = vmatpush1.xpose.msra.mxu0 0.0
        %1679 = vmatprep.subr.mxu0 0.0
        %1680 = vmatpush1.xpose.msra.mxu0 0.0
        %1681 = vmatprep.subr.mxu0 0.0
        %1682 = vmatpush1.xpose.msra.mxu0 0.0
        %1683 = vmatprep.subr.mxu0 0.0
        %1684 = vmatpush1.xpose.msra.mxu0 0.0
        %1685 = vmatprep.subr.mxu0 0.0
        %1686 = vmatpush1.xpose.msra.mxu0 0.0
        %1687 = vmatprep.subr.mxu0 0.0
        %1688 = vmatpush1.xpose.msra.mxu0 0.0
        %1689 = vmatprep.subr.mxu0 0.0
        %1690 = vmatpush1.xpose.msra.mxu0 0.0
        %1691 = vmatprep.subr.mxu0 0.0
        %1692 = vmatpush1.xpose.msra.mxu0 0.0
        %1693 = vmatprep.subr.mxu0 0.0
        %1694 = vmatpush1.xpose.msra.mxu0 0.0
        %1695 = vmatprep.subr.mxu0 0.0
        %1696 = vmatpush1.xpose.msra.mxu0 0.0
        %1697 = vmatprep.subr.mxu0 0.0
        %1698 = vmatpush1.xpose.msra.mxu0 0.0
        %1699 = vmatprep.subr.mxu0 0.0
        %1700 = vmatpush1.xpose.msra.mxu0 0.0
        %1701 = vmatprep.subr.mxu0 0.0
        %1702 = vmatpush1.xpose.msra.mxu0 0.0
        %1703 = vmatprep.subr.mxu0 0.0
        %1704 = vmatpush1.xpose.msra.mxu0 0.0
        %1705 = vmatprep.subr.mxu0 0.0
        %1706 = vmatpush1.xpose.msra.mxu0 0.0
        %1707 = vmatprep.subr.mxu0 0.0
        %1708 = vmatpush1.xpose.msra.mxu0 0.0
        %1709 = vmatprep.subr.mxu0 0.0
        %1710 = vmatpush1.xpose.msra.mxu0 0.0
        %1711 = vmatprep.subr.mxu0 0.0
        %1712 = vmatpush1.xpose.msra.mxu0 0.0
        %1713 = vmatprep.subr.mxu0 0.0
        %1714 = vmatpush1.xpose.msra.mxu0 0.0
        %1715 = vmatprep.subr.mxu0 0.0
        %1716 = vmatpush1.xpose.msra.mxu0 0.0
        %1717 = vmatprep.subr.mxu0 0.0
        %1718 = vmatpush1.xpose.msra.mxu0 0.0
        %1719 = vmatprep.subr.mxu0 0.0
        %1720 = vmatpush1.xpose.msra.mxu0 0.0
        %1721 = vmatprep.subr.mxu0 0.0
        %1722 = vmatpush1.xpose.msra.mxu0 0.0
        %1723 = vmatprep.subr.mxu0 0.0
        %1724 = vmatpush1.xpose.msra.mxu0 0.0
        %1725 = vmatprep.subr.mxu0 0.0
        %1726 = vmatpush1.xpose.msra.mxu0 0.0
        %1727 = vmatprep.subr.mxu0 0.0
        %1728 = vmatpush1.xpose.msra.mxu0 0.0
        %1729 = vmatprep.mubr.f32.mxu0 0.0
        %1730 = vmatmul.mubr.f32.gmra.mrb[0].mxu0 %v1649
        %v1731 = vpop.f32.mrb[0].mxu0
        %v1732 = vadd.f32 %v1629, %v1731
        %v1733 = vpop.f32.mrb[0].mxu0
        %1734 = vmatprep.mubr.f32.mxu0 0.0
        %1735 = vmatmul.mubr.f32.gmra.mrb[0].mxu0 %v1651
        %v1736 = vpop.f32.mrb[0].mxu0
        %v1737 = vadd.f32 %v1630, %v1736
        %v1738 = vpop.f32.mrb[0].mxu0
        %1739 = vmatprep.mubr.f32.mxu0 0.0
        %1740 = vmatmul.mubr.f32.gmra.mrb[0].mxu0 %v1653
        %v1741 = vpop.f32.mrb[0].mxu0
        %v1742 = vadd.f32 %v1631, %v1741
        %v1743 = vpop.f32.mrb[0].mxu0
        %1744 = vmatprep.mubr.f32.mxu0 0.0
        %1745 = vmatmul.mubr.f32.gmra.mrb[0].mxu0 %v1655
        %v1746 = vpop.f32.mrb[0].mxu0
        %v1747 = vadd.f32 %v1632, %v1746
        %v1748 = vpop.f32.mrb[0].mxu0
        %1749 = vdwg.mxu0
        %1750 = vrot.lane.b32.xlu0 %v575, 96
        %v1751 = vpop.permute.xlu0 %1750
        %1752 = vrot.lane.b32.xlu0 %v576, 96
        %v1753 = vpop.permute.xlu0 %1752
        %1754 = vrot.lane.b32.xlu0 %v577, 96
        %v1755 = vpop.permute.xlu0 %1754
        %1756 = vrot.lane.b32.xlu0 %v578, 96
        %v1757 = vpop.permute.xlu0 %1756
        %1758 = vrot.lane.b32.xlu0 %v501, 32
        %v1759 = vpop.permute.xlu0 %1758
        %1760 = vrot.lane.b32.xlu0 %v507, 32
        %v1761 = vpop.permute.xlu0 %1760
        %1762 = vrot.lane.b32.xlu0 %v513, 32
        %v1763 = vpop.permute.xlu0 %1762
        %1764 = vrot.lane.b32.xlu0 %v519, 32
        %v1765 = vpop.permute.xlu0 %1764
        %v1766 = vsel %vm603, %v1751, 0
        %v1768 = vsel %vm603, %v1753, 0
        %v1770 = vsel %vm603, %v1755, 0
        %v1772 = vsel %vm603, %v1757, 0
        %v1774 = vsel %vm603, %v1759, 0
        %v1776 = vsel %vm603, %v1761, 0
        %v1778 = vsel %vm603, %v1763, 0
        %v1780 = vsel %vm603, %v1765, 0
        %1782 = vmatprep.subr.mxu0 0.0
        %1783 = vmatpush1.xpose.msra.mxu0 %v1774
        %1784 = vmatprep.subr.mxu0 0.0
        %1785 = vmatpush1.xpose.msra.mxu0 %v1776
        %1786 = vmatprep.subr.mxu0 0.0
        %1787 = vmatpush1.xpose.msra.mxu0 %v1778
        %1788 = vmatprep.subr.mxu0 0.0
        %1789 = vmatpush1.xpose.msra.mxu0 %v1780
        %1790 = vmatprep.subr.mxu0 0.0
        %1791 = vmatpush1.xpose.msra.mxu0 0.0
        %1792 = vmatprep.subr.mxu0 0.0
        %1793 = vmatpush1.xpose.msra.mxu0 0.0
        %1794 = vmatprep.subr.mxu0 0.0
        %1795 = vmatpush1.xpose.msra.mxu0 0.0
        %1796 = vmatprep.subr.mxu0 0.0
        %1797 = vmatpush1.xpose.msra.mxu0 0.0
        %1798 = vmatprep.subr.mxu0 0.0
        %1799 = vmatpush1.xpose.msra.mxu0 0.0
        %1800 = vmatprep.subr.mxu0 0.0
        %1801 = vmatpush1.xpose.msra.mxu0 0.0
        %1802 = vmatprep.subr.mxu0 0.0
        %1803 = vmatpush1.xpose.msra.mxu0 0.0
        %1804 = vmatprep.subr.mxu0 0.0
        %1805 = vmatpush1.xpose.msra.mxu0 0.0
        %1806 = vmatprep.subr.mxu0 0.0
        %1807 = vmatpush1.xpose.msra.mxu0 0.0
        %1808 = vmatprep.subr.mxu0 0.0
        %1809 = vmatpush1.xpose.msra.mxu0 0.0
        %1810 = vmatprep.subr.mxu0 0.0
        %1811 = vmatpush1.xpose.msra.mxu0 0.0
        %1812 = vmatprep.subr.mxu0 0.0
        %1813 = vmatpush1.xpose.msra.mxu0 0.0
        %1814 = vmatprep.subr.mxu0 0.0
        %1815 = vmatpush1.xpose.msra.mxu0 0.0
        %1816 = vmatprep.subr.mxu0 0.0
        %1817 = vmatpush1.xpose.msra.mxu0 0.0
        %1818 = vmatprep.subr.mxu0 0.0
        %1819 = vmatpush1.xpose.msra.mxu0 0.0
        %1820 = vmatprep.subr.mxu0 0.0
        %1821 = vmatpush1.xpose.msra.mxu0 0.0
        %1822 = vmatprep.subr.mxu0 0.0
        %1823 = vmatpush1.xpose.msra.mxu0 0.0
        %1824 = vmatprep.subr.mxu0 0.0
        %1825 = vmatpush1.xpose.msra.mxu0 0.0
        %1826 = vmatprep.subr.mxu0 0.0
        %1827 = vmatpush1.xpose.msra.mxu0 0.0
        %1828 = vmatprep.subr.mxu0 0.0
        %1829 = vmatpush1.xpose.msra.mxu0 0.0
        %1830 = vmatprep.subr.mxu0 0.0
        %1831 = vmatpush1.xpose.msra.mxu0 0.0
        %1832 = vmatprep.subr.mxu0 0.0
        %1833 = vmatpush1.xpose.msra.mxu0 0.0
        %1834 = vmatprep.subr.mxu0 0.0
        %1835 = vmatpush1.xpose.msra.mxu0 0.0
        %1836 = vmatprep.subr.mxu0 0.0
        %1837 = vmatpush1.xpose.msra.mxu0 0.0
        %1838 = vmatprep.subr.mxu0 0.0
        %1839 = vmatpush1.xpose.msra.mxu0 0.0
        %1840 = vmatprep.subr.mxu0 0.0
        %1841 = vmatpush1.xpose.msra.mxu0 0.0
        %1842 = vmatprep.subr.mxu0 0.0
        %1843 = vmatpush1.xpose.msra.mxu0 0.0
        %1844 = vmatprep.subr.mxu0 0.0
        %1845 = vmatpush1.xpose.msra.mxu0 0.0
        %1846 = vmatprep.mubr.f32.mxu0 0.0
        %1847 = vmatmul.mubr.f32.gmra.mrb[0].mxu0 %v1766
        %v1848 = vpop.f32.mrb[0].mxu0
        %v1849 = vadd.f32 %v1629, %v1848
        %v1850 = vpop.f32.mrb[0].mxu0
        %1851 = vmatprep.mubr.f32.mxu0 0.0
        %1852 = vmatmul.mubr.f32.gmra.mrb[0].mxu0 %v1768
        %v1853 = vpop.f32.mrb[0].mxu0
        %v1854 = vadd.f32 %v1630, %v1853
        %v1855 = vpop.f32.mrb[0].mxu0
        %1856 = vmatprep.mubr.f32.mxu0 0.0
        %1857 = vmatmul.mubr.f32.gmra.mrb[0].mxu0 %v1770
        %v1858 = vpop.f32.mrb[0].mxu0
        %v1859 = vadd.f32 %v1631, %v1858
        %v1860 = vpop.f32.mrb[0].mxu0
        %1861 = vmatprep.mubr.f32.mxu0 0.0
        %1862 = vmatmul.mubr.f32.gmra.mrb[0].mxu0 %v1772
        %v1863 = vpop.f32.mrb[0].mxu0
        %v1864 = vadd.f32 %v1632, %v1863
        %v1865 = vpop.f32.mrb[0].mxu0
        %1866 = vdwg.mxu0
        %1867 = vrot.lane.b32.xlu0 %v579, 96
        %v1868 = vpop.permute.xlu0 %1867
        %1869 = vrot.lane.b32.xlu0 %v580, 96
        %v1870 = vpop.permute.xlu0 %1869
        %1871 = vrot.lane.b32.xlu0 %v581, 96
        %v1872 = vpop.permute.xlu0 %1871
        %1873 = vrot.lane.b32.xlu0 %v582, 96
        %v1874 = vpop.permute.xlu0 %1873
        %1875 = vrot.lane.b32.xlu0 %v525, 32
        %v1876 = vpop.permute.xlu0 %1875
        %1877 = vrot.lane.b32.xlu0 %v531, 32
        %v1878 = vpop.permute.xlu0 %1877
        %1879 = vrot.lane.b32.xlu0 %v537, 32
        %v1880 = vpop.permute.xlu0 %1879
        %1881 = vrot.lane.b32.xlu0 %v543, 32
        %v1882 = vpop.permute.xlu0 %1881
        %v1883 = vsel %vm603, %v1868, 0
        %v1885 = vsel %vm603, %v1870, 0
        %v1887 = vsel %vm603, %v1872, 0
        %v1889 = vsel %vm603, %v1874, 0
        %v1891 = vsel %vm603, %v1876, 0
        %v1893 = vsel %vm603, %v1878, 0
        %v1895 = vsel %vm603, %v1880, 0
        %v1897 = vsel %vm603, %v1882, 0
        %1899 = vmatprep.subr.mxu0 0.0
        %1900 = vmatpush1.xpose.msra.mxu0 %v1891
        %1901 = vmatprep.subr.mxu0 0.0
        %1902 = vmatpush1.xpose.msra.mxu0 %v1893
        %1903 = vmatprep.subr.mxu0 0.0
        %1904 = vmatpush1.xpose.msra.mxu0 %v1895
        %1905 = vmatprep.subr.mxu0 0.0
        %1906 = vmatpush1.xpose.msra.mxu0 %v1897
        %1907 = vmatprep.subr.mxu0 0.0
        %1908 = vmatpush1.xpose.msra.mxu0 0.0
        %1909 = vmatprep.subr.mxu0 0.0
        %1910 = vmatpush1.xpose.msra.mxu0 0.0
        %1911 = vmatprep.subr.mxu0 0.0
        %1912 = vmatpush1.xpose.msra.mxu0 0.0
        %1913 = vmatprep.subr.mxu0 0.0
        %1914 = vmatpush1.xpose.msra.mxu0 0.0
        %1915 = vmatprep.subr.mxu0 0.0
        %1916 = vmatpush1.xpose.msra.mxu0 0.0
        %1917 = vmatprep.subr.mxu0 0.0
        %1918 = vmatpush1.xpose.msra.mxu0 0.0
        %1919 = vmatprep.subr.mxu0 0.0
        %1920 = vmatpush1.xpose.msra.mxu0 0.0
        %1921 = vmatprep.subr.mxu0 0.0
        %1922 = vmatpush1.xpose.msra.mxu0 0.0
        %1923 = vmatprep.subr.mxu0 0.0
        %1924 = vmatpush1.xpose.msra.mxu0 0.0
        %1925 = vmatprep.subr.mxu0 0.0
        %1926 = vmatpush1.xpose.msra.mxu0 0.0
        %1927 = vmatprep.subr.mxu0 0.0
        %1928 = vmatpush1.xpose.msra.mxu0 0.0
        %1929 = vmatprep.subr.mxu0 0.0
        %1930 = vmatpush1.xpose.msra.mxu0 0.0
        %1931 = vmatprep.subr.mxu0 0.0
        %1932 = vmatpush1.xpose.msra.mxu0 0.0
        %1933 = vmatprep.subr.mxu0 0.0
        %1934 = vmatpush1.xpose.msra.mxu0 0.0
        %1935 = vmatprep.subr.mxu0 0.0
        %1936 = vmatpush1.xpose.msra.mxu0 0.0
        %1937 = vmatprep.subr.mxu0 0.0
        %1938 = vmatpush1.xpose.msra.mxu0 0.0
        %1939 = vmatprep.subr.mxu0 0.0
        %1940 = vmatpush1.xpose.msra.mxu0 0.0
        %1941 = vmatprep.subr.mxu0 0.0
        %1942 = vmatpush1.xpose.msra.mxu0 0.0
        %1943 = vmatprep.subr.mxu0 0.0
        %1944 = vmatpush1.xpose.msra.mxu0 0.0
        %1945 = vmatprep.subr.mxu0 0.0
        %1946 = vmatpush1.xpose.msra.mxu0 0.0
        %1947 = vmatprep.subr.mxu0 0.0
        %1948 = vmatpush1.xpose.msra.mxu0 0.0
        %1949 = vmatprep.subr.mxu0 0.0
        %1950 = vmatpush1.xpose.msra.mxu0 0.0
        %1951 = vmatprep.subr.mxu0 0.0
        %1952 = vmatpush1.xpose.msra.mxu0 0.0
        %1953 = vmatprep.subr.mxu0 0.0
        %1954 = vmatpush1.xpose.msra.mxu0 0.0
        %1955 = vmatprep.subr.mxu0 0.0
        %1956 = vmatpush1.xpose.msra.mxu0 0.0
        %1957 = vmatprep.subr.mxu0 0.0
        %1958 = vmatpush1.xpose.msra.mxu0 0.0
        %1959 = vmatprep.subr.mxu0 0.0
        %1960 = vmatpush1.xpose.msra.mxu0 0.0
        %1961 = vmatprep.subr.mxu0 0.0
        %1962 = vmatpush1.xpose.msra.mxu0 0.0
        %1963 = vmatprep.mubr.f32.mxu0 0.0
        %1964 = vmatmul.mubr.f32.gmra.mrb[0].mxu0 %v1883
        %v1965 = vpop.f32.mrb[0].mxu0
        %v1966 = vadd.f32 %v1629, %v1965
        %v1967 = vpop.f32.mrb[0].mxu0
        %1968 = vmatprep.mubr.f32.mxu0 0.0
        %1969 = vmatmul.mubr.f32.gmra.mrb[0].mxu0 %v1885
        %v1970 = vpop.f32.mrb[0].mxu0
        %v1971 = vadd.f32 %v1630, %v1970
        %v1972 = vpop.f32.mrb[0].mxu0
        %1973 = vmatprep.mubr.f32.mxu0 0.0
        %1974 = vmatmul.mubr.f32.gmra.mrb[0].mxu0 %v1887
        %v1975 = vpop.f32.mrb[0].mxu0
        %v1976 = vadd.f32 %v1631, %v1975
        %v1977 = vpop.f32.mrb[0].mxu0
        %1978 = vmatprep.mubr.f32.mxu0 0.0
        %1979 = vmatmul.mubr.f32.gmra.mrb[0].mxu0 %v1889
        %v1980 = vpop.f32.mrb[0].mxu0
        %v1981 = vadd.f32 %v1632, %v1980
        %v1982 = vpop.f32.mrb[0].mxu0
        %1983 = vdwg.mxu0
        %1984 = vrot.lane.b32.xlu0 %v583, 96
        %v1985 = vpop.permute.xlu0 %1984
        %1986 = vrot.lane.b32.xlu0 %v584, 96
        %v1987 = vpop.permute.xlu0 %1986
        %1988 = vrot.lane.b32.xlu0 %v585, 96
        %v1989 = vpop.permute.xlu0 %1988
        %1990 = vrot.lane.b32.xlu0 %v586, 96
        %v1991 = vpop.permute.xlu0 %1990
        %1992 = vrot.lane.b32.xlu0 %v549, 32
        %v1993 = vpop.permute.xlu0 %1992
        %1994 = vrot.lane.b32.xlu0 %v555, 32
        %v1995 = vpop.permute.xlu0 %1994
        %1996 = vrot.lane.b32.xlu0 %v561, 32
        %v1997 = vpop.permute.xlu0 %1996
        %1998 = vrot.lane.b32.xlu0 %v567, 32
        %v1999 = vpop.permute.xlu0 %1998
        %v2000 = vsel %vm603, %v1985, 0
        %v2002 = vsel %vm603, %v1987, 0
        %v2004 = vsel %vm603, %v1989, 0
        %v2006 = vsel %vm603, %v1991, 0
        %v2008 = vsel %vm603, %v1993, 0
        %v2010 = vsel %vm603, %v1995, 0
        %v2012 = vsel %vm603, %v1997, 0
        %v2014 = vsel %vm603, %v1999, 0
        %2016 = vmatprep.subr.mxu0 0.0
        %2017 = vmatpush1.xpose.msra.mxu0 %v2008
        %2018 = vmatprep.subr.mxu0 0.0
        %2019 = vmatpush1.xpose.msra.mxu0 %v2010
        %2020 = vmatprep.subr.mxu0 0.0
        %2021 = vmatpush1.xpose.msra.mxu0 %v2012
        %2022 = vmatprep.subr.mxu0 0.0
        %2023 = vmatpush1.xpose.msra.mxu0 %v2014
        %2024 = vmatprep.subr.mxu0 0.0
        %2025 = vmatpush1.xpose.msra.mxu0 0.0
        %2026 = vmatprep.subr.mxu0 0.0
        %2027 = vmatpush1.xpose.msra.mxu0 0.0
        %2028 = vmatprep.subr.mxu0 0.0
        %2029 = vmatpush1.xpose.msra.mxu0 0.0
        %2030 = vmatprep.subr.mxu0 0.0
        %2031 = vmatpush1.xpose.msra.mxu0 0.0
        %2032 = vmatprep.subr.mxu0 0.0
        %2033 = vmatpush1.xpose.msra.mxu0 0.0
        %2034 = vmatprep.subr.mxu0 0.0
        %2035 = vmatpush1.xpose.msra.mxu0 0.0
        %2036 = vmatprep.subr.mxu0 0.0
        %2037 = vmatpush1.xpose.msra.mxu0 0.0
        %2038 = vmatprep.subr.mxu0 0.0
        %2039 = vmatpush1.xpose.msra.mxu0 0.0
        %2040 = vmatprep.subr.mxu0 0.0
        %2041 = vmatpush1.xpose.msra.mxu0 0.0
        %2042 = vmatprep.subr.mxu0 0.0
        %2043 = vmatpush1.xpose.msra.mxu0 0.0
        %2044 = vmatprep.subr.mxu0 0.0
        %2045 = vmatpush1.xpose.msra.mxu0 0.0
        %2046 = vmatprep.subr.mxu0 0.0
        %2047 = vmatpush1.xpose.msra.mxu0 0.0
        %2048 = vmatprep.subr.mxu0 0.0
        %2049 = vmatpush1.xpose.msra.mxu0 0.0
        %2050 = vmatprep.subr.mxu0 0.0
        %2051 = vmatpush1.xpose.msra.mxu0 0.0
        %2052 = vmatprep.subr.mxu0 0.0
        %2053 = vmatpush1.xpose.msra.mxu0 0.0
        %2054 = vmatprep.subr.mxu0 0.0
        %2055 = vmatpush1.xpose.msra.mxu0 0.0
        %2056 = vmatprep.subr.mxu0 0.0
        %2057 = vmatpush1.xpose.msra.mxu0 0.0
        %2058 = vmatprep.subr.mxu0 0.0
        %2059 = vmatpush1.xpose.msra.mxu0 0.0
        %2060 = vmatprep.subr.mxu0 0.0
        %2061 = vmatpush1.xpose.msra.mxu0 0.0
        %2062 = vmatprep.subr.mxu0 0.0
        %2063 = vmatpush1.xpose.msra.mxu0 0.0
        %2064 = vmatprep.subr.mxu0 0.0
        %2065 = vmatpush1.xpose.msra.mxu0 0.0
        %2066 = vmatprep.subr.mxu0 0.0
        %2067 = vmatpush1.xpose.msra.mxu0 0.0
        %2068 = vmatprep.subr.mxu0 0.0
        %2069 = vmatpush1.xpose.msra.mxu0 0.0
        %2070 = vmatprep.subr.mxu0 0.0
        %2071 = vmatpush1.xpose.msra.mxu0 0.0
        %2072 = vmatprep.subr.mxu0 0.0
        %2073 = vmatpush1.xpose.msra.mxu0 0.0
        %2074 = vmatprep.subr.mxu0 0.0
        %2075 = vmatpush1.xpose.msra.mxu0 0.0
        %2076 = vmatprep.subr.mxu0 0.0
        %2077 = vmatpush1.xpose.msra.mxu0 0.0
        %2078 = vmatprep.subr.mxu0 0.0
        %2079 = vmatpush1.xpose.msra.mxu0 0.0
        %2080 = vmatprep.mubr.f32.mxu0 0.0
        %2081 = vmatmul.mubr.f32.gmra.mrb[0].mxu0 %v2000
        %v2082 = vpop.f32.mrb[0].mxu0
        %v2083 = vadd.f32 %v1629, %v2082
        %v2084 = vpop.f32.mrb[0].mxu0
        %2085 = vmatprep.mubr.f32.mxu0 0.0
        %2086 = vmatmul.mubr.f32.gmra.mrb[0].mxu0 %v2002
        %v2087 = vpop.f32.mrb[0].mxu0
        %v2088 = vadd.f32 %v1630, %v2087
        %v2089 = vpop.f32.mrb[0].mxu0
        %2090 = vmatprep.mubr.f32.mxu0 0.0
        %2091 = vmatmul.mubr.f32.gmra.mrb[0].mxu0 %v2004
        %v2092 = vpop.f32.mrb[0].mxu0
        %v2093 = vadd.f32 %v1631, %v2092
        %v2094 = vpop.f32.mrb[0].mxu0
        %2095 = vmatprep.mubr.f32.mxu0 0.0
        %2096 = vmatmul.mubr.f32.gmra.mrb[0].mxu0 %v2006
        %v2097 = vpop.f32.mrb[0].mxu0
        %v2098 = vadd.f32 %v1632, %v2097
        %v2099 = vpop.f32.mrb[0].mxu0
        %2100 = vdwg.mxu0
        %v2101 = vsel %vm603, %v1732, -inf
        %2102 = vmax.xlane.f32.xlu0 %v2101
        %v2103 = vpop.xlane.xlu0 %2102
        %v2104 = vsel %vm603, %v1737, -inf
        %2105 = vmax.xlane.f32.xlu0 %v2104
        %v2106 = vpop.xlane.xlu0 %2105
        %v2107 = vsel %vm603, %v1742, -inf
        %2108 = vmax.xlane.f32.xlu0 %v2107
        %v2109 = vpop.xlane.xlu0 %2108
        %v2110 = vsel %vm603, %v1747, -inf
        %2111 = vmax.xlane.f32.xlu0 %v2110
        %v2112 = vpop.xlane.xlu0 %2111
        %v2113 = vsel %vm603, %v1849, -inf
        %2114 = vmax.xlane.f32.xlu0 %v2113
        %v2115 = vpop.xlane.xlu0 %2114
        %v2116 = vsel %vm603, %v1854, -inf
        %2117 = vmax.xlane.f32.xlu0 %v2116
        %v2118 = vpop.xlane.xlu0 %2117
        %v2119 = vsel %vm603, %v1859, -inf
        %2120 = vmax.xlane.f32.xlu0 %v2119
        %v2121 = vpop.xlane.xlu0 %2120
        %v2122 = vsel %vm603, %v1864, -inf
        %2123 = vmax.xlane.f32.xlu0 %v2122
        %v2124 = vpop.xlane.xlu0 %2123
        %v2125 = vsel %vm603, %v1966, -inf
        %2126 = vmax.xlane.f32.xlu0 %v2125
        %v2127 = vpop.xlane.xlu0 %2126
        %v2128 = vsel %vm603, %v1971, -inf
        %2129 = vmax.xlane.f32.xlu0 %v2128
        %v2130 = vpop.xlane.xlu0 %2129
        %v2131 = vsel %vm603, %v1976, -inf
        %2132 = vmax.xlane.f32.xlu0 %v2131
        %v2133 = vpop.xlane.xlu0 %2132
        %v2134 = vsel %vm603, %v1981, -inf
        %2135 = vmax.xlane.f32.xlu0 %v2134
        %v2136 = vpop.xlane.xlu0 %2135
        %v2137 = vsel %vm603, %v2083, -inf
        %2138 = vmax.xlane.f32.xlu0 %v2137
        %v2139 = vpop.xlane.xlu0 %2138
        %v2140 = vsel %vm603, %v2088, -inf
        %2141 = vmax.xlane.f32.xlu0 %v2140
        %v2142 = vpop.xlane.xlu0 %2141
        %v2143 = vsel %vm603, %v2093, -inf
        %2144 = vmax.xlane.f32.xlu0 %v2143
        %v2145 = vpop.xlane.xlu0 %2144
        %v2146 = vsel %vm603, %v2098, -inf
        %2147 = vmax.xlane.f32.xlu0 %v2146
        %v2148 = vpop.xlane.xlu0 %2147
        %v2149 = vsub.f32 %v1732, %v2103
        %v2150 = vsub.f32 %v1737, %v2106
        %v2151 = vsub.f32 %v1742, %v2109
        %v2152 = vsub.f32 %v1747, %v2112
        %v2153 = vsub.f32 %v1849, %v2115
        %v2154 = vsub.f32 %v1854, %v2118
        %v2155 = vsub.f32 %v1859, %v2121
        %v2156 = vsub.f32 %v1864, %v2124
        %v2157 = vsub.f32 %v1966, %v2127
        %v2158 = vsub.f32 %v1971, %v2130
        %v2159 = vsub.f32 %v1976, %v2133
        %v2160 = vsub.f32 %v1981, %v2136
        %v2161 = vsub.f32 %v2083, %v2139
        %v2162 = vsub.f32 %v2088, %v2142
        %v2163 = vsub.f32 %v2093, %v2145
        %v2164 = vsub.f32 %v2098, %v2148
        %v2165 = vmul.f32 %v2149, 1.442695
        %v2166 = vpow.pop %v2165
        %v2167 = vmul.f32 %v2150, 1.442695
        %v2168 = vpow.pop %v2167
        %v2169 = vmul.f32 %v2151, 1.442695
        %v2170 = vpow.pop %v2169
        %v2171 = vmul.f32 %v2152, 1.442695
        %v2172 = vpow.pop %v2171
        %v2173 = vmul.f32 %v2153, 1.442695
        %v2174 = vpow.pop %v2173
        %v2175 = vmul.f32 %v2154, 1.442695
        %v2176 = vpow.pop %v2175
        %v2177 = vmul.f32 %v2155, 1.442695
        %v2178 = vpow.pop %v2177
        %v2179 = vmul.f32 %v2156, 1.442695
        %v2180 = vpow.pop %v2179
        %v2181 = vmul.f32 %v2157, 1.442695
        %v2182 = vpow.pop %v2181
        %v2183 = vmul.f32 %v2158, 1.442695
        %v2184 = vpow.pop %v2183
        %v2185 = vmul.f32 %v2159, 1.442695
        %v2186 = vpow.pop %v2185
        %v2187 = vmul.f32 %v2160, 1.442695
        %v2188 = vpow.pop %v2187
        %v2189 = vmul.f32 %v2161, 1.442695
        %v2190 = vpow.pop %v2189
        %v2191 = vmul.f32 %v2162, 1.442695
        %v2192 = vpow.pop %v2191
        %v2193 = vmul.f32 %v2163, 1.442695
        %v2194 = vpow.pop %v2193
        %v2195 = vmul.f32 %v2164, 1.442695
        %v2196 = vpow.pop %v2195
        %v2197 = vsel %vm603, %v2166, 0.0
        %2198 = vadd.xlane.f32.xlu0 %v2197
        %v2199 = vpop.xlane.xlu0 %2198
        %v2200 = vsel %vm603, %v2168, 0.0
        %2201 = vadd.xlane.f32.xlu0 %v2200
        %v2202 = vpop.xlane.xlu0 %2201
        %v2203 = vsel %vm603, %v2170, 0.0
        %2204 = vadd.xlane.f32.xlu0 %v2203
        %v2205 = vpop.xlane.xlu0 %2204
        %v2206 = vsel %vm603, %v2172, 0.0
        %2207 = vadd.xlane.f32.xlu0 %v2206
        %v2208 = vpop.xlane.xlu0 %2207
        %v2209 = vsel %vm603, %v2174, 0.0
        %2210 = vadd.xlane.f32.xlu0 %v2209
        %v2211 = vpop.xlane.xlu0 %2210
        %v2212 = vsel %vm603, %v2176, 0.0
        %2213 = vadd.xlane.f32.xlu0 %v2212
        %v2214 = vpop.xlane.xlu0 %2213
        %v2215 = vsel %vm603, %v2178, 0.0
        %2216 = vadd.xlane.f32.xlu0 %v2215
        %v2217 = vpop.xlane.xlu0 %2216
        %v2218 = vsel %vm603, %v2180, 0.0
        %2219 = vadd.xlane.f32.xlu0 %v2218
        %v2220 = vpop.xlane.xlu0 %2219
        %v2221 = vsel %vm603, %v2182, 0.0
        %2222 = vadd.xlane.f32.xlu0 %v2221
        %v2223 = vpop.xlane.xlu0 %2222
        %v2224 = vsel %vm603, %v2184, 0.0
        %2225 = vadd.xlane.f32.xlu0 %v2224
        %v2226 = vpop.xlane.xlu0 %2225
        %v2227 = vsel %vm603, %v2186, 0.0
        %2228 = vadd.xlane.f32.xlu0 %v2227
        %v2229 = vpop.xlane.xlu0 %2228
        %v2230 = vsel %vm603, %v2188, 0.0
        %2231 = vadd.xlane.f32.xlu0 %v2230
        %v2232 = vpop.xlane.xlu0 %2231
        %v2233 = vsel %vm603, %v2190, 0.0
        %2234 = vadd.xlane.f32.xlu0 %v2233
        %v2235 = vpop.xlane.xlu0 %2234
        %v2236 = vsel %vm603, %v2192, 0.0
        %2237 = vadd.xlane.f32.xlu0 %v2236
        %v2238 = vpop.xlane.xlu0 %2237
        %v2239 = vsel %vm603, %v2194, 0.0
        %2240 = vadd.xlane.f32.xlu0 %v2239
        %v2241 = vpop.xlane.xlu0 %2240
        %v2242 = vsel %vm603, %v2196, 0.0
        %2243 = vadd.xlane.f32.xlu0 %v2242
        %v2244 = vpop.xlane.xlu0 %2243
        %v2245 = vrcp.pop %v2199
        %v2246 = vmul.f32 %v2166, %v2245
        %v2247 = vrcp.pop %v2202
        %v2248 = vmul.f32 %v2168, %v2247
        %v2249 = vrcp.pop %v2205
        %v2250 = vmul.f32 %v2170, %v2249
        %v2251 = vrcp.pop %v2208
        %v2252 = vmul.f32 %v2172, %v2251
        %v2253 = vrcp.pop %v2211
        %v2254 = vmul.f32 %v2174, %v2253
        %v2255 = vrcp.pop %v2214
        %v2256 = vmul.f32 %v2176, %v2255
        %v2257 = vrcp.pop %v2217
        %v2258 = vmul.f32 %v2178, %v2257
        %v2259 = vrcp.pop %v2220
        %v2260 = vmul.f32 %v2180, %v2259
        %v2261 = vrcp.pop %v2223
        %v2262 = vmul.f32 %v2182, %v2261
        %v2263 = vrcp.pop %v2226
        %v2264 = vmul.f32 %v2184, %v2263
        %v2265 = vrcp.pop %v2229
        %v2266 = vmul.f32 %v2186, %v2265
        %v2267 = vrcp.pop %v2232
        %v2268 = vmul.f32 %v2188, %v2267
        %v2269 = vrcp.pop %v2235
        %v2270 = vmul.f32 %v2190, %v2269
        %v2271 = vrcp.pop %v2238
        %v2272 = vmul.f32 %v2192, %v2271
        %v2273 = vrcp.pop %v2241
        %v2274 = vmul.f32 %v2194, %v2273
        %v2275 = vrcp.pop %v2244
        %v2276 = vmul.f32 %v2196, %v2275
        %2281 = vrot.lane.b32.xlu0 %v479, 96
        %v2282 = vpop.permute.xlu0 %2281
        %2283 = vrot.lane.b32.xlu0 %v485, 96
        %v2284 = vpop.permute.xlu0 %2283
        %2285 = vrot.lane.b32.xlu0 %v491, 96
        %v2286 = vpop.permute.xlu0 %2285
        %2287 = vrot.lane.b32.xlu0 %v497, 96
        %v2288 = vpop.permute.xlu0 %2287
        %v2294 = vsel %vm603, %v2246, 0
        %v2297 = vsel %vm603, %v2248, 0
        %v2300 = vsel %vm603, %v2250, 0
        %v2303 = vsel %vm603, %v2252, 0
        %2305 = vmatprep.subr.mxu0 0.0
        %2306 = vmatpush1.msra.mxu0 %v2282
        %2307 = vmatprep.subr.mxu0 0.0
        %2308 = vmatpush1.msra.mxu0 %v2284
        %2309 = vmatprep.subr.mxu0 0.0
        %2310 = vmatpush1.msra.mxu0 %v2286
        %2311 = vmatprep.subr.mxu0 0.0
        %2312 = vmatpush1.msra.mxu0 %v2288
        %2313 = vmatprep.subr.mxu0 0.0
        %2314 = vmatpush1.msra.mxu0 0.0
        %2315 = vmatprep.subr.mxu0 0.0
        %2316 = vmatpush1.msra.mxu0 0.0
        %2317 = vmatprep.subr.mxu0 0.0
        %2318 = vmatpush1.msra.mxu0 0.0
        %2319 = vmatprep.subr.mxu0 0.0
        %2320 = vmatpush1.msra.mxu0 0.0
        %2321 = vmatprep.subr.mxu0 0.0
        %2322 = vmatpush1.msra.mxu0 0.0
        %2323 = vmatprep.subr.mxu0 0.0
        %2324 = vmatpush1.msra.mxu0 0.0
        %2325 = vmatprep.subr.mxu0 0.0
        %2326 = vmatpush1.msra.mxu0 0.0
        %2327 = vmatprep.subr.mxu0 0.0
        %2328 = vmatpush1.msra.mxu0 0.0
        %2329 = vmatprep.subr.mxu0 0.0
        %2330 = vmatpush1.msra.mxu0 0.0
        %2331 = vmatprep.subr.mxu0 0.0
        %2332 = vmatpush1.msra.mxu0 0.0
        %2333 = vmatprep.subr.mxu0 0.0
        %2334 = vmatpush1.msra.mxu0 0.0
        %2335 = vmatprep.subr.mxu0 0.0
        %2336 = vmatpush1.msra.mxu0 0.0
        %2337 = vmatprep.subr.mxu0 0.0
        %2338 = vmatpush1.msra.mxu0 0.0
        %2339 = vmatprep.subr.mxu0 0.0
        %2340 = vmatpush1.msra.mxu0 0.0
        %2341 = vmatprep.subr.mxu0 0.0
        %2342 = vmatpush1.msra.mxu0 0.0
        %2343 = vmatprep.subr.mxu0 0.0
        %2344 = vmatpush1.msra.mxu0 0.0
        %2345 = vmatprep.subr.mxu0 0.0
        %2346 = vmatpush1.msra.mxu0 0.0
        %2347 = vmatprep.subr.mxu0 0.0
        %2348 = vmatpush1.msra.mxu0 0.0
        %2349 = vmatprep.subr.mxu0 0.0
        %2350 = vmatpush1.msra.mxu0 0.0
        %2351 = vmatprep.subr.mxu0 0.0
        %2352 = vmatpush1.msra.mxu0 0.0
        %2353 = vmatprep.subr.mxu0 0.0
        %2354 = vmatpush1.msra.mxu0 0.0
        %2355 = vmatprep.subr.mxu0 0.0
        %2356 = vmatpush1.msra.mxu0 0.0
        %2357 = vmatprep.subr.mxu0 0.0
        %2358 = vmatpush1.msra.mxu0 0.0
        %2359 = vmatprep.subr.mxu0 0.0
        %2360 = vmatpush1.msra.mxu0 0.0
        %2361 = vmatprep.subr.mxu0 0.0
        %2362 = vmatpush1.msra.mxu0 0.0
        %2363 = vmatprep.subr.mxu0 0.0
        %2364 = vmatpush1.msra.mxu0 0.0
        %2365 = vmatprep.subr.mxu0 0.0
        %2366 = vmatpush1.msra.mxu0 0.0
        %2367 = vmatprep.subr.mxu0 0.0
        %2368 = vmatpush1.msra.mxu0 0.0
        %2369 = vmatprep.mubr.f32.mxu0 0.0
        %2370 = vmatmul.mubr.f32.gmra.mrb[0].mxu0 %v2294
        %v2371 = vpop.f32.mrb[0].mxu0
        %v2372 = vadd.f32 0.0, %v2371
        %v2373 = vpop.f32.mrb[0].mxu0
        %2374 = vmatprep.mubr.f32.mxu0 0.0
        %2375 = vmatmul.mubr.f32.gmra.mrb[0].mxu0 %v2297
        %v2376 = vpop.f32.mrb[0].mxu0
        %v2377 = vadd.f32 0.0, %v2376
        %v2378 = vpop.f32.mrb[0].mxu0
        %2379 = vmatprep.mubr.f32.mxu0 0.0
        %2380 = vmatmul.mubr.f32.gmra.mrb[0].mxu0 %v2300
        %v2381 = vpop.f32.mrb[0].mxu0
        %v2382 = vadd.f32 0.0, %v2381
        %v2383 = vpop.f32.mrb[0].mxu0
        %2384 = vmatprep.mubr.f32.mxu0 0.0
        %2385 = vmatmul.mubr.f32.gmra.mrb[0].mxu0 %v2303
        %v2386 = vpop.f32.mrb[0].mxu0
        %v2387 = vadd.f32 0.0, %v2386
        %v2388 = vpop.f32.mrb[0].mxu0
        %2389 = vdwg.mxu0
        %2394 = vrot.lane.b32.xlu0 %v503, 96
        %v2395 = vpop.permute.xlu0 %2394
        %2396 = vrot.lane.b32.xlu0 %v509, 96
        %v2397 = vpop.permute.xlu0 %2396
        %2398 = vrot.lane.b32.xlu0 %v515, 96
        %v2399 = vpop.permute.xlu0 %2398
        %2400 = vrot.lane.b32.xlu0 %v521, 96
        %v2401 = vpop.permute.xlu0 %2400
        %v2407 = vsel %vm603, %v2254, 0
        %v2410 = vsel %vm603, %v2256, 0
        %v2413 = vsel %vm603, %v2258, 0
        %v2416 = vsel %vm603, %v2260, 0
        %2418 = vmatprep.subr.mxu0 0.0
        %2419 = vmatpush1.msra.mxu0 %v2395
        %2420 = vmatprep.subr.mxu0 0.0
        %2421 = vmatpush1.msra.mxu0 %v2397
        %2422 = vmatprep.subr.mxu0 0.0
        %2423 = vmatpush1.msra.mxu0 %v2399
        %2424 = vmatprep.subr.mxu0 0.0
        %2425 = vmatpush1.msra.mxu0 %v2401
        %2426 = vmatprep.subr.mxu0 0.0
        %2427 = vmatpush1.msra.mxu0 0.0
        %2428 = vmatprep.subr.mxu0 0.0
        %2429 = vmatpush1.msra.mxu0 0.0
        %2430 = vmatprep.subr.mxu0 0.0
        %2431 = vmatpush1.msra.mxu0 0.0
        %2432 = vmatprep.subr.mxu0 0.0
        %2433 = vmatpush1.msra.mxu0 0.0
        %2434 = vmatprep.subr.mxu0 0.0
        %2435 = vmatpush1.msra.mxu0 0.0
        %2436 = vmatprep.subr.mxu0 0.0
        %2437 = vmatpush1.msra.mxu0 0.0
        %2438 = vmatprep.subr.mxu0 0.0
        %2439 = vmatpush1.msra.mxu0 0.0
        %2440 = vmatprep.subr.mxu0 0.0
        %2441 = vmatpush1.msra.mxu0 0.0
        %2442 = vmatprep.subr.mxu0 0.0
        %2443 = vmatpush1.msra.mxu0 0.0
        %2444 = vmatprep.subr.mxu0 0.0
        %2445 = vmatpush1.msra.mxu0 0.0
        %2446 = vmatprep.subr.mxu0 0.0
        %2447 = vmatpush1.msra.mxu0 0.0
        %2448 = vmatprep.subr.mxu0 0.0
        %2449 = vmatpush1.msra.mxu0 0.0
        %2450 = vmatprep.subr.mxu0 0.0
        %2451 = vmatpush1.msra.mxu0 0.0
        %2452 = vmatprep.subr.mxu0 0.0
        %2453 = vmatpush1.msra.mxu0 0.0
        %2454 = vmatprep.subr.mxu0 0.0
        %2455 = vmatpush1.msra.mxu0 0.0
        %2456 = vmatprep.subr.mxu0 0.0
        %2457 = vmatpush1.msra.mxu0 0.0
        %2458 = vmatprep.subr.mxu0 0.0
        %2459 = vmatpush1.msra.mxu0 0.0
        %2460 = vmatprep.subr.mxu0 0.0
        %2461 = vmatpush1.msra.mxu0 0.0
        %2462 = vmatprep.subr.mxu0 0.0
        %2463 = vmatpush1.msra.mxu0 0.0
        %2464 = vmatprep.subr.mxu0 0.0
        %2465 = vmatpush1.msra.mxu0 0.0
        %2466 = vmatprep.subr.mxu0 0.0
        %2467 = vmatpush1.msra.mxu0 0.0
        %2468 = vmatprep.subr.mxu0 0.0
        %2469 = vmatpush1.msra.mxu0 0.0
        %2470 = vmatprep.subr.mxu0 0.0
        %2471 = vmatpush1.msra.mxu0 0.0
        %2472 = vmatprep.subr.mxu0 0.0
        %2473 = vmatpush1.msra.mxu0 0.0
        %2474 = vmatprep.subr.mxu0 0.0
        %2475 = vmatpush1.msra.mxu0 0.0
        %2476 = vmatprep.subr.mxu0 0.0
        %2477 = vmatpush1.msra.mxu0 0.0
        %2478 = vmatprep.subr.mxu0 0.0
        %2479 = vmatpush1.msra.mxu0 0.0
        %2480 = vmatprep.subr.mxu0 0.0
        %2481 = vmatpush1.msra.mxu0 0.0
        %2482 = vmatprep.mubr.f32.mxu0 0.0
        %2483 = vmatmul.mubr.f32.gmra.mrb[0].mxu0 %v2407
        %v2484 = vpop.f32.mrb[0].mxu0
        %v2485 = vadd.f32 0.0, %v2484
        %v2486 = vpop.f32.mrb[0].mxu0
        %2487 = vmatprep.mubr.f32.mxu0 0.0
        %2488 = vmatmul.mubr.f32.gmra.mrb[0].mxu0 %v2410
        %v2489 = vpop.f32.mrb[0].mxu0
        %v2490 = vadd.f32 0.0, %v2489
        %v2491 = vpop.f32.mrb[0].mxu0
        %2492 = vmatprep.mubr.f32.mxu0 0.0
        %2493 = vmatmul.mubr.f32.gmra.mrb[0].mxu0 %v2413
        %v2494 = vpop.f32.mrb[0].mxu0
        %v2495 = vadd.f32 0.0, %v2494
        %v2496 = vpop.f32.mrb[0].mxu0
        %2497 = vmatprep.mubr.f32.mxu0 0.0
        %2498 = vmatmul.mubr.f32.gmra.mrb[0].mxu0 %v2416
        %v2499 = vpop.f32.mrb[0].mxu0
        %v2500 = vadd.f32 0.0, %v2499
        %v2501 = vpop.f32.mrb[0].mxu0
        %2502 = vdwg.mxu0
        %2507 = vrot.lane.b32.xlu0 %v527, 96
        %v2508 = vpop.permute.xlu0 %2507
        %2509 = vrot.lane.b32.xlu0 %v533, 96
        %v2510 = vpop.permute.xlu0 %2509
        %2511 = vrot.lane.b32.xlu0 %v539, 96
        %v2512 = vpop.permute.xlu0 %2511
        %2513 = vrot.lane.b32.xlu0 %v545, 96
        %v2514 = vpop.permute.xlu0 %2513
        %v2520 = vsel %vm603, %v2262, 0
        %v2523 = vsel %vm603, %v2264, 0
        %v2526 = vsel %vm603, %v2266, 0
        %v2529 = vsel %vm603, %v2268, 0
        %2531 = vmatprep.subr.mxu0 0.0
        %2532 = vmatpush1.msra.mxu0 %v2508
        %2533 = vmatprep.subr.mxu0 0.0
        %2534 = vmatpush1.msra.mxu0 %v2510
        %2535 = vmatprep.subr.mxu0 0.0
        %2536 = vmatpush1.msra.mxu0 %v2512
        %2537 = vmatprep.subr.mxu0 0.0
        %2538 = vmatpush1.msra.mxu0 %v2514
        %2539 = vmatprep.subr.mxu0 0.0
        %2540 = vmatpush1.msra.mxu0 0.0
        %2541 = vmatprep.subr.mxu0 0.0
        %2542 = vmatpush1.msra.mxu0 0.0
        %2543 = vmatprep.subr.mxu0 0.0
        %2544 = vmatpush1.msra.mxu0 0.0
        %2545 = vmatprep.subr.mxu0 0.0
        %2546 = vmatpush1.msra.mxu0 0.0
        %2547 = vmatprep.subr.mxu0 0.0
        %2548 = vmatpush1.msra.mxu0 0.0
        %2549 = vmatprep.subr.mxu0 0.0
        %2550 = vmatpush1.msra.mxu0 0.0
        %2551 = vmatprep.subr.mxu0 0.0
        %2552 = vmatpush1.msra.mxu0 0.0
        %2553 = vmatprep.subr.mxu0 0.0
        %2554 = vmatpush1.msra.mxu0 0.0
        %2555 = vmatprep.subr.mxu0 0.0
        %2556 = vmatpush1.msra.mxu0 0.0
        %2557 = vmatprep.subr.mxu0 0.0
        %2558 = vmatpush1.msra.mxu0 0.0
        %2559 = vmatprep.subr.mxu0 0.0
        %2560 = vmatpush1.msra.mxu0 0.0
        %2561 = vmatprep.subr.mxu0 0.0
        %2562 = vmatpush1.msra.mxu0 0.0
        %2563 = vmatprep.subr.mxu0 0.0
        %2564 = vmatpush1.msra.mxu0 0.0
        %2565 = vmatprep.subr.mxu0 0.0
        %2566 = vmatpush1.msra.mxu0 0.0
        %2567 = vmatprep.subr.mxu0 0.0
        %2568 = vmatpush1.msra.mxu0 0.0
        %2569 = vmatprep.subr.mxu0 0.0
        %2570 = vmatpush1.msra.mxu0 0.0
        %2571 = vmatprep.subr.mxu0 0.0
        %2572 = vmatpush1.msra.mxu0 0.0
        %2573 = vmatprep.subr.mxu0 0.0
        %2574 = vmatpush1.msra.mxu0 0.0
        %2575 = vmatprep.subr.mxu0 0.0
        %2576 = vmatpush1.msra.mxu0 0.0
        %2577 = vmatprep.subr.mxu0 0.0
        %2578 = vmatpush1.msra.mxu0 0.0
        %2579 = vmatprep.subr.mxu0 0.0
        %2580 = vmatpush1.msra.mxu0 0.0
        %2581 = vmatprep.subr.mxu0 0.0
        %2582 = vmatpush1.msra.mxu0 0.0
        %2583 = vmatprep.subr.mxu0 0.0
        %2584 = vmatpush1.msra.mxu0 0.0
        %2585 = vmatprep.subr.mxu0 0.0
        %2586 = vmatpush1.msra.mxu0 0.0
        %2587 = vmatprep.subr.mxu0 0.0
        %2588 = vmatpush1.msra.mxu0 0.0
        %2589 = vmatprep.subr.mxu0 0.0
        %2590 = vmatpush1.msra.mxu0 0.0
        %2591 = vmatprep.subr.mxu0 0.0
        %2592 = vmatpush1.msra.mxu0 0.0
        %2593 = vmatprep.subr.mxu0 0.0
        %2594 = vmatpush1.msra.mxu0 0.0
        %2595 = vmatprep.mubr.f32.mxu0 0.0
        %2596 = vmatmul.mubr.f32.gmra.mrb[0].mxu0 %v2520
        %v2597 = vpop.f32.mrb[0].mxu0
        %v2598 = vadd.f32 0.0, %v2597
        %v2599 = vpop.f32.mrb[0].mxu0
        %2600 = vmatprep.mubr.f32.mxu0 0.0
        %2601 = vmatmul.mubr.f32.gmra.mrb[0].mxu0 %v2523
        %v2602 = vpop.f32.mrb[0].mxu0
        %v2603 = vadd.f32 0.0, %v2602
        %v2604 = vpop.f32.mrb[0].mxu0
        %2605 = vmatprep.mubr.f32.mxu0 0.0
        %2606 = vmatmul.mubr.f32.gmra.mrb[0].mxu0 %v2526
        %v2607 = vpop.f32.mrb[0].mxu0
        %v2608 = vadd.f32 0.0, %v2607
        %v2609 = vpop.f32.mrb[0].mxu0
        %2610 = vmatprep.mubr.f32.mxu0 0.0
        %2611 = vmatmul.mubr.f32.gmra.mrb[0].mxu0 %v2529
        %v2612 = vpop.f32.mrb[0].mxu0
        %v2613 = vadd.f32 0.0, %v2612
        %v2614 = vpop.f32.mrb[0].mxu0
        %2615 = vdwg.mxu0
        %2620 = vrot.lane.b32.xlu0 %v551, 96
        %v2621 = vpop.permute.xlu0 %2620
        %2622 = vrot.lane.b32.xlu0 %v557, 96
        %v2623 = vpop.permute.xlu0 %2622
        %2624 = vrot.lane.b32.xlu0 %v563, 96
        %v2625 = vpop.permute.xlu0 %2624
        %2626 = vrot.lane.b32.xlu0 %v569, 96
        %v2627 = vpop.permute.xlu0 %2626
        %v2633 = vsel %vm603, %v2270, 0
        %v2636 = vsel %vm603, %v2272, 0
        %v2639 = vsel %vm603, %v2274, 0
        %v2642 = vsel %vm603, %v2276, 0
        %2644 = vmatprep.subr.mxu0 0.0
        %2645 = vmatpush1.msra.mxu0 %v2621
        %2646 = vmatprep.subr.mxu0 0.0
        %2647 = vmatpush1.msra.mxu0 %v2623
        %2648 = vmatprep.subr.mxu0 0.0
        %2649 = vmatpush1.msra.mxu0 %v2625
        %2650 = vmatprep.subr.mxu0 0.0
        %2651 = vmatpush1.msra.mxu0 %v2627
        %2652 = vmatprep.subr.mxu0 0.0
        %2653 = vmatpush1.msra.mxu0 0.0
        %2654 = vmatprep.subr.mxu0 0.0
        %2655 = vmatpush1.msra.mxu0 0.0
        %2656 = vmatprep.subr.mxu0 0.0
        %2657 = vmatpush1.msra.mxu0 0.0
        %2658 = vmatprep.subr.mxu0 0.0
        %2659 = vmatpush1.msra.mxu0 0.0
        %2660 = vmatprep.subr.mxu0 0.0
        %2661 = vmatpush1.msra.mxu0 0.0
        %2662 = vmatprep.subr.mxu0 0.0
        %2663 = vmatpush1.msra.mxu0 0.0
        %2664 = vmatprep.subr.mxu0 0.0
        %2665 = vmatpush1.msra.mxu0 0.0
        %2666 = vmatprep.subr.mxu0 0.0
        %2667 = vmatpush1.msra.mxu0 0.0
        %2668 = vmatprep.subr.mxu0 0.0
        %2669 = vmatpush1.msra.mxu0 0.0
        %2670 = vmatprep.subr.mxu0 0.0
        %2671 = vmatpush1.msra.mxu0 0.0
        %2672 = vmatprep.subr.mxu0 0.0
        %2673 = vmatpush1.msra.mxu0 0.0
        %2674 = vmatprep.subr.mxu0 0.0
        %2675 = vmatpush1.msra.mxu0 0.0
        %2676 = vmatprep.subr.mxu0 0.0
        %2677 = vmatpush1.msra.mxu0 0.0
        %2678 = vmatprep.subr.mxu0 0.0
        %2679 = vmatpush1.msra.mxu0 0.0
        %2680 = vmatprep.subr.mxu0 0.0
        %2681 = vmatpush1.msra.mxu0 0.0
        %2682 = vmatprep.subr.mxu0 0.0
        %2683 = vmatpush1.msra.mxu0 0.0
        %2684 = vmatprep.subr.mxu0 0.0
        %2685 = vmatpush1.msra.mxu0 0.0
        %2686 = vmatprep.subr.mxu0 0.0
        %2687 = vmatpush1.msra.mxu0 0.0
        %2688 = vmatprep.subr.mxu0 0.0
        %2689 = vmatpush1.msra.mxu0 0.0
        %2690 = vmatprep.subr.mxu0 0.0
        %2691 = vmatpush1.msra.mxu0 0.0
        %2692 = vmatprep.subr.mxu0 0.0
        %2693 = vmatpush1.msra.mxu0 0.0
        %2694 = vmatprep.subr.mxu0 0.0
        %2695 = vmatpush1.msra.mxu0 0.0
        %2696 = vmatprep.subr.mxu0 0.0
        %2697 = vmatpush1.msra.mxu0 0.0
        %2698 = vmatprep.subr.mxu0 0.0
        %2699 = vmatpush1.msra.mxu0 0.0
        %2700 = vmatprep.subr.mxu0 0.0
        %2701 = vmatpush1.msra.mxu0 0.0
        %2702 = vmatprep.subr.mxu0 0.0
        %2703 = vmatpush1.msra.mxu0 0.0
        %2704 = vmatprep.subr.mxu0 0.0
        %2705 = vmatpush1.msra.mxu0 0.0
        %2706 = vmatprep.subr.mxu0 0.0
        %2707 = vmatpush1.msra.mxu0 0.0
        %2708 = vmatprep.mubr.f32.mxu0 0.0
        %2709 = vmatmul.mubr.f32.gmra.mrb[0].mxu0 %v2633
        %v2710 = vpop.f32.mrb[0].mxu0
        %v2711 = vadd.f32 0.0, %v2710
        %v2712 = vpop.f32.mrb[0].mxu0
        %2713 = vmatprep.mubr.f32.mxu0 0.0
        %2714 = vmatmul.mubr.f32.gmra.mrb[0].mxu0 %v2636
        %v2715 = vpop.f32.mrb[0].mxu0
        %v2716 = vadd.f32 0.0, %v2715
        %v2717 = vpop.f32.mrb[0].mxu0
        %2718 = vmatprep.mubr.f32.mxu0 0.0
        %2719 = vmatmul.mubr.f32.gmra.mrb[0].mxu0 %v2639
        %v2720 = vpop.f32.mrb[0].mxu0
        %v2721 = vadd.f32 0.0, %v2720
        %v2722 = vpop.f32.mrb[0].mxu0
        %2723 = vmatprep.mubr.f32.mxu0 0.0
        %2724 = vmatmul.mubr.f32.gmra.mrb[0].mxu0 %v2642
        %v2725 = vpop.f32.mrb[0].mxu0
        %v2726 = vadd.f32 0.0, %v2725
        %v2727 = vpop.f32.mrb[0].mxu0
        %2728 = vdwg.mxu0
        %v2729 = vld [vmem:[#allocation8 + $0x20] sm:$0xff]
        %v2730 = vld [vmem:[#allocation8 + $0x28] sm:$0xff]
        %v2731 = vld [vmem:[#allocation8 + $0x30] sm:$0xff]
        %v2732 = vld [vmem:[#allocation8 + $0x38] sm:$0xff]
        %v2734 = vsel %vm603, %v2372, 0
        %v2737 = vsel %vm603, %v2377, 0
        %v2740 = vsel %vm603, %v2382, 0
        %v2743 = vsel %vm603, %v2387, 0
        %v2746 = vsel %vm603, %v2485, 0
        %v2749 = vsel %vm603, %v2490, 0
        %v2752 = vsel %vm603, %v2495, 0
        %v2755 = vsel %vm603, %v2500, 0
        %v2758 = vsel %vm603, %v2598, 0
        %v2761 = vsel %vm603, %v2603, 0
        %v2764 = vsel %vm603, %v2608, 0
        %v2767 = vsel %vm603, %v2613, 0
        %v2770 = vsel %vm603, %v2711, 0
        %v2773 = vsel %vm603, %v2716, 0
        %v2776 = vsel %vm603, %v2721, 0
        %v2779 = vsel %vm603, %v2726, 0
        %2781 = vmatprep.subr.mxu0 0.0
        %2782 = vmatpush1.msra.mxu0 %v2729
        %2783 = vmatprep.subr.mxu0 0.0
        %2784 = vmatpush1.msra.mxu0 %v2730
        %2785 = vmatprep.subr.mxu0 0.0
        %2786 = vmatpush1.msra.mxu0 %v2731
        %2787 = vmatprep.subr.mxu0 0.0
        %2788 = vmatpush1.msra.mxu0 %v2732
        %2789 = vmatprep.subr.mxu0 0.0
        %2790 = vmatpush1.msra.mxu0 0.0
        %2791 = vmatprep.subr.mxu0 0.0
        %2792 = vmatpush1.msra.mxu0 0.0
        %2793 = vmatprep.subr.mxu0 0.0
        %2794 = vmatpush1.msra.mxu0 0.0
        %2795 = vmatprep.subr.mxu0 0.0
        %2796 = vmatpush1.msra.mxu0 0.0
        %2797 = vmatprep.subr.mxu0 0.0
        %2798 = vmatpush1.msra.mxu0 0.0
        %2799 = vmatprep.subr.mxu0 0.0
        %2800 = vmatpush1.msra.mxu0 0.0
        %2801 = vmatprep.subr.mxu0 0.0
        %2802 = vmatpush1.msra.mxu0 0.0
        %2803 = vmatprep.subr.mxu0 0.0
        %2804 = vmatpush1.msra.mxu0 0.0
        %2805 = vmatprep.subr.mxu0 0.0
        %2806 = vmatpush1.msra.mxu0 0.0
        %2807 = vmatprep.subr.mxu0 0.0
        %2808 = vmatpush1.msra.mxu0 0.0
        %2809 = vmatprep.subr.mxu0 0.0
        %2810 = vmatpush1.msra.mxu0 0.0
        %2811 = vmatprep.subr.mxu0 0.0
        %2812 = vmatpush1.msra.mxu0 0.0
        %2813 = vmatprep.subr.mxu0 0.0
        %2814 = vmatpush1.msra.mxu0 0.0
        %2815 = vmatprep.subr.mxu0 0.0
        %2816 = vmatpush1.msra.mxu0 0.0
        %2817 = vmatprep.subr.mxu0 0.0
        %2818 = vmatpush1.msra.mxu0 0.0
        %2819 = vmatprep.subr.mxu0 0.0
        %2820 = vmatpush1.msra.mxu0 0.0
        %2821 = vmatprep.subr.mxu0 0.0
        %2822 = vmatpush1.msra.mxu0 0.0
        %2823 = vmatprep.subr.mxu0 0.0
        %2824 = vmatpush1.msra.mxu0 0.0
        %2825 = vmatprep.subr.mxu0 0.0
        %2826 = vmatpush1.msra.mxu0 0.0
        %2827 = vmatprep.subr.mxu0 0.0
        %2828 = vmatpush1.msra.mxu0 0.0
        %2829 = vmatprep.subr.mxu0 0.0
        %2830 = vmatpush1.msra.mxu0 0.0
        %2831 = vmatprep.subr.mxu0 0.0
        %2832 = vmatpush1.msra.mxu0 0.0
        %2833 = vmatprep.subr.mxu0 0.0
        %2834 = vmatpush1.msra.mxu0 0.0
        %2835 = vmatprep.subr.mxu0 0.0
        %2836 = vmatpush1.msra.mxu0 0.0
        %2837 = vmatprep.subr.mxu0 0.0
        %2838 = vmatpush1.msra.mxu0 0.0
        %2839 = vmatprep.subr.mxu0 0.0
        %2840 = vmatpush1.msra.mxu0 0.0
        %2841 = vmatprep.subr.mxu0 0.0
        %2842 = vmatpush1.msra.mxu0 0.0
        %2843 = vmatprep.subr.mxu0 0.0
        %2844 = vmatpush1.msra.mxu0 0.0
        %2845 = vmatprep.mubr.f32.mxu0 0.0
        %2846 = vmatmul.mubr.f32.gmra.mrb[0].mxu0 %v2734
        %v2847 = vpop.f32.mrb[0].mxu0
        %v2848 = vadd.f32 0.0, %v2847
        %v2849 = vpop.f32.mrb[0].mxu0
        %2850 = vmatprep.mubr.f32.mxu0 0.0
        %2851 = vmatmul.mubr.f32.gmra.mrb[0].mxu0 %v2737
        %v2852 = vpop.f32.mrb[0].mxu0
        %v2853 = vadd.f32 0.0, %v2852
        %v2854 = vpop.f32.mrb[0].mxu0
        %2855 = vmatprep.mubr.f32.mxu0 0.0
        %2856 = vmatmul.mubr.f32.gmra.mrb[0].mxu0 %v2740
        %v2857 = vpop.f32.mrb[0].mxu0
        %v2858 = vadd.f32 0.0, %v2857
        %v2859 = vpop.f32.mrb[0].mxu0
        %2860 = vmatprep.mubr.f32.mxu0 0.0
        %2861 = vmatmul.mubr.f32.gmra.mrb[0].mxu0 %v2743
        %v2862 = vpop.f32.mrb[0].mxu0
        %v2863 = vadd.f32 0.0, %v2862
        %v2864 = vpop.f32.mrb[0].mxu0
        %2865 = vmatprep.mubr.f32.mxu0 0.0
        %2866 = vmatmul.mubr.f32.gmra.mrb[0].mxu0 %v2746
        %v2867 = vpop.f32.mrb[0].mxu0
        %v2868 = vadd.f32 0.0, %v2867
        %v2869 = vpop.f32.mrb[0].mxu0
        %2870 = vmatprep.mubr.f32.mxu0 0.0
        %2871 = vmatmul.mubr.f32.gmra.mrb[0].mxu0 %v2749
        %v2872 = vpop.f32.mrb[0].mxu0
        %v2873 = vadd.f32 0.0, %v2872
        %v2874 = vpop.f32.mrb[0].mxu0
        %2875 = vmatprep.mubr.f32.mxu0 0.0
        %2876 = vmatmul.mubr.f32.gmra.mrb[0].mxu0 %v2752
        %v2877 = vpop.f32.mrb[0].mxu0
        %v2878 = vadd.f32 0.0, %v2877
        %v2879 = vpop.f32.mrb[0].mxu0
        %2880 = vmatprep.mubr.f32.mxu0 0.0
        %2881 = vmatmul.mubr.f32.gmra.mrb[0].mxu0 %v2755
        %v2882 = vpop.f32.mrb[0].mxu0
        %v2883 = vadd.f32 0.0, %v2882
        %v2884 = vpop.f32.mrb[0].mxu0
        %2885 = vmatprep.mubr.f32.mxu0 0.0
        %2886 = vmatmul.mubr.f32.gmra.mrb[0].mxu0 %v2758
        %v2887 = vpop.f32.mrb[0].mxu0
        %v2888 = vadd.f32 0.0, %v2887
        %v2889 = vpop.f32.mrb[0].mxu0
        %2890 = vmatprep.mubr.f32.mxu0 0.0
        %2891 = vmatmul.mubr.f32.gmra.mrb[0].mxu0 %v2761
        %v2892 = vpop.f32.mrb[0].mxu0
        %v2893 = vadd.f32 0.0, %v2892
        %v2894 = vpop.f32.mrb[0].mxu0
        %2895 = vmatprep.mubr.f32.mxu0 0.0
        %2896 = vmatmul.mubr.f32.gmra.mrb[0].mxu0 %v2764
        %v2897 = vpop.f32.mrb[0].mxu0
        %v2898 = vadd.f32 0.0, %v2897
        %v2899 = vpop.f32.mrb[0].mxu0
        %2900 = vmatprep.mubr.f32.mxu0 0.0
        %2901 = vmatmul.mubr.f32.gmra.mrb[0].mxu0 %v2767
        %v2902 = vpop.f32.mrb[0].mxu0
        %v2903 = vadd.f32 0.0, %v2902
        %v2904 = vpop.f32.mrb[0].mxu0
        %2905 = vmatprep.mubr.f32.mxu0 0.0
        %2906 = vmatmul.mubr.f32.gmra.mrb[0].mxu0 %v2770
        %v2907 = vpop.f32.mrb[0].mxu0
        %v2908 = vadd.f32 0.0, %v2907
        %v2909 = vpop.f32.mrb[0].mxu0
        %2910 = vmatprep.mubr.f32.mxu0 0.0
        %2911 = vmatmul.mubr.f32.gmra.mrb[0].mxu0 %v2773
        %v2912 = vpop.f32.mrb[0].mxu0
        %v2913 = vadd.f32 0.0, %v2912
        %v2914 = vpop.f32.mrb[0].mxu0
        %2915 = vmatprep.mubr.f32.mxu0 0.0
        %2916 = vmatmul.mubr.f32.gmra.mrb[0].mxu0 %v2776
        %v2917 = vpop.f32.mrb[0].mxu0
        %v2918 = vadd.f32 0.0, %v2917
        %v2919 = vpop.f32.mrb[0].mxu0
        %2920 = vmatprep.mubr.f32.mxu0 0.0
        %2921 = vmatmul.mubr.f32.gmra.mrb[0].mxu0 %v2779
        %v2922 = vpop.f32.mrb[0].mxu0
        %v2923 = vadd.f32 0.0, %v2922
        %v2924 = vpop.f32.mrb[0].mxu0
        %2925 = vdwg.mxu0
        %v2927 = vsel %vm603, %v1315, 0
        %v2930 = vsel %vm603, %v1320, 0
        %v2933 = vsel %vm603, %v1325, 0
        %v2936 = vsel %vm603, %v1330, 0
        %v2939 = vsel %vm603, %v1412, 0
        %v2942 = vsel %vm603, %v1417, 0
        %v2945 = vsel %vm603, %v1422, 0
        %v2948 = vsel %vm603, %v1427, 0
        %v2951 = vsel %vm603, %v1509, 0
        %v2954 = vsel %vm603, %v1514, 0
        %v2957 = vsel %vm603, %v1519, 0
        %v2960 = vsel %vm603, %v1524, 0
        %v2963 = vsel %vm603, %v1606, 0
        %v2966 = vsel %vm603, %v1611, 0
        %v2969 = vsel %vm603, %v1616, 0
        %v2972 = vsel %vm603, %v1621, 0
        %2974 = vmatprep.subr.mxu0 0.0
        %2975 = vmatpush1.msra.mxu0 %v1624
        %2976 = vmatprep.subr.mxu0 0.0
        %2977 = vmatpush1.msra.mxu0 %v1625
        %2978 = vmatprep.subr.mxu0 0.0
        %2979 = vmatpush1.msra.mxu0 %v1626
        %2980 = vmatprep.subr.mxu0 0.0
        %2981 = vmatpush1.msra.mxu0 %v1627
        %2982 = vmatprep.subr.mxu0 0.0
        %2983 = vmatpush1.msra.mxu0 0.0
        %2984 = vmatprep.subr.mxu0 0.0
        %2985 = vmatpush1.msra.mxu0 0.0
        %2986 = vmatprep.subr.mxu0 0.0
        %2987 = vmatpush1.msra.mxu0 0.0
        %2988 = vmatprep.subr.mxu0 0.0
        %2989 = vmatpush1.msra.mxu0 0.0
        %2990 = vmatprep.subr.mxu0 0.0
        %2991 = vmatpush1.msra.mxu0 0.0
        %2992 = vmatprep.subr.mxu0 0.0
        %2993 = vmatpush1.msra.mxu0 0.0
        %2994 = vmatprep.subr.mxu0 0.0
        %2995 = vmatpush1.msra.mxu0 0.0
        %2996 = vmatprep.subr.mxu0 0.0
        %2997 = vmatpush1.msra.mxu0 0.0
        %2998 = vmatprep.subr.mxu0 0.0
        %2999 = vmatpush1.msra.mxu0 0.0
        %3000 = vmatprep.subr.mxu0 0.0
        %3001 = vmatpush1.msra.mxu0 0.0
        %3002 = vmatprep.subr.mxu0 0.0
        %3003 = vmatpush1.msra.mxu0 0.0
        %3004 = vmatprep.subr.mxu0 0.0
        %3005 = vmatpush1.msra.mxu0 0.0
        %3006 = vmatprep.subr.mxu0 0.0
        %3007 = vmatpush1.msra.mxu0 0.0
        %3008 = vmatprep.subr.mxu0 0.0
        %3009 = vmatpush1.msra.mxu0 0.0
        %3010 = vmatprep.subr.mxu0 0.0
        %3011 = vmatpush1.msra.mxu0 0.0
        %3012 = vmatprep.subr.mxu0 0.0
        %3013 = vmatpush1.msra.mxu0 0.0
        %3014 = vmatprep.subr.mxu0 0.0
        %3015 = vmatpush1.msra.mxu0 0.0
        %3016 = vmatprep.subr.mxu0 0.0
        %3017 = vmatpush1.msra.mxu0 0.0
        %3018 = vmatprep.subr.mxu0 0.0
        %3019 = vmatpush1.msra.mxu0 0.0
        %3020 = vmatprep.subr.mxu0 0.0
        %3021 = vmatpush1.msra.mxu0 0.0
        %3022 = vmatprep.subr.mxu0 0.0
        %3023 = vmatpush1.msra.mxu0 0.0
        %3024 = vmatprep.subr.mxu0 0.0
        %3025 = vmatpush1.msra.mxu0 0.0
        %3026 = vmatprep.subr.mxu0 0.0
        %3027 = vmatpush1.msra.mxu0 0.0
        %3028 = vmatprep.subr.mxu0 0.0
        %3029 = vmatpush1.msra.mxu0 0.0
        %3030 = vmatprep.subr.mxu0 0.0
        %3031 = vmatpush1.msra.mxu0 0.0
        %3032 = vmatprep.subr.mxu0 0.0
        %3033 = vmatpush1.msra.mxu0 0.0
        %3034 = vmatprep.subr.mxu0 0.0
        %3035 = vmatpush1.msra.mxu0 0.0
        %3036 = vmatprep.subr.mxu0 0.0
        %3037 = vmatpush1.msra.mxu0 0.0
        %3038 = vmatprep.mubr.f32.mxu0 0.0
        %3039 = vmatmul.mubr.f32.gmra.mrb[0].mxu0 %v2927
        %v3040 = vpop.f32.mrb[0].mxu0
        %v3041 = vadd.f32 %v2848, %v3040
        %v3042 = vpop.f32.mrb[0].mxu0
        %3043 = vmatprep.mubr.f32.mxu0 0.0
        %3044 = vmatmul.mubr.f32.gmra.mrb[0].mxu0 %v2930
        %v3045 = vpop.f32.mrb[0].mxu0
        %v3046 = vadd.f32 %v2853, %v3045
        %v3047 = vpop.f32.mrb[0].mxu0
        %3048 = vmatprep.mubr.f32.mxu0 0.0
        %3049 = vmatmul.mubr.f32.gmra.mrb[0].mxu0 %v2933
        %v3050 = vpop.f32.mrb[0].mxu0
        %v3051 = vadd.f32 %v2858, %v3050
        %v3052 = vpop.f32.mrb[0].mxu0
        %3053 = vmatprep.mubr.f32.mxu0 0.0
        %3054 = vmatmul.mubr.f32.gmra.mrb[0].mxu0 %v2936
        %v3055 = vpop.f32.mrb[0].mxu0
        %v3056 = vadd.f32 %v2863, %v3055
        %v3057 = vpop.f32.mrb[0].mxu0
        %3058 = vmatprep.mubr.f32.mxu0 0.0
        %3059 = vmatmul.mubr.f32.gmra.mrb[0].mxu0 %v2939
        %v3060 = vpop.f32.mrb[0].mxu0
        %v3061 = vadd.f32 %v2868, %v3060
        %v3062 = vpop.f32.mrb[0].mxu0
        %3063 = vmatprep.mubr.f32.mxu0 0.0
        %3064 = vmatmul.mubr.f32.gmra.mrb[0].mxu0 %v2942
        %v3065 = vpop.f32.mrb[0].mxu0
        %v3066 = vadd.f32 %v2873, %v3065
        %v3067 = vpop.f32.mrb[0].mxu0
        %3068 = vmatprep.mubr.f32.mxu0 0.0
        %3069 = vmatmul.mubr.f32.gmra.mrb[0].mxu0 %v2945
        %v3070 = vpop.f32.mrb[0].mxu0
        %v3071 = vadd.f32 %v2878, %v3070
        %v3072 = vpop.f32.mrb[0].mxu0
        %3073 = vmatprep.mubr.f32.mxu0 0.0
        %3074 = vmatmul.mubr.f32.gmra.mrb[0].mxu0 %v2948
        %v3075 = vpop.f32.mrb[0].mxu0
        %v3076 = vadd.f32 %v2883, %v3075
        %v3077 = vpop.f32.mrb[0].mxu0
        %3078 = vmatprep.mubr.f32.mxu0 0.0
        %3079 = vmatmul.mubr.f32.gmra.mrb[0].mxu0 %v2951
        %v3080 = vpop.f32.mrb[0].mxu0
        %v3081 = vadd.f32 %v2888, %v3080
        %v3082 = vpop.f32.mrb[0].mxu0
        %3083 = vmatprep.mubr.f32.mxu0 0.0
        %3084 = vmatmul.mubr.f32.gmra.mrb[0].mxu0 %v2954
        %v3085 = vpop.f32.mrb[0].mxu0
        %v3086 = vadd.f32 %v2893, %v3085
        %v3087 = vpop.f32.mrb[0].mxu0
        %3088 = vmatprep.mubr.f32.mxu0 0.0
        %3089 = vmatmul.mubr.f32.gmra.mrb[0].mxu0 %v2957
        %v3090 = vpop.f32.mrb[0].mxu0
        %v3091 = vadd.f32 %v2898, %v3090
        %v3092 = vpop.f32.mrb[0].mxu0
        %3093 = vmatprep.mubr.f32.mxu0 0.0
        %3094 = vmatmul.mubr.f32.gmra.mrb[0].mxu0 %v2960
        %v3095 = vpop.f32.mrb[0].mxu0
        %v3096 = vadd.f32 %v2903, %v3095
        %v3097 = vpop.f32.mrb[0].mxu0
        %3098 = vmatprep.mubr.f32.mxu0 0.0
        %3099 = vmatmul.mubr.f32.gmra.mrb[0].mxu0 %v2963
        %v3100 = vpop.f32.mrb[0].mxu0
        %v3101 = vadd.f32 %v2908, %v3100
        %v3102 = vpop.f32.mrb[0].mxu0
        %3103 = vmatprep.mubr.f32.mxu0 0.0
        %3104 = vmatmul.mubr.f32.gmra.mrb[0].mxu0 %v2966
        %v3105 = vpop.f32.mrb[0].mxu0
        %v3106 = vadd.f32 %v2913, %v3105
        %v3107 = vpop.f32.mrb[0].mxu0
        %3108 = vmatprep.mubr.f32.mxu0 0.0
        %3109 = vmatmul.mubr.f32.gmra.mrb[0].mxu0 %v2969
        %v3110 = vpop.f32.mrb[0].mxu0
        %v3111 = vadd.f32 %v2918, %v3110
        %v3112 = vpop.f32.mrb[0].mxu0
        %3113 = vmatprep.mubr.f32.mxu0 0.0
        %3114 = vmatmul.mubr.f32.gmra.mrb[0].mxu0 %v2972
        %v3115 = vpop.f32.mrb[0].mxu0
        %v3116 = vadd.f32 %v2923, %v3115
        %v3117 = vpop.f32.mrb[0].mxu0
        %3118 = vdwg.mxu0
        %v3119 = vld [vmem:[%s5] sm:$0x1]
        %v3121 = vlaneseq
        %v3122 = vshrl.u32 %v3121, 7
        %v3123 = vsub.s32 0, %v3122
        %v3124 = vrot.slane %v3119, %v3123
        %v3126 = vadd.f32 %v3041, %v3124
        %v3127 = vadd.f32 %v3046, %v3124
        %v3128 = vadd.f32 %v3051, %v3124
        %v3129 = vadd.f32 %v3056, %v3124
        %v3130 = vadd.f32 %v3061, %v3124
        %v3131 = vadd.f32 %v3066, %v3124
        %v3132 = vadd.f32 %v3071, %v3124
        %v3133 = vadd.f32 %v3076, %v3124
        %v3134 = vadd.f32 %v3081, %v3124
        %v3135 = vadd.f32 %v3086, %v3124
        %v3136 = vadd.f32 %v3091, %v3124
        %v3137 = vadd.f32 %v3096, %v3124
        %v3138 = vadd.f32 %v3101, %v3124
        %v3139 = vadd.f32 %v3106, %v3124
        %v3140 = vadd.f32 %v3111, %v3124
        %v3141 = vadd.f32 %v3116, %v3124
        %3142 = vst.msk [vmem:[%s314] sm:$0xff] %vm361, %v3126
        %3143 = vst.msk [vmem:[%s314 + $0x8] sm:$0xff] %vm361, %v3127
        %3144 = vst.msk [vmem:[%s314 + $0x10] sm:$0xff] %vm361, %v3128
        %3145 = vst.msk [vmem:[%s314 + $0x18] sm:$0xff] %vm361, %v3129
        %3146 = vst.msk [vmem:[%s314 + $0x20] sm:$0xff] %vm361, %v3130
        %3147 = vst.msk [vmem:[%s314 + $0x28] sm:$0xff] %vm361, %v3131
        %3148 = vst.msk [vmem:[%s314 + $0x30] sm:$0xff] %vm361, %v3132
        %3149 = vst.msk [vmem:[%s314 + $0x38] sm:$0xff] %vm361, %v3133
        %3150 = vst.msk [vmem:[%s314 + $0x40] sm:$0xff] %vm361, %v3134
        %3151 = vst.msk [vmem:[%s314 + $0x48] sm:$0xff] %vm361, %v3135
        %3152 = vst.msk [vmem:[%s314 + $0x50] sm:$0xff] %vm361, %v3136
        %3153 = vst.msk [vmem:[%s314 + $0x58] sm:$0xff] %vm361, %v3137
        %3154 = vst.msk [vmem:[%s314 + $0x60] sm:$0xff] %vm361, %v3138
        %3155 = vst.msk [vmem:[%s314 + $0x68] sm:$0xff] %vm361, %v3139
        %3156 = vst.msk [vmem:[%s314 + $0x70] sm:$0xff] %vm361, %v3140
        %3157 = vst.msk [vmem:[%s314 + $0x78] sm:$0xff] %vm361, %v3141
        %s3158 = sand.u32 %s164, 1
        %s3159 = scalar_lea.sflag [#allocation4], %s3158
        %s3160 = sand.u32 %s164, 1
        %s3161 = smul.addr %s3160, 128
        %s3162 = scalar_lea.vmem [#allocation10], %s3161
        // Predicated region
        $region61: #{tpu_custom_call.1} parent=43 // pred_check
          %p3163 = pneg %p174
        $region62: #{tpu_custom_call.1} parent=43 // pred_check_branch
          %3165 = sbr.rel (%p3163) target = $region64
        $region63: #{tpu_custom_call.1} parent=43 // pred_region
          %s3166 = smul.u32 4, %s25
          %s3168 = ssub.s32 2048, 2048
          %3169 = vsyncadd %s3159, %s3168
          %s3170 = smul.addr %s3166, 4
          %s3171 = smul.addr %s3170, 128
          %s3172 = scalar_lea.hbm %s6, %s3171
          %s3173 = sshll.u32 %s3162, 4
          %s3174 = int_to_ptr.vmem [resolvable:$true] %s3173
          %3179 = dma.vmem_to_hbm [thread:$0]  %s3174, 2048, %s3172, %s3159, 128, 128, 8
        $region64: #{tpu_custom_call.1} parent=43 // pred_fallthru
          _
      $region44: #{tpu_custom_call.1} parent=5 // pred_fallthru
        _
      %p3180 = scmp.le.s32.totalorder 2, %s20
      // Predicated region
      $region65: #{tpu_custom_call.1} parent=5 // pred_check
        %p3181 = pneg %p3180
      $region66: #{tpu_custom_call.1} parent=5 // pred_check_branch
        %3183 = sbr.rel (%p3181) target = $region68
      $region67: #{tpu_custom_call.1} parent=5 // pred_region
        %s3184 = ssub.s32 %s20, 2
        // Predicated region
        $region69: #{tpu_custom_call.1} parent=67 // pred_check
          %p3185 = pneg %p180
        $region70: #{tpu_custom_call.1} parent=67 // pred_check_branch
          %3187 = sbr.rel (%p3185) target = $region72
        $region71: #{tpu_custom_call.1} parent=67 // pred_region
          %s3188 = sand.u32 %s165, 1
          %s3189 = scalar_lea.sflag [#allocation4], %s3188
          %s3190 = sand.u32 %s165, 1
          %s3191 = smul.addr %s3190, 128
          %s3192 = scalar_lea.vmem [#allocation10], %s3191
          %3193 = dma.done %s3189, 2048
        $region72: #{tpu_custom_call.1} parent=67 // pred_fallthru
          _
      $region68: #{tpu_custom_call.1} parent=5 // pred_fallthru
        _
    $region6: #{tpu_custom_call.1} parent=1 // loop_footer
      %s24 = sadd.s32 1, %s20
    $region7: #{tpu_custom_call.1} parent=1 // loop_footer_branch
      %19 = sbr.rel target = $region3
    $region8: #{tpu_custom_call.1} parent=1 // loop_exit
      _
    %3194 = vsyncpa [#allocation3], 1
    %s3195 = scalar_lea.sflag [#allocation3], 1
    %3196 = vsyncpa %s3195, 1
    %3197 = vsyncpa [#allocation6], 1
    %3198 = vsyncpa [#allocation9], 1
    %3199 = vsyncpa [#allocation4], 1
    %s3200 = scalar_lea.sflag [#allocation4], 1
    %3201 = vsyncpa %s3200, 1

</llo_original>
